<compile_context>
chip_gen: v7x
topology: tpu7x:2x2x1
jax: 0.10.0
libtpu: 0.0.40
codegen_flags: <defaults>
</compile_context>

<pallas_src>
import functools

import numpy as np
import jax
import jax.numpy as jnp
from jax import lax
from jax.experimental import pallas as pl
from jax.experimental.pallas import tpu as pltpu

K1 = (3, 5)
K2 = (5, 3)
NTAP1 = K1[0] * K1[1]
NTAP2 = K2[0] * K2[1]


def ccm_kernel(x_ref, w1_ref, b1_ref, wd_ref, bd_ref, mk_ref, w3_ref, b3_ref,
               o_ref, *, W, hp, mask_needed):
    """One grid step over a (channels, nb*H*W) block (H*W flattened on lanes).

    x_ref  : (Cin,  L)    input block, L = nb*H*W
    w1_ref : (C2,   Cin)  fused Conv1 weight (C2 = 2*hp, both branches)
    b1_ref : (C2,   1)
    wd_ref : (C2,   30)   depthwise weights, both passes, taps on lanes
    bd_ref : (C2,   2)    depthwise biases (pass 0 / pass 1)
    mk_ref : (30,   L)    per-tap zero-'same'-padding masks (f32 0/1)
    w3_ref : (Cout, hp)
    b3_ref : (Cout, 1)
    o_ref  : (Cout, L)
    """
    L = x_ref.shape[1]

    def dw_pass(y, KH, KW, tap0, bias_idx):
        # Depthwise conv, stride 1, odd kernel, zero 'same' padding.
        # Each tap = lane roll of the whole block (XLU slot) * per-channel
        # weight column (VPU); the boundary mask zeroes positions whose source
        # pixel falls outside its own image, which also kills any cross-image /
        # cross-block wrap from the roll.
        ph, pw = KH // 2, KW // 2
        acc = None
        t = tap0
        for kh in range(KH):
            dh = kh - ph
            for kw in range(KW):
                dw_ = kw - pw
                s = dh * W + dw_                          # flat source offset
                tap = y if s == 0 else pltpu.roll(y, shift=(-s) % L, axis=1)
                contrib = tap * wd_ref[:, t:t + 1]        # (C2,1) channel weight
                if mask_needed[t]:                        # interior taps skip this
                    contrib = contrib * mk_ref[t:t + 1, :]
                acc = contrib if acc is None else acc + contrib
                t += 1
        return acc + bd_ref[:, bias_idx:bias_idx + 1]

    # Conv1 (1x1) == channel matmul on the MXU (both chunk branches fused into
    # one C2-row contraction; with the batch on lanes the matmul N-dim is L).
    # For very small Cin a VPU broadcast-MAC would also work, but the MXU is
    # otherwise idle here so the dot stays off the VPU critical path.
    y = jnp.dot(w1_ref[...], x_ref[...], preferred_element_type=jnp.float32)
    y = y + b1_ref[...]
    y = dw_pass(y, K1[0], K1[1], 0, 0)                    # depthwise (3,5)
    y = dw_pass(y, K2[0], K2[1], NTAP1, 1)                # depthwise (5,3)
    g = (y[:hp, :] * y[hp:, :]).astype(w3_ref.dtype)      # chunk(2) gating (aligned)
    # Conv3 (1x1): lane-dense (Cout, L) store.
    o_ref[...] = (jnp.dot(w3_ref[...], g, preferred_element_type=jnp.float32)
                  + b3_ref[...]).astype(o_ref.dtype)


def init_params(key, dim, growth_rate=2.8):
    hidden = int(dim * growth_rate)
    c2 = 2 * hidden
    ks = jax.random.split(key, 8)
    s = 0.2
    return dict(
        w1=s * jax.random.normal(ks[0], (dim, c2), jnp.float32),     # Conv1 (Cin,Cout)
        b1=s * jax.random.normal(ks[1], (1, c2), jnp.float32),
        wd1=s * jax.random.normal(ks[2], (3, 5, c2), jnp.float32),   # depthwise (kh,kw,C)
        bd1=s * jax.random.normal(ks[3], (1, c2), jnp.float32),
        wd2=s * jax.random.normal(ks[4], (5, 3, c2), jnp.float32),
        bd2=s * jax.random.normal(ks[5], (1, c2), jnp.float32),
        w3=s * jax.random.normal(ks[6], (hidden, dim), jnp.float32), # Conv3 (Cin,Cout)
        b3=s * jax.random.normal(ks[7], (1, dim), jnp.float32),
    )


def _pick_block_batch(N, max_nb=8):
    """Largest divisor of N that (a) bounds per-step VMEM and (b) keeps >= 2
    grid steps when N >= 2 so both v7x TensorCores get work.  On v5e (1 TC,
    128 MiB VMEM) pass block_batch=N for maximum per-step amortization."""
    cap = max(1, min(max_nb, N // 2 if N >= 2 else 1))
    nb = cap
    while N % nb:
        nb -= 1
    return nb


def ccm_pallas(x_nchw, p, block_batch=None, matmul_dtype=jnp.float32):
    N, Cin, H, W = x_nchw.shape
    hidden, Cout = p['w3'].shape
    HW = H * W
    hp = -(-hidden // 8) * 8          # pad hidden up to a sublane multiple (8)
    C2 = 2 * hp

    def split_pad(a, axis):
        # (.., 2*hidden, ..) -> (.., 2*hp, ..): each chunk half zero-padded to
        # hp so chunk(2) splits on a sublane-aligned boundary.  Pads are exactly
        # zero, so padded channels stay identically zero through the network.
        a1 = lax.slice_in_dim(a, 0, hidden, axis=axis)
        a2 = lax.slice_in_dim(a, hidden, 2 * hidden, axis=axis)
        padw = [(0, 0)] * a.ndim
        padw[axis] = (0, hp - hidden)
        return jnp.concatenate([jnp.pad(a1, padw), jnp.pad(a2, padw)], axis=axis)

    # --- parameter re-layout (runs once at trace time) -----------------------
    w1p = split_pad(p['w1'], axis=1).T.astype(matmul_dtype)               # (C2, Cin)
    b1p = split_pad(p['b1'], axis=1).reshape(C2, 1).astype(jnp.float32)
    wd1 = split_pad(p['wd1'], axis=2).reshape(NTAP1, C2)                  # tap-major
    wd2 = split_pad(p['wd2'], axis=2).reshape(NTAP2, C2)
    wdp = jnp.concatenate([wd1, wd2], axis=0).T.astype(jnp.float32)       # (C2, 30)
    bdp = jnp.concatenate(
        [split_pad(p['bd1'], axis=1).reshape(C2, 1),
         split_pad(p['bd2'], axis=1).reshape(C2, 1)], axis=1).astype(jnp.float32)
    w3p = jnp.pad(p['w3'], ((0, hp - hidden), (0, 0))).T.astype(matmul_dtype)  # (Cout, hp)
    b3p = p['b3'].reshape(Cout, 1).astype(jnp.float32)

    # --- block batch / grid ---------------------------------------------------
    nb = _pick_block_batch(N) if block_batch is None else block_batch
    assert N % nb == 0, (N, nb)
    L = nb * HW

    # --- per-tap zero-'same'-padding masks (compile-time, tiled over nb) -----
    hh = np.arange(HW) // W
    ww = np.arange(HW) % W
    rows, mask_needed = [], []
    for (KH, KW) in (K1, K2):
        ph, pw = KH // 2, KW // 2
        for kh in range(KH):
            for kw in range(KW):
                dh, dw_ = kh - ph, kw - pw
                valid = ((hh + dh >= 0) & (hh + dh < H) &
                         (ww + dw_ >= 0) & (ww + dw_ < W))
                mask_needed.append(bool(not valid.all()))
                rows.append(np.tile(valid.astype(np.float32), nb))
    masks = jnp.asarray(np.stack(rows))                                   # (30, L)

    # --- batch flattened into the 128-lane axis -------------------------------
    x2d = (x_nchw.reshape(N, Cin, HW).transpose(1, 0, 2)
           .reshape(Cin, N * HW).astype(matmul_dtype))

    params = [w1p, b1p, wdp, bdp, masks, w3p, b3p]
    in_specs = [pl.BlockSpec((Cin, L), lambda b: (0, b))]
    for prm in params:   # grid-constant blocks: fetched once, kept resident
        in_specs.append(pl.BlockSpec(prm.shape, lambda b: (0, 0)))

    kern = functools.partial(ccm_kernel, W=W, hp=hp,
                             mask_needed=tuple(mask_needed))

    flops = 2 * N * HW * (C2 * Cin + (NTAP1 + NTAP2) * C2 + Cout * hp) + N * HW * hp
    bytes_accessed = int(x2d.size * x2d.dtype.itemsize + N * Cout * HW * 4
                         + sum(a.size * a.dtype.itemsize for a in params))

    out2d = pl.pallas_call(
        kern,
        out_shape=jax.ShapeDtypeStruct((Cout, N * HW), jnp.float32),
        grid=(N // nb,),
        in_specs=in_specs,
        out_specs=pl.BlockSpec((Cout, L), lambda b: (0, b)),
        compiler_params=pltpu.CompilerParams(
            # Independent batch blocks -> shard across v7x's two TensorCores.
            dimension_semantics=("parallel",),
            # Explicit scoped-VMEM budget with headroom; re-derive nb if
            # dim / H / W scale (v7x has only 64 MiB physical VMEM per core).
            vmem_limit_bytes=32 * 1024 * 1024),
        cost_estimate=pl.CostEstimate(flops=int(flops), transcendentals=0,
                                      bytes_accessed=bytes_accessed),
    )(x2d, *params)

    return (out2d.reshape(Cout, N, HW).transpose(1, 0, 2)
            .reshape(N, Cout, H, W))


def ccm_ref(x_nchw, p):
    """Pure-JAX reference (matches torch semantics)."""
    x = jnp.transpose(x_nchw, (0, 2, 3, 1)).astype(jnp.float32)
    hidden = p['w3'].shape[0]

    def dw(y, w, b):
        kh, kw, C = w.shape
        rhs = w[:, :, None, :]  # HWIO, in_per_group = 1
        out = lax.conv_general_dilated(
            y, rhs, (1, 1), 'SAME',
            dimension_numbers=('NHWC', 'HWIO', 'NHWC'),
            feature_group_count=C,
            precision=lax.Precision.HIGHEST)
        return out + b

    y = jnp.einsum('nhwc,cd->nhwd', x, p['w1'],
                   precision=lax.Precision.HIGHEST) + p['b1']
    y = dw(y, p['wd1'], p['bd1'])
    y = dw(y, p['wd2'], p['bd2'])
    x1, x2 = y[..., :hidden], y[..., hidden:]
    out = jnp.einsum('nhwc,cd->nhwd', x1 * x2, p['w3'],
                     precision=lax.Precision.HIGHEST) + p['b3']
    return jnp.transpose(out, (0, 3, 1, 2))


if __name__ == "__main__":
    key = jax.random.PRNGKey(0)
    kx, kp = jax.random.split(key)
    dim, N, H, W = 4, 2, 16, 16           # hidden = int(4 * 2.8) = 11
    x = jax.random.normal(kx, (N, dim, H, W), jnp.float32)
    p = init_params(kp, dim)

    y_ref = jax.block_until_ready(ccm_ref(x, p))

    # f32 MXU operands (v5e default): tight check vs HIGHEST-precision ref.
    y = jax.block_until_ready(ccm_pallas(x, p))
    assert y.shape == (N, dim, H, W), y.shape
    err = float(jnp.max(jnp.abs(y - y_ref)))
    assert jnp.allclose(y, y_ref, atol=2e-3, rtol=2e-3), f"f32 max abs err {err}"

    # bf16 MXU operands (recommended on v6e/v7x).  Compare against the
    # reference fed the identically bf16-rounded x / w1 / w3, so the check
    # isolates the kernel itself (accumulation is f32 in both paths).
    rb = lambda a: a.astype(jnp.bfloat16).astype(jnp.float32)
    y_bf = jax.block_until_ready(ccm_pallas(x, p, matmul_dtype=jnp.bfloat16))
    y_ref_bf = ccm_ref(rb(x), dict(p, w1=rb(p['w1']), w3=rb(p['w3'])))
    err_bf = float(jnp.max(jnp.abs(y_bf - y_ref_bf)))
    assert jnp.allclose(y_bf, y_ref_bf, atol=1e-2, rtol=1e-2), \
        f"bf16 max abs err {err_bf}"

    print("KERNEL_OK")
</pallas_src>

<mosaic_0001>
module attributes {stable_mosaic.version = 11 : i64} {
  func.func @ccm_kernel(%arg0: i32, %arg1: memref<4x256xf32, #tpu.memory_space<vmem>>, %arg2: memref<32x4xf32, #tpu.memory_space<vmem>>, %arg3: memref<32x1xf32, #tpu.memory_space<vmem>>, %arg4: memref<32x30xf32, #tpu.memory_space<vmem>>, %arg5: memref<32x2xf32, #tpu.memory_space<vmem>>, %arg6: memref<30x256xf32, #tpu.memory_space<vmem>>, %arg7: memref<4x16xf32, #tpu.memory_space<vmem>>, %arg8: memref<4x1xf32, #tpu.memory_space<vmem>>, %arg9: memref<4x256xf32, #tpu.memory_space<vmem>>) attributes {dimension_semantics = [#tpu.dimension_semantics<parallel>], iteration_bounds = array<i64: 2>, scalar_prefetch = 0 : i64, scratch_operands = 0 : i64, tpu.core_type = #tpu.core_type<tc>, window_params = [{transform_indices = @transform_0, window_bounds = array<i64: 4, 256>}, {pipeline_mode = #tpu.pipeline_mode<synchronous>, transform_indices = @transform_1, window_bounds = array<i64: 32, 4>}, {pipeline_mode = #tpu.pipeline_mode<synchronous>, transform_indices = @transform_2, window_bounds = array<i64: 32, 1>}, {pipeline_mode = #tpu.pipeline_mode<synchronous>, transform_indices = @transform_3, window_bounds = array<i64: 32, 30>}, {pipeline_mode = #tpu.pipeline_mode<synchronous>, transform_indices = @transform_4, window_bounds = array<i64: 32, 2>}, {pipeline_mode = #tpu.pipeline_mode<synchronous>, transform_indices = @transform_5, window_bounds = array<i64: 30, 256>}, {pipeline_mode = #tpu.pipeline_mode<synchronous>, transform_indices = @transform_6, window_bounds = array<i64: 4, 16>}, {pipeline_mode = #tpu.pipeline_mode<synchronous>, transform_indices = @transform_7, window_bounds = array<i64: 4, 1>}, {transform_indices = @transform_8, window_bounds = array<i64: 4, 256>}]} {
    %c0 = arith.constant 0 : index
    %c0_0 = arith.constant 0 : index
    %0 = vector.load %arg2[%c0, %c0_0] : memref<32x4xf32, #tpu.memory_space<vmem>>, vector<32x4xf32>
    %c0_1 = arith.constant 0 : index
    %c0_2 = arith.constant 0 : index
    %1 = vector.load %arg1[%c0_1, %c0_2] : memref<4x256xf32, #tpu.memory_space<vmem>>, vector<4x256xf32>
    %cst = arith.constant dense<0.000000e+00> : vector<32x256xf32>
    %2 = tpu.matmul %0, %1, %cst {dimension_numbers = #tpu.dot_dimension_numbers<[1], [0], [0], [1], [0, 0, 1, 1], [], []>} : vector<32x4xf32>, vector<4x256xf32>, vector<32x256xf32> -> vector<32x256xf32>
    %c0_3 = arith.constant 0 : index
    %c0_4 = arith.constant 0 : index
    %3 = vector.load %arg3[%c0_3, %c0_4] : memref<32x1xf32, #tpu.memory_space<vmem>>, vector<32x1xf32>
    %4 = vector.broadcast %3 : vector<32x1xf32> to vector<32x256xf32>
    %5 = arith.addf %2, %4 : vector<32x256xf32>
    %c18_i32 = arith.constant 18 : i32
    %6 = tpu.dynamic_rotate %5 by %c18_i32 dim 1 : vector<32x256xf32>, i32 -> vector<32x256xf32>
    %c0_5 = arith.constant 0 : index
    %c0_6 = arith.constant 0 : index
    %7 = vector.load %arg4[%c0_5, %c0_6] : memref<32x30xf32, #tpu.memory_space<vmem>>, vector<32x1xf32>
    %8 = vector.broadcast %7 : vector<32x1xf32> to vector<32x256xf32>
    %9 = arith.mulf %6, %8 : vector<32x256xf32>
    %c0_7 = arith.constant 0 : index
    %c0_8 = arith.constant 0 : index
    %10 = vector.load %arg6[%c0_7, %c0_8] : memref<30x256xf32, #tpu.memory_space<vmem>>, vector<1x256xf32>
    %11 = vector.broadcast %10 : vector<1x256xf32> to vector<32x256xf32>
    %12 = arith.mulf %9, %11 : vector<32x256xf32>
    %c17_i32 = arith.constant 17 : i32
    %13 = tpu.dynamic_rotate %5 by %c17_i32 dim 1 : vector<32x256xf32>, i32 -> vector<32x256xf32>
    %c0_9 = arith.constant 0 : index
    %c1 = arith.constant 1 : index
    %14 = vector.load %arg4[%c0_9, %c1] : memref<32x30xf32, #tpu.memory_space<vmem>>, vector<32x1xf32>
    %15 = vector.broadcast %14 : vector<32x1xf32> to vector<32x256xf32>
    %16 = arith.mulf %13, %15 : vector<32x256xf32>
    %c1_10 = arith.constant 1 : index
    %c0_11 = arith.constant 0 : index
    %17 = vector.load %arg6[%c1_10, %c0_11] : memref<30x256xf32, #tpu.memory_space<vmem>>, vector<1x256xf32>
    %18 = vector.broadcast %17 : vector<1x256xf32> to vector<32x256xf32>
    %19 = arith.mulf %16, %18 : vector<32x256xf32>
    %20 = arith.addf %12, %19 : vector<32x256xf32>
    %c16_i32 = arith.constant 16 : i32
    %21 = tpu.dynamic_rotate %5 by %c16_i32 dim 1 : vector<32x256xf32>, i32 -> vector<32x256xf32>
    %c0_12 = arith.constant 0 : index
    %c2 = arith.constant 2 : index
    %22 = vector.load %arg4[%c0_12, %c2] : memref<32x30xf32, #tpu.memory_space<vmem>>, vector<32x1xf32>
    %23 = vector.broadcast %22 : vector<32x1xf32> to vector<32x256xf32>
    %24 = arith.mulf %21, %23 : vector<32x256xf32>
    %c2_13 = arith.constant 2 : index
    %c0_14 = arith.constant 0 : index
    %25 = vector.load %arg6[%c2_13, %c0_14] : memref<30x256xf32, #tpu.memory_space<vmem>>, vector<1x256xf32>
    %26 = vector.broadcast %25 : vector<1x256xf32> to vector<32x256xf32>
    %27 = arith.mulf %24, %26 : vector<32x256xf32>
    %28 = arith.addf %20, %27 : vector<32x256xf32>
    %c15_i32 = arith.constant 15 : i32
    %29 = tpu.dynamic_rotate %5 by %c15_i32 dim 1 : vector<32x256xf32>, i32 -> vector<32x256xf32>
    %c0_15 = arith.constant 0 : index
    %c3 = arith.constant 3 : index
    %30 = vector.load %arg4[%c0_15, %c3] : memref<32x30xf32, #tpu.memory_space<vmem>>, vector<32x1xf32>
    %31 = vector.broadcast %30 : vector<32x1xf32> to vector<32x256xf32>
    %32 = arith.mulf %29, %31 : vector<32x256xf32>
    %c3_16 = arith.constant 3 : index
    %c0_17 = arith.constant 0 : index
    %33 = vector.load %arg6[%c3_16, %c0_17] : memref<30x256xf32, #tpu.memory_space<vmem>>, vector<1x256xf32>
    %34 = vector.broadcast %33 : vector<1x256xf32> to vector<32x256xf32>
    %35 = arith.mulf %32, %34 : vector<32x256xf32>
    %36 = arith.addf %28, %35 : vector<32x256xf32>
    %c14_i32 = arith.constant 14 : i32
    %37 = tpu.dynamic_rotate %5 by %c14_i32 dim 1 : vector<32x256xf32>, i32 -> vector<32x256xf32>
    %c0_18 = arith.constant 0 : index
    %c4 = arith.constant 4 : index
    %38 = vector.load %arg4[%c0_18, %c4] : memref<32x30xf32, #tpu.memory_space<vmem>>, vector<32x1xf32>
    %39 = vector.broadcast %38 : vector<32x1xf32> to vector<32x256xf32>
    %40 = arith.mulf %37, %39 : vector<32x256xf32>
    %c4_19 = arith.constant 4 : index
    %c0_20 = arith.constant 0 : index
    %41 = vector.load %arg6[%c4_19, %c0_20] : memref<30x256xf32, #tpu.memory_space<vmem>>, vector<1x256xf32>
    %42 = vector.broadcast %41 : vector<1x256xf32> to vector<32x256xf32>
    %43 = arith.mulf %40, %42 : vector<32x256xf32>
    %44 = arith.addf %36, %43 : vector<32x256xf32>
    %c2_i32 = arith.constant 2 : i32
    %45 = tpu.dynamic_rotate %5 by %c2_i32 dim 1 : vector<32x256xf32>, i32 -> vector<32x256xf32>
    %c0_21 = arith.constant 0 : index
    %c5 = arith.constant 5 : index
    %46 = vector.load %arg4[%c0_21, %c5] : memref<32x30xf32, #tpu.memory_space<vmem>>, vector<32x1xf32>
    %47 = vector.broadcast %46 : vector<32x1xf32> to vector<32x256xf32>
    %48 = arith.mulf %45, %47 : vector<32x256xf32>
    %c5_22 = arith.constant 5 : index
    %c0_23 = arith.constant 0 : index
    %49 = vector.load %arg6[%c5_22, %c0_23] : memref<30x256xf32, #tpu.memory_space<vmem>>, vector<1x256xf32>
    %50 = vector.broadcast %49 : vector<1x256xf32> to vector<32x256xf32>
    %51 = arith.mulf %48, %50 : vector<32x256xf32>
    %52 = arith.addf %44, %51 : vector<32x256xf32>
    %c1_i32 = arith.constant 1 : i32
    %53 = tpu.dynamic_rotate %5 by %c1_i32 dim 1 : vector<32x256xf32>, i32 -> vector<32x256xf32>
    %c0_24 = arith.constant 0 : index
    %c6 = arith.constant 6 : index
    %54 = vector.load %arg4[%c0_24, %c6] : memref<32x30xf32, #tpu.memory_space<vmem>>, vector<32x1xf32>
    %55 = vector.broadcast %54 : vector<32x1xf32> to vector<32x256xf32>
    %56 = arith.mulf %53, %55 : vector<32x256xf32>
    %c6_25 = arith.constant 6 : index
    %c0_26 = arith.constant 0 : index
    %57 = vector.load %arg6[%c6_25, %c0_26] : memref<30x256xf32, #tpu.memory_space<vmem>>, vector<1x256xf32>
    %58 = vector.broadcast %57 : vector<1x256xf32> to vector<32x256xf32>
    %59 = arith.mulf %56, %58 : vector<32x256xf32>
    %60 = arith.addf %52, %59 : vector<32x256xf32>
    %c0_27 = arith.constant 0 : index
    %c7 = arith.constant 7 : index
    %61 = vector.load %arg4[%c0_27, %c7] : memref<32x30xf32, #tpu.memory_space<vmem>>, vector<32x1xf32>
    %62 = vector.broadcast %61 : vector<32x1xf32> to vector<32x256xf32>
    %63 = arith.mulf %5, %62 : vector<32x256xf32>
    %64 = arith.addf %60, %63 : vector<32x256xf32>
    %c255_i32 = arith.constant 255 : i32
    %65 = tpu.dynamic_rotate %5 by %c255_i32 dim 1 : vector<32x256xf32>, i32 -> vector<32x256xf32>
    %c0_28 = arith.constant 0 : index
    %c8 = arith.constant 8 : index
    %66 = vector.load %arg4[%c0_28, %c8] : memref<32x30xf32, #tpu.memory_space<vmem>>, vector<32x1xf32>
    %67 = vector.broadcast %66 : vector<32x1xf32> to vector<32x256xf32>
    %68 = arith.mulf %65, %67 : vector<32x256xf32>
    %c8_29 = arith.constant 8 : index
    %c0_30 = arith.constant 0 : index
    %69 = vector.load %arg6[%c8_29, %c0_30] : memref<30x256xf32, #tpu.memory_space<vmem>>, vector<1x256xf32>
    %70 = vector.broadcast %69 : vector<1x256xf32> to vector<32x256xf32>
    %71 = arith.mulf %68, %70 : vector<32x256xf32>
    %72 = arith.addf %64, %71 : vector<32x256xf32>
    %c254_i32 = arith.constant 254 : i32
    %73 = tpu.dynamic_rotate %5 by %c254_i32 dim 1 : vector<32x256xf32>, i32 -> vector<32x256xf32>
    %c0_31 = arith.constant 0 : index
    %c9 = arith.constant 9 : index
    %74 = vector.load %arg4[%c0_31, %c9] : memref<32x30xf32, #tpu.memory_space<vmem>>, vector<32x1xf32>
    %75 = vector.broadcast %74 : vector<32x1xf32> to vector<32x256xf32>
    %76 = arith.mulf %73, %75 : vector<32x256xf32>
    %c9_32 = arith.constant 9 : index
    %c0_33 = arith.constant 0 : index
    %77 = vector.load %arg6[%c9_32, %c0_33] : memref<30x256xf32, #tpu.memory_space<vmem>>, vector<1x256xf32>
    %78 = vector.broadcast %77 : vector<1x256xf32> to vector<32x256xf32>
    %79 = arith.mulf %76, %78 : vector<32x256xf32>
    %80 = arith.addf %72, %79 : vector<32x256xf32>
    %c242_i32 = arith.constant 242 : i32
    %81 = tpu.dynamic_rotate %5 by %c242_i32 dim 1 : vector<32x256xf32>, i32 -> vector<32x256xf32>
    %c0_34 = arith.constant 0 : index
    %c10 = arith.constant 10 : index
    %82 = vector.load %arg4[%c0_34, %c10] : memref<32x30xf32, #tpu.memory_space<vmem>>, vector<32x1xf32>
    %83 = vector.broadcast %82 : vector<32x1xf32> to vector<32x256xf32>
    %84 = arith.mulf %81, %83 : vector<32x256xf32>
    %c10_35 = arith.constant 10 : index
    %c0_36 = arith.constant 0 : index
    %85 = vector.load %arg6[%c10_35, %c0_36] : memref<30x256xf32, #tpu.memory_space<vmem>>, vector<1x256xf32>
    %86 = vector.broadcast %85 : vector<1x256xf32> to vector<32x256xf32>
    %87 = arith.mulf %84, %86 : vector<32x256xf32>
    %88 = arith.addf %80, %87 : vector<32x256xf32>
    %c241_i32 = arith.constant 241 : i32
    %89 = tpu.dynamic_rotate %5 by %c241_i32 dim 1 : vector<32x256xf32>, i32 -> vector<32x256xf32>
    %c0_37 = arith.constant 0 : index
    %c11 = arith.constant 11 : index
    %90 = vector.load %arg4[%c0_37, %c11] : memref<32x30xf32, #tpu.memory_space<vmem>>, vector<32x1xf32>
    %91 = vector.broadcast %90 : vector<32x1xf32> to vector<32x256xf32>
    %92 = arith.mulf %89, %91 : vector<32x256xf32>
    %c11_38 = arith.constant 11 : index
    %c0_39 = arith.constant 0 : index
    %93 = vector.load %arg6[%c11_38, %c0_39] : memref<30x256xf32, #tpu.memory_space<vmem>>, vector<1x256xf32>
    %94 = vector.broadcast %93 : vector<1x256xf32> to vector<32x256xf32>
    %95 = arith.mulf %92, %94 : vector<32x256xf32>
    %96 = arith.addf %88, %95 : vector<32x256xf32>
    %c240_i32 = arith.constant 240 : i32
    %97 = tpu.dynamic_rotate %5 by %c240_i32 dim 1 : vector<32x256xf32>, i32 -> vector<32x256xf32>
    %c0_40 = arith.constant 0 : index
    %c12 = arith.constant 12 : index
    %98 = vector.load %arg4[%c0_40, %c12] : memref<32x30xf32, #tpu.memory_space<vmem>>, vector<32x1xf32>
    %99 = vector.broadcast %98 : vector<32x1xf32> to vector<32x256xf32>
    %100 = arith.mulf %97, %99 : vector<32x256xf32>
    %c12_41 = arith.constant 12 : index
    %c0_42 = arith.constant 0 : index
    %101 = vector.load %arg6[%c12_41, %c0_42] : memref<30x256xf32, #tpu.memory_space<vmem>>, vector<1x256xf32>
    %102 = vector.broadcast %101 : vector<1x256xf32> to vector<32x256xf32>
    %103 = arith.mulf %100, %102 : vector<32x256xf32>
    %104 = arith.addf %96, %103 : vector<32x256xf32>
    %c239_i32 = arith.constant 239 : i32
    %105 = tpu.dynamic_rotate %5 by %c239_i32 dim 1 : vector<32x256xf32>, i32 -> vector<32x256xf32>
    %c0_43 = arith.constant 0 : index
    %c13 = arith.constant 13 : index
    %106 = vector.load %arg4[%c0_43, %c13] : memref<32x30xf32, #tpu.memory_space<vmem>>, vector<32x1xf32>
    %107 = vector.broadcast %106 : vector<32x1xf32> to vector<32x256xf32>
    %108 = arith.mulf %105, %107 : vector<32x256xf32>
    %c13_44 = arith.constant 13 : index
    %c0_45 = arith.constant 0 : index
    %109 = vector.load %arg6[%c13_44, %c0_45] : memref<30x256xf32, #tpu.memory_space<vmem>>, vector<1x256xf32>
    %110 = vector.broadcast %109 : vector<1x256xf32> to vector<32x256xf32>
    %111 = arith.mulf %108, %110 : vector<32x256xf32>
    %112 = arith.addf %104, %111 : vector<32x256xf32>
    %c238_i32 = arith.constant 238 : i32
    %113 = tpu.dynamic_rotate %5 by %c238_i32 dim 1 : vector<32x256xf32>, i32 -> vector<32x256xf32>
    %c0_46 = arith.constant 0 : index
    %c14 = arith.constant 14 : index
    %114 = vector.load %arg4[%c0_46, %c14] : memref<32x30xf32, #tpu.memory_space<vmem>>, vector<32x1xf32>
    %115 = vector.broadcast %114 : vector<32x1xf32> to vector<32x256xf32>
    %116 = arith.mulf %113, %115 : vector<32x256xf32>
    %c14_47 = arith.constant 14 : index
    %c0_48 = arith.constant 0 : index
    %117 = vector.load %arg6[%c14_47, %c0_48] : memref<30x256xf32, #tpu.memory_space<vmem>>, vector<1x256xf32>
    %118 = vector.broadcast %117 : vector<1x256xf32> to vector<32x256xf32>
    %119 = arith.mulf %116, %118 : vector<32x256xf32>
    %120 = arith.addf %112, %119 : vector<32x256xf32>
    %c0_49 = arith.constant 0 : index
    %c0_50 = arith.constant 0 : index
    %121 = vector.load %arg5[%c0_49, %c0_50] : memref<32x2xf32, #tpu.memory_space<vmem>>, vector<32x1xf32>
    %122 = vector.broadcast %121 : vector<32x1xf32> to vector<32x256xf32>
    %123 = arith.addf %120, %122 : vector<32x256xf32>
    %c33_i32 = arith.constant 33 : i32
    %124 = tpu.dynamic_rotate %123 by %c33_i32 dim 1 : vector<32x256xf32>, i32 -> vector<32x256xf32>
    %c0_51 = arith.constant 0 : index
    %c15 = arith.constant 15 : index
    %125 = vector.load %arg4[%c0_51, %c15] : memref<32x30xf32, #tpu.memory_space<vmem>>, vector<32x1xf32>
    %126 = vector.broadcast %125 : vector<32x1xf32> to vector<32x256xf32>
    %127 = arith.mulf %124, %126 : vector<32x256xf32>
    %c15_52 = arith.constant 15 : index
    %c0_53 = arith.constant 0 : index
    %128 = vector.load %arg6[%c15_52, %c0_53] : memref<30x256xf32, #tpu.memory_space<vmem>>, vector<1x256xf32>
    %129 = vector.broadcast %128 : vector<1x256xf32> to vector<32x256xf32>
    %130 = arith.mulf %127, %129 : vector<32x256xf32>
    %c32_i32 = arith.constant 32 : i32
    %131 = tpu.dynamic_rotate %123 by %c32_i32 dim 1 : vector<32x256xf32>, i32 -> vector<32x256xf32>
    %c0_54 = arith.constant 0 : index
    %c16 = arith.constant 16 : index
    %132 = vector.load %arg4[%c0_54, %c16] : memref<32x30xf32, #tpu.memory_space<vmem>>, vector<32x1xf32>
    %133 = vector.broadcast %132 : vector<32x1xf32> to vector<32x256xf32>
    %134 = arith.mulf %131, %133 : vector<32x256xf32>
    %c16_55 = arith.constant 16 : index
    %c0_56 = arith.constant 0 : index
    %135 = vector.load %arg6[%c16_55, %c0_56] : memref<30x256xf32, #tpu.memory_space<vmem>>, vector<1x256xf32>
    %136 = vector.broadcast %135 : vector<1x256xf32> to vector<32x256xf32>
    %137 = arith.mulf %134, %136 : vector<32x256xf32>
    %138 = arith.addf %130, %137 : vector<32x256xf32>
    %c31_i32 = arith.constant 31 : i32
    %139 = tpu.dynamic_rotate %123 by %c31_i32 dim 1 : vector<32x256xf32>, i32 -> vector<32x256xf32>
    %c0_57 = arith.constant 0 : index
    %c17 = arith.constant 17 : index
    %140 = vector.load %arg4[%c0_57, %c17] : memref<32x30xf32, #tpu.memory_space<vmem>>, vector<32x1xf32>
    %141 = vector.broadcast %140 : vector<32x1xf32> to vector<32x256xf32>
    %142 = arith.mulf %139, %141 : vector<32x256xf32>
    %c17_58 = arith.constant 17 : index
    %c0_59 = arith.constant 0 : index
    %143 = vector.load %arg6[%c17_58, %c0_59] : memref<30x256xf32, #tpu.memory_space<vmem>>, vector<1x256xf32>
    %144 = vector.broadcast %143 : vector<1x256xf32> to vector<32x256xf32>
    %145 = arith.mulf %142, %144 : vector<32x256xf32>
    %146 = arith.addf %138, %145 : vector<32x256xf32>
    %c17_i32_60 = arith.constant 17 : i32
    %147 = tpu.dynamic_rotate %123 by %c17_i32_60 dim 1 : vector<32x256xf32>, i32 -> vector<32x256xf32>
    %c0_61 = arith.constant 0 : index
    %c18 = arith.constant 18 : index
    %148 = vector.load %arg4[%c0_61, %c18] : memref<32x30xf32, #tpu.memory_space<vmem>>, vector<32x1xf32>
    %149 = vector.broadcast %148 : vector<32x1xf32> to vector<32x256xf32>
    %150 = arith.mulf %147, %149 : vector<32x256xf32>
    %c18_62 = arith.constant 18 : index
    %c0_63 = arith.constant 0 : index
    %151 = vector.load %arg6[%c18_62, %c0_63] : memref<30x256xf32, #tpu.memory_space<vmem>>, vector<1x256xf32>
    %152 = vector.broadcast %151 : vector<1x256xf32> to vector<32x256xf32>
    %153 = arith.mulf %150, %152 : vector<32x256xf32>
    %154 = arith.addf %146, %153 : vector<32x256xf32>
    %c16_i32_64 = arith.constant 16 : i32
    %155 = tpu.dynamic_rotate %123 by %c16_i32_64 dim 1 : vector<32x256xf32>, i32 -> vector<32x256xf32>
    %c0_65 = arith.constant 0 : index
    %c19 = arith.constant 19 : index
    %156 = vector.load %arg4[%c0_65, %c19] : memref<32x30xf32, #tpu.memory_space<vmem>>, vector<32x1xf32>
    %157 = vector.broadcast %156 : vector<32x1xf32> to vector<32x256xf32>
    %158 = arith.mulf %155, %157 : vector<32x256xf32>
    %c19_66 = arith.constant 19 : index
    %c0_67 = arith.constant 0 : index
    %159 = vector.load %arg6[%c19_66, %c0_67] : memref<30x256xf32, #tpu.memory_space<vmem>>, vector<1x256xf32>
    %160 = vector.broadcast %159 : vector<1x256xf32> to vector<32x256xf32>
    %161 = arith.mulf %158, %160 : vector<32x256xf32>
    %162 = arith.addf %154, %161 : vector<32x256xf32>
    %c15_i32_68 = arith.constant 15 : i32
    %163 = tpu.dynamic_rotate %123 by %c15_i32_68 dim 1 : vector<32x256xf32>, i32 -> vector<32x256xf32>
    %c0_69 = arith.constant 0 : index
    %c20 = arith.constant 20 : index
    %164 = vector.load %arg4[%c0_69, %c20] : memref<32x30xf32, #tpu.memory_space<vmem>>, vector<32x1xf32>
    %165 = vector.broadcast %164 : vector<32x1xf32> to vector<32x256xf32>
    %166 = arith.mulf %163, %165 : vector<32x256xf32>
    %c20_70 = arith.constant 20 : index
    %c0_71 = arith.constant 0 : index
    %167 = vector.load %arg6[%c20_70, %c0_71] : memref<30x256xf32, #tpu.memory_space<vmem>>, vector<1x256xf32>
    %168 = vector.broadcast %167 : vector<1x256xf32> to vector<32x256xf32>
    %169 = arith.mulf %166, %168 : vector<32x256xf32>
    %170 = arith.addf %162, %169 : vector<32x256xf32>
    %c1_i32_72 = arith.constant 1 : i32
    %171 = tpu.dynamic_rotate %123 by %c1_i32_72 dim 1 : vector<32x256xf32>, i32 -> vector<32x256xf32>
    %c0_73 = arith.constant 0 : index
    %c21 = arith.constant 21 : index
    %172 = vector.load %arg4[%c0_73, %c21] : memref<32x30xf32, #tpu.memory_space<vmem>>, vector<32x1xf32>
    %173 = vector.broadcast %172 : vector<32x1xf32> to vector<32x256xf32>
    %174 = arith.mulf %171, %173 : vector<32x256xf32>
    %c21_74 = arith.constant 21 : index
    %c0_75 = arith.constant 0 : index
    %175 = vector.load %arg6[%c21_74, %c0_75] : memref<30x256xf32, #tpu.memory_space<vmem>>, vector<1x256xf32>
    %176 = vector.broadcast %175 : vector<1x256xf32> to vector<32x256xf32>
    %177 = arith.mulf %174, %176 : vector<32x256xf32>
    %178 = arith.addf %170, %177 : vector<32x256xf32>
    %c0_76 = arith.constant 0 : index
    %c22 = arith.constant 22 : index
    %179 = vector.load %arg4[%c0_76, %c22] : memref<32x30xf32, #tpu.memory_space<vmem>>, vector<32x1xf32>
    %180 = vector.broadcast %179 : vector<32x1xf32> to vector<32x256xf32>
    %181 = arith.mulf %123, %180 : vector<32x256xf32>
    %182 = arith.addf %178, %181 : vector<32x256xf32>
    %c255_i32_77 = arith.constant 255 : i32
    %183 = tpu.dynamic_rotate %123 by %c255_i32_77 dim 1 : vector<32x256xf32>, i32 -> vector<32x256xf32>
    %c0_78 = arith.constant 0 : index
    %c23 = arith.constant 23 : index
    %184 = vector.load %arg4[%c0_78, %c23] : memref<32x30xf32, #tpu.memory_space<vmem>>, vector<32x1xf32>
    %185 = vector.broadcast %184 : vector<32x1xf32> to vector<32x256xf32>
    %186 = arith.mulf %183, %185 : vector<32x256xf32>
    %c23_79 = arith.constant 23 : index
    %c0_80 = arith.constant 0 : index
    %187 = vector.load %arg6[%c23_79, %c0_80] : memref<30x256xf32, #tpu.memory_space<vmem>>, vector<1x256xf32>
    %188 = vector.broadcast %187 : vector<1x256xf32> to vector<32x256xf32>
    %189 = arith.mulf %186, %188 : vector<32x256xf32>
    %190 = arith.addf %182, %189 : vector<32x256xf32>
    %c241_i32_81 = arith.constant 241 : i32
    %191 = tpu.dynamic_rotate %123 by %c241_i32_81 dim 1 : vector<32x256xf32>, i32 -> vector<32x256xf32>
    %c0_82 = arith.constant 0 : index
    %c24 = arith.constant 24 : index
    %192 = vector.load %arg4[%c0_82, %c24] : memref<32x30xf32, #tpu.memory_space<vmem>>, vector<32x1xf32>
    %193 = vector.broadcast %192 : vector<32x1xf32> to vector<32x256xf32>
    %194 = arith.mulf %191, %193 : vector<32x256xf32>
    %c24_83 = arith.constant 24 : index
    %c0_84 = arith.constant 0 : index
    %195 = vector.load %arg6[%c24_83, %c0_84] : memref<30x256xf32, #tpu.memory_space<vmem>>, vector<1x256xf32>
    %196 = vector.broadcast %195 : vector<1x256xf32> to vector<32x256xf32>
    %197 = arith.mulf %194, %196 : vector<32x256xf32>
    %198 = arith.addf %190, %197 : vector<32x256xf32>
    %c240_i32_85 = arith.constant 240 : i32
    %199 = tpu.dynamic_rotate %123 by %c240_i32_85 dim 1 : vector<32x256xf32>, i32 -> vector<32x256xf32>
    %c0_86 = arith.constant 0 : index
    %c25 = arith.constant 25 : index
    %200 = vector.load %arg4[%c0_86, %c25] : memref<32x30xf32, #tpu.memory_space<vmem>>, vector<32x1xf32>
    %201 = vector.broadcast %200 : vector<32x1xf32> to vector<32x256xf32>
    %202 = arith.mulf %199, %201 : vector<32x256xf32>
    %c25_87 = arith.constant 25 : index
    %c0_88 = arith.constant 0 : index
    %203 = vector.load %arg6[%c25_87, %c0_88] : memref<30x256xf32, #tpu.memory_space<vmem>>, vector<1x256xf32>
    %204 = vector.broadcast %203 : vector<1x256xf32> to vector<32x256xf32>
    %205 = arith.mulf %202, %204 : vector<32x256xf32>
    %206 = arith.addf %198, %205 : vector<32x256xf32>
    %c239_i32_89 = arith.constant 239 : i32
    %207 = tpu.dynamic_rotate %123 by %c239_i32_89 dim 1 : vector<32x256xf32>, i32 -> vector<32x256xf32>
    %c0_90 = arith.constant 0 : index
    %c26 = arith.constant 26 : index
    %208 = vector.load %arg4[%c0_90, %c26] : memref<32x30xf32, #tpu.memory_space<vmem>>, vector<32x1xf32>
    %209 = vector.broadcast %208 : vector<32x1xf32> to vector<32x256xf32>
    %210 = arith.mulf %207, %209 : vector<32x256xf32>
    %c26_91 = arith.constant 26 : index
    %c0_92 = arith.constant 0 : index
    %211 = vector.load %arg6[%c26_91, %c0_92] : memref<30x256xf32, #tpu.memory_space<vmem>>, vector<1x256xf32>
    %212 = vector.broadcast %211 : vector<1x256xf32> to vector<32x256xf32>
    %213 = arith.mulf %210, %212 : vector<32x256xf32>
    %214 = arith.addf %206, %213 : vector<32x256xf32>
    %c225_i32 = arith.constant 225 : i32
    %215 = tpu.dynamic_rotate %123 by %c225_i32 dim 1 : vector<32x256xf32>, i32 -> vector<32x256xf32>
    %c0_93 = arith.constant 0 : index
    %c27 = arith.constant 27 : index
    %216 = vector.load %arg4[%c0_93, %c27] : memref<32x30xf32, #tpu.memory_space<vmem>>, vector<32x1xf32>
    %217 = vector.broadcast %216 : vector<32x1xf32> to vector<32x256xf32>
    %218 = arith.mulf %215, %217 : vector<32x256xf32>
    %c27_94 = arith.constant 27 : index
    %c0_95 = arith.constant 0 : index
    %219 = vector.load %arg6[%c27_94, %c0_95] : memref<30x256xf32, #tpu.memory_space<vmem>>, vector<1x256xf32>
    %220 = vector.broadcast %219 : vector<1x256xf32> to vector<32x256xf32>
    %221 = arith.mulf %218, %220 : vector<32x256xf32>
    %222 = arith.addf %214, %221 : vector<32x256xf32>
    %c224_i32 = arith.constant 224 : i32
    %223 = tpu.dynamic_rotate %123 by %c224_i32 dim 1 : vector<32x256xf32>, i32 -> vector<32x256xf32>
    %c0_96 = arith.constant 0 : index
    %c28 = arith.constant 28 : index
    %224 = vector.load %arg4[%c0_96, %c28] : memref<32x30xf32, #tpu.memory_space<vmem>>, vector<32x1xf32>
    %225 = vector.broadcast %224 : vector<32x1xf32> to vector<32x256xf32>
    %226 = arith.mulf %223, %225 : vector<32x256xf32>
    %c28_97 = arith.constant 28 : index
    %c0_98 = arith.constant 0 : index
    %227 = vector.load %arg6[%c28_97, %c0_98] : memref<30x256xf32, #tpu.memory_space<vmem>>, vector<1x256xf32>
    %228 = vector.broadcast %227 : vector<1x256xf32> to vector<32x256xf32>
    %229 = arith.mulf %226, %228 : vector<32x256xf32>
    %230 = arith.addf %222, %229 : vector<32x256xf32>
    %c223_i32 = arith.constant 223 : i32
    %231 = tpu.dynamic_rotate %123 by %c223_i32 dim 1 : vector<32x256xf32>, i32 -> vector<32x256xf32>
    %c0_99 = arith.constant 0 : index
    %c29 = arith.constant 29 : index
    %232 = vector.load %arg4[%c0_99, %c29] : memref<32x30xf32, #tpu.memory_space<vmem>>, vector<32x1xf32>
    %233 = vector.broadcast %232 : vector<32x1xf32> to vector<32x256xf32>
    %234 = arith.mulf %231, %233 : vector<32x256xf32>
    %c29_100 = arith.constant 29 : index
    %c0_101 = arith.constant 0 : index
    %235 = vector.load %arg6[%c29_100, %c0_101] : memref<30x256xf32, #tpu.memory_space<vmem>>, vector<1x256xf32>
    %236 = vector.broadcast %235 : vector<1x256xf32> to vector<32x256xf32>
    %237 = arith.mulf %234, %236 : vector<32x256xf32>
    %238 = arith.addf %230, %237 : vector<32x256xf32>
    %c0_102 = arith.constant 0 : index
    %c1_103 = arith.constant 1 : index
    %239 = vector.load %arg5[%c0_102, %c1_103] : memref<32x2xf32, #tpu.memory_space<vmem>>, vector<32x1xf32>
    %240 = vector.broadcast %239 : vector<32x1xf32> to vector<32x256xf32>
    %241 = arith.addf %238, %240 : vector<32x256xf32>
    %242 = vector.extract_strided_slice %241 {offsets = [0, 0], sizes = [16, 256], strides = [1, 1]} : vector<32x256xf32> to vector<16x256xf32>
    %243 = vector.extract_strided_slice %241 {offsets = [16, 0], sizes = [16, 256], strides = [1, 1]} : vector<32x256xf32> to vector<16x256xf32>
    %244 = arith.mulf %242, %243 : vector<16x256xf32>
    %c0_104 = arith.constant 0 : index
    %c0_105 = arith.constant 0 : index
    %245 = vector.load %arg7[%c0_104, %c0_105] : memref<4x16xf32, #tpu.memory_space<vmem>>, vector<4x16xf32>
    %cst_106 = arith.constant dense<0.000000e+00> : vector<4x256xf32>
    %246 = tpu.matmul %245, %244, %cst_106 {dimension_numbers = #tpu.dot_dimension_numbers<[1], [0], [0], [1], [0, 0, 1, 1], [], []>} : vector<4x16xf32>, vector<16x256xf32>, vector<4x256xf32> -> vector<4x256xf32>
    %c0_107 = arith.constant 0 : index
    %c0_108 = arith.constant 0 : index
    %247 = vector.load %arg8[%c0_107, %c0_108] : memref<4x1xf32, #tpu.memory_space<vmem>>, vector<4x1xf32>
    %248 = vector.broadcast %247 : vector<4x1xf32> to vector<4x256xf32>
    %249 = arith.addf %246, %248 : vector<4x256xf32>
    %c0_109 = arith.constant 0 : index
    %c0_110 = arith.constant 0 : index
    %250 = vector.load %arg9[%c0_109, %c0_110] : memref<4x256xf32, #tpu.memory_space<vmem>>, vector<4x256xf32>
    tpu.vector_store %arg9[%c0_109, %c0_110], %249 {strides = array<i32>} : memref<4x256xf32, #tpu.memory_space<vmem>>, vector<4x256xf32>,
    return
  }
  func.func @transform_0(%arg0: i32) -> (i32, i32) {
    %c0_i32 = arith.constant 0 : i32
    %c0_i32_0 = arith.constant 0 : i32
    return %c0_i32, %arg0 : i32, i32
  }
  func.func @transform_1(%arg0: i32) -> (i32, i32) {
    %c0_i32 = arith.constant 0 : i32
    %c0_i32_0 = arith.constant 0 : i32
    %c0_i32_1 = arith.constant 0 : i32
    return %c0_i32, %c0_i32_0 : i32, i32
  }
  func.func @transform_2(%arg0: i32) -> (i32, i32) {
    %c0_i32 = arith.constant 0 : i32
    %c0_i32_0 = arith.constant 0 : i32
    %c0_i32_1 = arith.constant 0 : i32
    return %c0_i32, %c0_i32_0 : i32, i32
  }
  func.func @transform_3(%arg0: i32) -> (i32, i32) {
    %c0_i32 = arith.constant 0 : i32
    %c0_i32_0 = arith.constant 0 : i32
    %c0_i32_1 = arith.constant 0 : i32
    return %c0_i32, %c0_i32_0 : i32, i32
  }
  func.func @transform_4(%arg0: i32) -> (i32, i32) {
    %c0_i32 = arith.constant 0 : i32
    %c0_i32_0 = arith.constant 0 : i32
    %c0_i32_1 = arith.constant 0 : i32
    return %c0_i32, %c0_i32_0 : i32, i32
  }
  func.func @transform_5(%arg0: i32) -> (i32, i32) {
    %c0_i32 = arith.constant 0 : i32
    %c0_i32_0 = arith.constant 0 : i32
    %c0_i32_1 = arith.constant 0 : i32
    return %c0_i32, %c0_i32_0 : i32, i32
  }
  func.func @transform_6(%arg0: i32) -> (i32, i32) {
    %c0_i32 = arith.constant 0 : i32
    %c0_i32_0 = arith.constant 0 : i32
    %c0_i32_1 = arith.constant 0 : i32
    return %c0_i32, %c0_i32_0 : i32, i32
  }
  func.func @transform_7(%arg0: i32) -> (i32, i32) {
    %c0_i32 = arith.constant 0 : i32
    %c0_i32_0 = arith.constant 0 : i32
    %c0_i32_1 = arith.constant 0 : i32
    return %c0_i32, %c0_i32_0 : i32, i32
  }
  func.func @transform_8(%arg0: i32) -> (i32, i32) {
    %c0_i32 = arith.constant 0 : i32
    %c0_i32_0 = arith.constant 0 : i32
    return %c0_i32, %arg0 : i32, i32
  }
}

</mosaic_0001>

<llo_original>
// kernel: tpu_custom_call.1
$region0: #{tpu_custom_call.1}
  #allocation0 [shape = 'u32[]', space=smem, size = 0x4, offset = 0x4, fixed_abs, tag = 'smem constant byte address 0x4 - core index']
  #allocation1 [shape = 'u32[144,128]{1,0:T(1,128)}', space=vmem, size = 0x12000, scoped, tag = 'internal scratch']
  %s0 = inlined_call_operand.vmem [shape: f32[4,512], index: 0, kind: input, shape index: {}]
  %s1 = inlined_call_operand.vmem [shape: f32[32,4], index: 1, kind: input, shape index: {}]
  %s2 = inlined_call_operand.vmem [shape: f32[32,1], index: 2, kind: input, shape index: {}]
  %s3 = inlined_call_operand.vmem [shape: f32[32,30], index: 3, kind: input, shape index: {}]
  %s4 = inlined_call_operand.vmem [shape: f32[32,2], index: 4, kind: input, shape index: {}]
  %s5 = inlined_call_operand.vmem [shape: f32[30,256], index: 5, kind: input, shape index: {}]
  %s6 = inlined_call_operand.vmem [shape: f32[4,16], index: 6, kind: input, shape index: {}]
  %s7 = inlined_call_operand.vmem [shape: f32[4,1], index: 7, kind: input, shape index: {}]
  %s8 = inlined_call_operand.hbm [shape: f32[4,512], index: 8, kind: output, shape index: {}]
  %s9 = sld [smem:[#allocation0]]
  $region65: #{tpu_custom_call.1} parent=0
    _
  %s11 = ssub.s32 1, %s9
  %s12 = scalar_select 0, %s11, %s9
  $region1: #{tpu_custom_call.1} parent=0
    #allocation2 [shape = 'u8[8192]{0}', space=vmem, size = 0x2000, scoped, tag = 'output window, operand 0']
    #allocation3 [shape = 's32[2]{0}', space=sflag, size = 0x8, scoped, tag = 'scoped memory for tpu_custom_call.1']
    %13 = vsyncpa [#allocation3], 0
    %s14 = scalar_lea.sflag [#allocation3], 1
    %15 = vsyncpa %s14, 0
    loop: start=0, step=1, limit=4
    $region2: #{tpu_custom_call.1} parent=1 // loop_pre_header
      _
    $region3: #{tpu_custom_call.1} parent=1 // loop_header
      %s17 = sphi 0, %s21
      %p18 = scmp.ge.s32.totalorder %s17, 4
      %s27 = sphi 0, %s29
      %s30 = sphi 0, %s27
      %s31 = sphi 0, %s30
      %s47 = sphi 0, %s31
      %s51 = sphi 0, %s51
      %s53 = sphi 0, %s51
      %s54 = sphi 0, %s53
      %s68 = sphi 0, %s54
      %s72 = sphi 0, %s72
      %s74 = sphi 0, %s72
      %s75 = sphi 0, %s74
      %s89 = sphi 0, %s75
      %s93 = sphi 0, %s93
      %s95 = sphi 0, %s93
      %s96 = sphi 0, %s95
      %s110 = sphi 0, %s96
      %s114 = sphi 0, %s114
      %s116 = sphi 0, %s114
      %s117 = sphi 0, %s116
      %s131 = sphi 0, %s117
      %s135 = sphi 0, %s135
      %s137 = sphi 0, %s135
      %s138 = sphi 0, %s137
      %s152 = sphi 0, %s138
      %s156 = sphi 0, %s156
      %s158 = sphi 0, %s156
      %s159 = sphi 0, %s158
      %s173 = sphi 0, %s159
      %s177 = sphi 0, %s177
      %s179 = sphi 0, %s177
      %s180 = sphi 0, %s179
      %s194 = sphi 0, %s180
      %s200 = sphi 0, %s202
      %s203 = sphi 0, %s200
      %s204 = sphi 0, %s203
      %s220 = sphi 0, %s204
    $region4: #{tpu_custom_call.1} parent=1 // loop_header_branch
      %20 = sbr.rel (%p18) target = $region8
    $region5: #{tpu_custom_call.1} parent=1 // loop_body
      %s22 = ssub.s32 %s17, 1
      %s23 = ssub.s32 %s17, 2
      %s24 = sadd.s32 %s17, 1
      %s25 = ssub.s32 %s17, %s24
      %p26 = scmp.eq.s32.totalorder %s25, 0
      %s28 = sadd.s32 %s27, 1
      %s29 = scalar_select %p26, %s27, %s28
      %p32 = pneg %p26
      %p33 = scmp.eq.s32.totalorder %s17, 1
      %p34 = por %p32, %p33
      %p35 = scmp.ne.s32.totalorder %s27, %s30
      %p36 = scmp.eq.s32.totalorder %s17, 0
      %p37 = por %p35, %p36
      %p38 = scmp.ne.s32.totalorder %s27, %s30
      %p39 = scmp.eq.s32.totalorder %s22, 1
      %p40 = por %p38, %p39
      %p41 = scmp.ne.s32.totalorder %s30, %s31
      %p42 = scmp.eq.s32.totalorder %s22, 0
      %p43 = por %p41, %p42
      %p44 = scmp.ne.s32.totalorder %s30, %s31
      %p45 = scmp.eq.s32.totalorder %s23, 1
      %p46 = por %p44, %p45
      %p48 = scmp.ne.s32.totalorder %s31, %s47
      %p49 = scmp.eq.s32.totalorder %s23, 0
      %p50 = por %p48, %p49
      %s52 = sadd.s32 %s51, 1
      %p55 = scmp.eq.s32.totalorder %s17, 1
      %p56 = scmp.ne.s32.totalorder %s51, %s53
      %p57 = scmp.eq.s32.totalorder %s17, 0
      %p58 = por %p56, %p57
      %p59 = scmp.ne.s32.totalorder %s51, %s53
      %p60 = scmp.eq.s32.totalorder %s22, 1
      %p61 = por %p59, %p60
      %p62 = scmp.ne.s32.totalorder %s53, %s54
      %p63 = scmp.eq.s32.totalorder %s22, 0
      %p64 = por %p62, %p63
      %p65 = scmp.ne.s32.totalorder %s53, %s54
      %p66 = scmp.eq.s32.totalorder %s23, 1
      %p67 = por %p65, %p66
      %p69 = scmp.ne.s32.totalorder %s54, %s68
      %p70 = scmp.eq.s32.totalorder %s23, 0
      %p71 = por %p69, %p70
      %s73 = sadd.s32 %s72, 1
      %p76 = scmp.eq.s32.totalorder %s17, 1
      %p77 = scmp.ne.s32.totalorder %s72, %s74
      %p78 = scmp.eq.s32.totalorder %s17, 0
      %p79 = por %p77, %p78
      %p80 = scmp.ne.s32.totalorder %s72, %s74
      %p81 = scmp.eq.s32.totalorder %s22, 1
      %p82 = por %p80, %p81
      %p83 = scmp.ne.s32.totalorder %s74, %s75
      %p84 = scmp.eq.s32.totalorder %s22, 0
      %p85 = por %p83, %p84
      %p86 = scmp.ne.s32.totalorder %s74, %s75
      %p87 = scmp.eq.s32.totalorder %s23, 1
      %p88 = por %p86, %p87
      %p90 = scmp.ne.s32.totalorder %s75, %s89
      %p91 = scmp.eq.s32.totalorder %s23, 0
      %p92 = por %p90, %p91
      %s94 = sadd.s32 %s93, 1
      %p97 = scmp.eq.s32.totalorder %s17, 1
      %p98 = scmp.ne.s32.totalorder %s93, %s95
      %p99 = scmp.eq.s32.totalorder %s17, 0
      %p100 = por %p98, %p99
      %p101 = scmp.ne.s32.totalorder %s93, %s95
      %p102 = scmp.eq.s32.totalorder %s22, 1
      %p103 = por %p101, %p102
      %p104 = scmp.ne.s32.totalorder %s95, %s96
      %p105 = scmp.eq.s32.totalorder %s22, 0
      %p106 = por %p104, %p105
      %p107 = scmp.ne.s32.totalorder %s95, %s96
      %p108 = scmp.eq.s32.totalorder %s23, 1
      %p109 = por %p107, %p108
      %p111 = scmp.ne.s32.totalorder %s96, %s110
      %p112 = scmp.eq.s32.totalorder %s23, 0
      %p113 = por %p111, %p112
      %s115 = sadd.s32 %s114, 1
      %p118 = scmp.eq.s32.totalorder %s17, 1
      %p119 = scmp.ne.s32.totalorder %s114, %s116
      %p120 = scmp.eq.s32.totalorder %s17, 0
      %p121 = por %p119, %p120
      %p122 = scmp.ne.s32.totalorder %s114, %s116
      %p123 = scmp.eq.s32.totalorder %s22, 1
      %p124 = por %p122, %p123
      %p125 = scmp.ne.s32.totalorder %s116, %s117
      %p126 = scmp.eq.s32.totalorder %s22, 0
      %p127 = por %p125, %p126
      %p128 = scmp.ne.s32.totalorder %s116, %s117
      %p129 = scmp.eq.s32.totalorder %s23, 1
      %p130 = por %p128, %p129
      %p132 = scmp.ne.s32.totalorder %s117, %s131
      %p133 = scmp.eq.s32.totalorder %s23, 0
      %p134 = por %p132, %p133
      %s136 = sadd.s32 %s135, 1
      %p139 = scmp.eq.s32.totalorder %s17, 1
      %p140 = scmp.ne.s32.totalorder %s135, %s137
      %p141 = scmp.eq.s32.totalorder %s17, 0
      %p142 = por %p140, %p141
      %p143 = scmp.ne.s32.totalorder %s135, %s137
      %p144 = scmp.eq.s32.totalorder %s22, 1
      %p145 = por %p143, %p144
      %p146 = scmp.ne.s32.totalorder %s137, %s138
      %p147 = scmp.eq.s32.totalorder %s22, 0
      %p148 = por %p146, %p147
      %p149 = scmp.ne.s32.totalorder %s137, %s138
      %p150 = scmp.eq.s32.totalorder %s23, 1
      %p151 = por %p149, %p150
      %p153 = scmp.ne.s32.totalorder %s138, %s152
      %p154 = scmp.eq.s32.totalorder %s23, 0
      %p155 = por %p153, %p154
      %s157 = sadd.s32 %s156, 1
      %p160 = scmp.eq.s32.totalorder %s17, 1
      %p161 = scmp.ne.s32.totalorder %s156, %s158
      %p162 = scmp.eq.s32.totalorder %s17, 0
      %p163 = por %p161, %p162
      %p164 = scmp.ne.s32.totalorder %s156, %s158
      %p165 = scmp.eq.s32.totalorder %s22, 1
      %p166 = por %p164, %p165
      %p167 = scmp.ne.s32.totalorder %s158, %s159
      %p168 = scmp.eq.s32.totalorder %s22, 0
      %p169 = por %p167, %p168
      %p170 = scmp.ne.s32.totalorder %s158, %s159
      %p171 = scmp.eq.s32.totalorder %s23, 1
      %p172 = por %p170, %p171
      %p174 = scmp.ne.s32.totalorder %s159, %s173
      %p175 = scmp.eq.s32.totalorder %s23, 0
      %p176 = por %p174, %p175
      %s178 = sadd.s32 %s177, 1
      %p181 = scmp.eq.s32.totalorder %s17, 1
      %p182 = scmp.ne.s32.totalorder %s177, %s179
      %p183 = scmp.eq.s32.totalorder %s17, 0
      %p184 = por %p182, %p183
      %p185 = scmp.ne.s32.totalorder %s177, %s179
      %p186 = scmp.eq.s32.totalorder %s22, 1
      %p187 = por %p185, %p186
      %p188 = scmp.ne.s32.totalorder %s179, %s180
      %p189 = scmp.eq.s32.totalorder %s22, 0
      %p190 = por %p188, %p189
      %p191 = scmp.ne.s32.totalorder %s179, %s180
      %p192 = scmp.eq.s32.totalorder %s23, 1
      %p193 = por %p191, %p192
      %p195 = scmp.ne.s32.totalorder %s180, %s194
      %p196 = scmp.eq.s32.totalorder %s23, 0
      %p197 = por %p195, %p196
      %s198 = ssub.s32 %s17, %s24
      %p199 = scmp.eq.s32.totalorder %s198, 0
      %s201 = sadd.s32 %s200, 1
      %s202 = scalar_select %p199, %s200, %s201
      %p205 = pneg %p199
      %p206 = scmp.eq.s32.totalorder %s17, 1
      %p207 = por %p205, %p206
      %p208 = scmp.ne.s32.totalorder %s200, %s203
      %p209 = scmp.eq.s32.totalorder %s17, 0
      %p210 = por %p208, %p209
      %p211 = scmp.ne.s32.totalorder %s200, %s203
      %p212 = scmp.eq.s32.totalorder %s22, 1
      %p213 = por %p211, %p212
      %p214 = scmp.ne.s32.totalorder %s203, %s204
      %p215 = scmp.eq.s32.totalorder %s22, 0
      %p216 = por %p214, %p215
      %p217 = scmp.ne.s32.totalorder %s203, %s204
      %p218 = scmp.eq.s32.totalorder %s23, 1
      %p219 = por %p217, %p218
      %p221 = scmp.ne.s32.totalorder %s204, %s220
      %p222 = scmp.eq.s32.totalorder %s23, 0
      %p223 = por %p221, %p222
      %p224 = scmp.le.s32.totalorder 1, %s17
      %p225 = scmp.lt.s32.totalorder %s17, 3
      %p226 = pnand %p224, %p225
      %p227 = pneg %p226
      // Predicated region
      $region9: #{tpu_custom_call.1} parent=5 // pred_check
        _
      $region10: #{tpu_custom_call.1} parent=5 // pred_check_branch
        %229 = sbr.rel (%p226) target = $region12
      $region11: #{tpu_custom_call.1} parent=5 // pred_region
        %s230 = ssub.s32 %s17, 1
        // Predicated region
        $region13: #{tpu_custom_call.1} parent=11 // pred_check
          %p231 = pneg %p64
        $region14: #{tpu_custom_call.1} parent=11 // pred_check_branch
          %233 = sbr.rel (%p231) target = $region16
        $region15: #{tpu_custom_call.1} parent=11 // pred_region
          _
        $region16: #{tpu_custom_call.1} parent=11 // pred_fallthru
          _
        // Predicated region
        $region17: #{tpu_custom_call.1} parent=11 // pred_check
          %p234 = pneg %p85
        $region18: #{tpu_custom_call.1} parent=11 // pred_check_branch
          %236 = sbr.rel (%p234) target = $region20
        $region19: #{tpu_custom_call.1} parent=11 // pred_region
          _
        $region20: #{tpu_custom_call.1} parent=11 // pred_fallthru
          _
        // Predicated region
        $region21: #{tpu_custom_call.1} parent=11 // pred_check
          %p237 = pneg %p106
        $region22: #{tpu_custom_call.1} parent=11 // pred_check_branch
          %239 = sbr.rel (%p237) target = $region24
        $region23: #{tpu_custom_call.1} parent=11 // pred_region
          _
        $region24: #{tpu_custom_call.1} parent=11 // pred_fallthru
          _
        // Predicated region
        $region25: #{tpu_custom_call.1} parent=11 // pred_check
          %p240 = pneg %p127
        $region26: #{tpu_custom_call.1} parent=11 // pred_check_branch
          %242 = sbr.rel (%p240) target = $region28
        $region27: #{tpu_custom_call.1} parent=11 // pred_region
          _
        $region28: #{tpu_custom_call.1} parent=11 // pred_fallthru
          _
        // Predicated region
        $region29: #{tpu_custom_call.1} parent=11 // pred_check
          %p243 = pneg %p148
        $region30: #{tpu_custom_call.1} parent=11 // pred_check_branch
          %245 = sbr.rel (%p243) target = $region32
        $region31: #{tpu_custom_call.1} parent=11 // pred_region
          _
        $region32: #{tpu_custom_call.1} parent=11 // pred_fallthru
          _
        // Predicated region
        $region33: #{tpu_custom_call.1} parent=11 // pred_check
          %p246 = pneg %p169
        $region34: #{tpu_custom_call.1} parent=11 // pred_check_branch
          %248 = sbr.rel (%p246) target = $region36
        $region35: #{tpu_custom_call.1} parent=11 // pred_region
          _
        $region36: #{tpu_custom_call.1} parent=11 // pred_fallthru
          _
        // Predicated region
        $region37: #{tpu_custom_call.1} parent=11 // pred_check
          %p249 = pneg %p190
        $region38: #{tpu_custom_call.1} parent=11 // pred_check_branch
          %251 = sbr.rel (%p249) target = $region40
        $region39: #{tpu_custom_call.1} parent=11 // pred_region
          _
        $region40: #{tpu_custom_call.1} parent=11 // pred_fallthru
          _
      $region12: #{tpu_custom_call.1} parent=5 // pred_fallthru
        _
      %p252 = scmp.lt.s32.totalorder %s17, 2
      // Predicated region
      $region41: #{tpu_custom_call.1} parent=5 // pred_check
        %p253 = pneg %p252
      $region42: #{tpu_custom_call.1} parent=5 // pred_check_branch
        %255 = sbr.rel (%p253) target = $region44
      $region43: #{tpu_custom_call.1} parent=5 // pred_region
        // Predicated region
        $region45: #{tpu_custom_call.1} parent=43 // pred_check
          %p256 = pneg %p37
        $region46: #{tpu_custom_call.1} parent=43 // pred_check_branch
          %258 = sbr.rel (%p256) target = $region48
        $region47: #{tpu_custom_call.1} parent=43 // pred_region
          %s259 = smul.u32 2, %s17
          %p260 = scmp.lt.s32.totalorder %s259, 3
          %s261 = scalar_select %p260, %s259, 3
          %s262 = smul.addr %s261, 4
          %s263 = scalar_lea.vmem %s0, %s262
          %s264 = smul.u32 2, %s17
        $region48: #{tpu_custom_call.1} parent=43 // pred_fallthru
          _
      $region44: #{tpu_custom_call.1} parent=5 // pred_fallthru
        _
      %p265 = scmp.le.s32.totalorder 1, %s17
      %p266 = scmp.lt.s32.totalorder %s17, 3
      %p267 = pnand %p265, %p266
      %p268 = pneg %p267
      // Predicated region
      $region49: #{tpu_custom_call.1} parent=5 // pred_check
        _
      $region50: #{tpu_custom_call.1} parent=5 // pred_check_branch
        %270 = sbr.rel (%p267) target = $region52
      $region51: #{tpu_custom_call.1} parent=5 // pred_region
        %s271 = ssub.s32 %s17, 1
        %s272 = smul.u32 2, %s22
        %p273 = scmp.lt.s32.totalorder %s272, 3
        %s274 = scalar_select %p273, %s272, 3
        %s275 = smul.addr %s274, 4
        %s276 = scalar_lea.vmem %s0, %s275
        %p277 = pneg %p43
        %p278 = pneg %p40
        %p279 = pneg %p64
        %p280 = pneg %p61
        %p281 = pneg %p85
        %p282 = pneg %p82
        %p283 = pneg %p106
        %p284 = pneg %p103
        %p285 = pneg %p127
        %p286 = pneg %p124
        %p287 = pneg %p148
        %p288 = pneg %p145
        %p289 = pneg %p169
        %p290 = pneg %p166
        %p291 = pneg %p190
        %p292 = pneg %p187
        %p293 = pneg %p216
        %p294 = pneg %p213
        %s295 = sand.u32 %s203, 1
        %s296 = scalar_lea.sflag [#allocation3], %s295
        %s297 = sand.u32 %s203, 1
        %s298 = smul.addr %s297, 8
        %s299 = scalar_lea.vmem [#allocation2], %s298
        %s300 = smul.u32 2, %s22
        %p301 = scmp.lt.s32.totalorder %s300, 3
        %s302 = scalar_select %p301, %s300, 3
        %s303 = smul.addr %s302, 4
        %s304 = scalar_lea.vmem %s0, %s303
        %s305 = smul.u32 2, %s22
        %s306 = smul.u32 2, %s22
        %v307 = vld [vmem:[%s1] sm:$0xff]
        %v308 = vld [vmem:[%s1 + $0x8] sm:$0xff]
        %v309 = vld [vmem:[%s1 + $0x10] sm:$0xff]
        %v310 = vld [vmem:[%s1 + $0x18] sm:$0xff]
        %v311 = vld [vmem:[%s304] sm:$0xff]
        %v312 = vld [vmem:[%s2] sm:$0xff]
        %v313 = vld [vmem:[%s2 + $0x8] sm:$0xff]
        %v314 = vld [vmem:[%s2 + $0x10] sm:$0xff]
        %v315 = vld [vmem:[%s2 + $0x18] sm:$0xff]
        %317 = vset.pattern.permute.xlu0 0
        %318 = vperm.xlu0 %317, %v312
        %v319 = vpop.permute.xlu0 %318
        %322 = vset.pattern.permute.xlu0 0
        %323 = vperm.xlu0 %322, %v313
        %v324 = vpop.permute.xlu0 %323
        %327 = vset.pattern.permute.xlu0 0
        %328 = vperm.xlu0 %327, %v314
        %v329 = vpop.permute.xlu0 %328
        %332 = vset.pattern.permute.xlu0 0
        %333 = vperm.xlu0 %332, %v315
        %v334 = vpop.permute.xlu0 %333
        %v337 = vcombine.high %v311, %v311
        %vm338 = vcmask 31744
        %v340 = vsel %vm338, %v307, 0
        %v343 = vsel %vm338, %v308, 0
        %v346 = vsel %vm338, %v309, 0
        %v349 = vsel %vm338, %v310, 0
        %vm351 = vcmask 1043456
        %v352 = vsel %vm351, %v311, 0
        %v354 = vsel %vm351, %v337, 0
        %356 = vmatprep.subr.mxu0 %v354
        %357 = vmatpush1.msra.mxu0 %v352
        %358 = vmatprep.subr.mxu0 0.0
        %359 = vmatpush1.msra.mxu0 0.0
        %360 = vmatprep.subr.mxu0 0.0
        %361 = vmatpush1.msra.mxu0 0.0
        %362 = vmatprep.subr.mxu0 0.0
        %363 = vmatpush1.msra.mxu0 0.0
        %364 = vmatprep.subr.mxu0 0.0
        %365 = vmatpush1.msra.mxu0 0.0
        %366 = vmatprep.subr.mxu0 0.0
        %367 = vmatpush1.msra.mxu0 0.0
        %368 = vmatprep.subr.mxu0 0.0
        %369 = vmatpush1.msra.mxu0 0.0
        %370 = vmatprep.subr.mxu0 0.0
        %371 = vmatpush1.msra.mxu0 0.0
        %372 = vmatprep.subr.mxu0 0.0
        %373 = vmatpush1.msra.mxu0 0.0
        %374 = vmatprep.subr.mxu0 0.0
        %375 = vmatpush1.msra.mxu0 0.0
        %376 = vmatprep.subr.mxu0 0.0
        %377 = vmatpush1.msra.mxu0 0.0
        %378 = vmatprep.subr.mxu0 0.0
        %379 = vmatpush1.msra.mxu0 0.0
        %380 = vmatprep.subr.mxu0 0.0
        %381 = vmatpush1.msra.mxu0 0.0
        %382 = vmatprep.subr.mxu0 0.0
        %383 = vmatpush1.msra.mxu0 0.0
        %384 = vmatprep.subr.mxu0 0.0
        %385 = vmatpush1.msra.mxu0 0.0
        %386 = vmatprep.subr.mxu0 0.0
        %387 = vmatpush1.msra.mxu0 0.0
        %388 = vmatprep.subr.mxu0 0.0
        %389 = vmatpush1.msra.mxu0 0.0
        %390 = vmatprep.subr.mxu0 0.0
        %391 = vmatpush1.msra.mxu0 0.0
        %392 = vmatprep.subr.mxu0 0.0
        %393 = vmatpush1.msra.mxu0 0.0
        %394 = vmatprep.subr.mxu0 0.0
        %395 = vmatpush1.msra.mxu0 0.0
        %396 = vmatprep.subr.mxu0 0.0
        %397 = vmatpush1.msra.mxu0 0.0
        %398 = vmatprep.subr.mxu0 0.0
        %399 = vmatpush1.msra.mxu0 0.0
        %400 = vmatprep.subr.mxu0 0.0
        %401 = vmatpush1.msra.mxu0 0.0
        %402 = vmatprep.subr.mxu0 0.0
        %403 = vmatpush1.msra.mxu0 0.0
        %404 = vmatprep.subr.mxu0 0.0
        %405 = vmatpush1.msra.mxu0 0.0
        %406 = vmatprep.subr.mxu0 0.0
        %407 = vmatpush1.msra.mxu0 0.0
        %408 = vmatprep.subr.mxu0 0.0
        %409 = vmatpush1.msra.mxu0 0.0
        %410 = vmatprep.subr.mxu0 0.0
        %411 = vmatpush1.msra.mxu0 0.0
        %412 = vmatprep.subr.mxu0 0.0
        %413 = vmatpush1.msra.mxu0 0.0
        %414 = vmatprep.subr.mxu0 0.0
        %415 = vmatpush1.msra.mxu0 0.0
        %416 = vmatprep.subr.mxu0 0.0
        %417 = vmatpush1.msra.mxu0 0.0
        %418 = vmatprep.subr.mxu0 0.0
        %419 = vmatpush1.msra.mxu0 0.0
        %420 = vmatprep.mubr.f32.mxu0 0.0
        %421 = vmatmul.mubr.f32.gmra.mrb[0].mxu0 %v340
        %v422 = vpop.f32.mrb[0].mxu0
        %v423 = vadd.f32 %v319, %v422
        %v424 = vpop.f32.mrb[0].mxu0
        %v425 = vadd.f32 %v319, %v424
        %426 = vmatprep.mubr.f32.mxu0 0.0
        %427 = vmatmul.mubr.f32.gmra.mrb[0].mxu0 %v343
        %v428 = vpop.f32.mrb[0].mxu0
        %v429 = vadd.f32 %v324, %v428
        %v430 = vpop.f32.mrb[0].mxu0
        %v431 = vadd.f32 %v324, %v430
        %432 = vmatprep.mubr.f32.mxu0 0.0
        %433 = vmatmul.mubr.f32.gmra.mrb[0].mxu0 %v346
        %v434 = vpop.f32.mrb[0].mxu0
        %v435 = vadd.f32 %v329, %v434
        %v436 = vpop.f32.mrb[0].mxu0
        %v437 = vadd.f32 %v329, %v436
        %438 = vmatprep.mubr.f32.mxu0 0.0
        %439 = vmatmul.mubr.f32.gmra.mrb[0].mxu0 %v349
        %v440 = vpop.f32.mrb[0].mxu0
        %v441 = vadd.f32 %v334, %v440
        %v442 = vpop.f32.mrb[0].mxu0
        %v443 = vadd.f32 %v334, %v442
        %444 = vdwg.mxu0
        %445 = vrot.lane.b32.xlu0 %v423, 18
        %v446 = vpop.permute.xlu0 %445
        %447 = vrot.lane.b32.xlu0 %v429, 18
        %v448 = vpop.permute.xlu0 %447
        %449 = vrot.lane.b32.xlu0 %v435, 18
        %v450 = vpop.permute.xlu0 %449
        %451 = vrot.lane.b32.xlu0 %v441, 18
        %v452 = vpop.permute.xlu0 %451
        %453 = vrot.lane.b32.xlu0 %v425, 18
        %v454 = vpop.permute.xlu0 %453
        %455 = vrot.lane.b32.xlu0 %v431, 18
        %v456 = vpop.permute.xlu0 %455
        %457 = vrot.lane.b32.xlu0 %v437, 18
        %v458 = vpop.permute.xlu0 %457
        %459 = vrot.lane.b32.xlu0 %v443, 18
        %v460 = vpop.permute.xlu0 %459
        %v461 = vlaneseq
        %v462 = vand.u32 %v461, 127
        %vm463 = vcmp.lt.s32.totalorder %v462, 18
        %v464 = vsel %vm463, %v446, %v454
        %v465 = vsel %vm463, %v448, %v456
        %v466 = vsel %vm463, %v450, %v458
        %v467 = vsel %vm463, %v452, %v460
        %v468 = vsel %vm463, %v454, %v446
        %v469 = vsel %vm463, %v456, %v448
        %v470 = vsel %vm463, %v458, %v450
        %v471 = vsel %vm463, %v460, %v452
        %v472 = vld [vmem:[%s3] sm:$0xff]
        %v473 = vld [vmem:[%s3 + $0x8] sm:$0xff]
        %v474 = vld [vmem:[%s3 + $0x10] sm:$0xff]
        %v475 = vld [vmem:[%s3 + $0x18] sm:$0xff]
        %477 = vset.pattern.permute.xlu0 0
        %478 = vperm.xlu0 %477, %v472
        %v479 = vpop.permute.xlu0 %478
        %482 = vset.pattern.permute.xlu0 0
        %483 = vperm.xlu0 %482, %v473
        %v484 = vpop.permute.xlu0 %483
        %487 = vset.pattern.permute.xlu0 0
        %488 = vperm.xlu0 %487, %v474
        %v489 = vpop.permute.xlu0 %488
        %492 = vset.pattern.permute.xlu0 0
        %493 = vperm.xlu0 %492, %v475
        %v494 = vpop.permute.xlu0 %493
        %v496 = vmul.f32 %v468, %v479
        %v497 = vmul.f32 %v464, %v479
        %v498 = vmul.f32 %v469, %v484
        %v499 = vmul.f32 %v465, %v484
        %v500 = vmul.f32 %v470, %v489
        %v501 = vmul.f32 %v466, %v489
        %v502 = vmul.f32 %v471, %v494
        %v503 = vmul.f32 %v467, %v494
        %v504 = vld [vmem:[%s5] ss:$8 sm:$0x3]
        %v506 = vlaneseq
        %v507 = vshrl.u32 %v506, 7
        %v508 = vsub.s32 0, %v507
        %v509 = vrot.slane %v504, %v508
        %v510 = vlaneseq
        %v511 = vshrl.u32 %v510, 7
        %v512 = vsub.s32 1, %v511
        %v513 = vrot.slane %v504, %v512
        %v516 = vmul.f32 %v496, %v509
        %v517 = vmul.f32 %v497, %v513
        %v518 = vmul.f32 %v498, %v509
        %v519 = vmul.f32 %v499, %v513
        %v520 = vmul.f32 %v500, %v509
        %v521 = vmul.f32 %v501, %v513
        %v522 = vmul.f32 %v502, %v509
        %v523 = vmul.f32 %v503, %v513
        %524 = vrot.lane.b32.xlu0 %v423, 17
        %v525 = vpop.permute.xlu0 %524
        %526 = vrot.lane.b32.xlu0 %v429, 17
        %v527 = vpop.permute.xlu0 %526
        %528 = vrot.lane.b32.xlu0 %v435, 17
        %v529 = vpop.permute.xlu0 %528
        %530 = vrot.lane.b32.xlu0 %v441, 17
        %v531 = vpop.permute.xlu0 %530
        %532 = vrot.lane.b32.xlu0 %v425, 17
        %v533 = vpop.permute.xlu0 %532
        %534 = vrot.lane.b32.xlu0 %v431, 17
        %v535 = vpop.permute.xlu0 %534
        %536 = vrot.lane.b32.xlu0 %v437, 17
        %v537 = vpop.permute.xlu0 %536
        %538 = vrot.lane.b32.xlu0 %v443, 17
        %v539 = vpop.permute.xlu0 %538
        %vm540 = vcmp.lt.s32.totalorder %v462, 17
        %v541 = vsel %vm540, %v525, %v533
        %v542 = vsel %vm540, %v527, %v535
        %v543 = vsel %vm540, %v529, %v537
        %v544 = vsel %vm540, %v531, %v539
        %v545 = vsel %vm540, %v533, %v525
        %v546 = vsel %vm540, %v535, %v527
        %v547 = vsel %vm540, %v537, %v529
        %v548 = vsel %vm540, %v539, %v531
        %549 = vset.pattern.permute.xlu0 1
        %550 = vperm.xlu0 %549, %v472
        %v551 = vpop.permute.xlu0 %550
        %553 = vset.pattern.permute.xlu0 1
        %554 = vperm.xlu0 %553, %v473
        %v555 = vpop.permute.xlu0 %554
        %557 = vset.pattern.permute.xlu0 1
        %558 = vperm.xlu0 %557, %v474
        %v559 = vpop.permute.xlu0 %558
        %561 = vset.pattern.permute.xlu0 1
        %562 = vperm.xlu0 %561, %v475
        %v563 = vpop.permute.xlu0 %562
        %v565 = vmul.f32 %v545, %v551
        %v566 = vmul.f32 %v541, %v551
        %v567 = vmul.f32 %v546, %v555
        %v568 = vmul.f32 %v542, %v555
        %v569 = vmul.f32 %v547, %v559
        %v570 = vmul.f32 %v543, %v559
        %v571 = vmul.f32 %v548, %v563
        %v572 = vmul.f32 %v544, %v563
        %s573 = scalar_lea.vmem %s5, 1
        %v574 = vld [vmem:[%s573] ss:$8 sm:$0x3]
        %v576 = vlaneseq
        %v577 = vshrl.u32 %v576, 7
        %v578 = vsub.s32 0, %v577
        %v579 = vrot.slane %v574, %v578
        %v580 = vlaneseq
        %v581 = vshrl.u32 %v580, 7
        %v582 = vsub.s32 1, %v581
        %v583 = vrot.slane %v574, %v582
        %v586 = vmul.f32 %v565, %v579
        %v587 = vmul.f32 %v566, %v583
        %v588 = vmul.f32 %v567, %v579
        %v589 = vmul.f32 %v568, %v583
        %v590 = vmul.f32 %v569, %v579
        %v591 = vmul.f32 %v570, %v583
        %v592 = vmul.f32 %v571, %v579
        %v593 = vmul.f32 %v572, %v583
        %v594 = vadd.f32 %v516, %v586
        %v595 = vadd.f32 %v517, %v587
        %v596 = vadd.f32 %v518, %v588
        %v597 = vadd.f32 %v519, %v589
        %v598 = vadd.f32 %v520, %v590
        %v599 = vadd.f32 %v521, %v591
        %v600 = vadd.f32 %v522, %v592
        %v601 = vadd.f32 %v523, %v593
        %602 = vrot.lane.b32.xlu0 %v423, 16
        %v603 = vpop.permute.xlu0 %602
        %604 = vrot.lane.b32.xlu0 %v429, 16
        %v605 = vpop.permute.xlu0 %604
        %606 = vrot.lane.b32.xlu0 %v435, 16
        %v607 = vpop.permute.xlu0 %606
        %608 = vrot.lane.b32.xlu0 %v441, 16
        %v609 = vpop.permute.xlu0 %608
        %610 = vrot.lane.b32.xlu0 %v425, 16
        %v611 = vpop.permute.xlu0 %610
        %612 = vrot.lane.b32.xlu0 %v431, 16
        %v613 = vpop.permute.xlu0 %612
        %614 = vrot.lane.b32.xlu0 %v437, 16
        %v615 = vpop.permute.xlu0 %614
        %616 = vrot.lane.b32.xlu0 %v443, 16
        %v617 = vpop.permute.xlu0 %616
        %vm618 = vcmp.lt.s32.totalorder %v462, 16
        %v619 = vsel %vm618, %v603, %v611
        %v620 = vsel %vm618, %v605, %v613
        %v621 = vsel %vm618, %v607, %v615
        %v622 = vsel %vm618, %v609, %v617
        %v623 = vsel %vm618, %v611, %v603
        %v624 = vsel %vm618, %v613, %v605
        %v625 = vsel %vm618, %v615, %v607
        %v626 = vsel %vm618, %v617, %v609
        %627 = vset.pattern.permute.xlu0 2
        %628 = vperm.xlu0 %627, %v472
        %v629 = vpop.permute.xlu0 %628
        %631 = vset.pattern.permute.xlu0 2
        %632 = vperm.xlu0 %631, %v473
        %v633 = vpop.permute.xlu0 %632
        %635 = vset.pattern.permute.xlu0 2
        %636 = vperm.xlu0 %635, %v474
        %v637 = vpop.permute.xlu0 %636
        %639 = vset.pattern.permute.xlu0 2
        %640 = vperm.xlu0 %639, %v475
        %v641 = vpop.permute.xlu0 %640
        %v643 = vmul.f32 %v623, %v629
        %v644 = vmul.f32 %v619, %v629
        %v645 = vmul.f32 %v624, %v633
        %v646 = vmul.f32 %v620, %v633
        %v647 = vmul.f32 %v625, %v637
        %v648 = vmul.f32 %v621, %v637
        %v649 = vmul.f32 %v626, %v641
        %v650 = vmul.f32 %v622, %v641
        %s651 = scalar_lea.vmem %s5, 2
        %v652 = vld [vmem:[%s651] ss:$8 sm:$0x3]
        %v654 = vlaneseq
        %v655 = vshrl.u32 %v654, 7
        %v656 = vsub.s32 0, %v655
        %v657 = vrot.slane %v652, %v656
        %v658 = vlaneseq
        %v659 = vshrl.u32 %v658, 7
        %v660 = vsub.s32 1, %v659
        %v661 = vrot.slane %v652, %v660
        %v664 = vmul.f32 %v643, %v657
        %v665 = vmul.f32 %v644, %v661
        %v666 = vmul.f32 %v645, %v657
        %v667 = vmul.f32 %v646, %v661
        %v668 = vmul.f32 %v647, %v657
        %v669 = vmul.f32 %v648, %v661
        %v670 = vmul.f32 %v649, %v657
        %v671 = vmul.f32 %v650, %v661
        %v672 = vadd.f32 %v594, %v664
        %v673 = vadd.f32 %v595, %v665
        %v674 = vadd.f32 %v596, %v666
        %v675 = vadd.f32 %v597, %v667
        %v676 = vadd.f32 %v598, %v668
        %v677 = vadd.f32 %v599, %v669
        %v678 = vadd.f32 %v600, %v670
        %v679 = vadd.f32 %v601, %v671
        %680 = vrot.lane.b32.xlu0 %v423, 15
        %v681 = vpop.permute.xlu0 %680
        %682 = vrot.lane.b32.xlu0 %v429, 15
        %v683 = vpop.permute.xlu0 %682
        %684 = vrot.lane.b32.xlu0 %v435, 15
        %v685 = vpop.permute.xlu0 %684
        %686 = vrot.lane.b32.xlu0 %v441, 15
        %v687 = vpop.permute.xlu0 %686
        %688 = vrot.lane.b32.xlu0 %v425, 15
        %v689 = vpop.permute.xlu0 %688
        %690 = vrot.lane.b32.xlu0 %v431, 15
        %v691 = vpop.permute.xlu0 %690
        %692 = vrot.lane.b32.xlu0 %v437, 15
        %v693 = vpop.permute.xlu0 %692
        %694 = vrot.lane.b32.xlu0 %v443, 15
        %v695 = vpop.permute.xlu0 %694
        %vm696 = vcmp.lt.s32.totalorder %v462, 15
        %v697 = vsel %vm696, %v681, %v689
        %v698 = vsel %vm696, %v683, %v691
        %v699 = vsel %vm696, %v685, %v693
        %v700 = vsel %vm696, %v687, %v695
        %v701 = vsel %vm696, %v689, %v681
        %v702 = vsel %vm696, %v691, %v683
        %v703 = vsel %vm696, %v693, %v685
        %v704 = vsel %vm696, %v695, %v687
        %705 = vset.pattern.permute.xlu0 3
        %706 = vperm.xlu0 %705, %v472
        %v707 = vpop.permute.xlu0 %706
        %709 = vset.pattern.permute.xlu0 3
        %710 = vperm.xlu0 %709, %v473
        %v711 = vpop.permute.xlu0 %710
        %713 = vset.pattern.permute.xlu0 3
        %714 = vperm.xlu0 %713, %v474
        %v715 = vpop.permute.xlu0 %714
        %717 = vset.pattern.permute.xlu0 3
        %718 = vperm.xlu0 %717, %v475
        %v719 = vpop.permute.xlu0 %718
        %v721 = vmul.f32 %v701, %v707
        %v722 = vmul.f32 %v697, %v707
        %v723 = vmul.f32 %v702, %v711
        %v724 = vmul.f32 %v698, %v711
        %v725 = vmul.f32 %v703, %v715
        %v726 = vmul.f32 %v699, %v715
        %v727 = vmul.f32 %v704, %v719
        %v728 = vmul.f32 %v700, %v719
        %s729 = scalar_lea.vmem %s5, 3
        %v730 = vld [vmem:[%s729] ss:$8 sm:$0x3]
        %v732 = vlaneseq
        %v733 = vshrl.u32 %v732, 7
        %v734 = vsub.s32 0, %v733
        %v735 = vrot.slane %v730, %v734
        %v736 = vlaneseq
        %v737 = vshrl.u32 %v736, 7
        %v738 = vsub.s32 1, %v737
        %v739 = vrot.slane %v730, %v738
        %v742 = vmul.f32 %v721, %v735
        %v743 = vmul.f32 %v722, %v739
        %v744 = vmul.f32 %v723, %v735
        %v745 = vmul.f32 %v724, %v739
        %v746 = vmul.f32 %v725, %v735
        %v747 = vmul.f32 %v726, %v739
        %v748 = vmul.f32 %v727, %v735
        %v749 = vmul.f32 %v728, %v739
        %v750 = vadd.f32 %v672, %v742
        %v751 = vadd.f32 %v673, %v743
        %v752 = vadd.f32 %v674, %v744
        %v753 = vadd.f32 %v675, %v745
        %v754 = vadd.f32 %v676, %v746
        %v755 = vadd.f32 %v677, %v747
        %v756 = vadd.f32 %v678, %v748
        %v757 = vadd.f32 %v679, %v749
        %758 = vrot.lane.b32.xlu0 %v423, 14
        %v759 = vpop.permute.xlu0 %758
        %760 = vrot.lane.b32.xlu0 %v429, 14
        %v761 = vpop.permute.xlu0 %760
        %762 = vrot.lane.b32.xlu0 %v435, 14
        %v763 = vpop.permute.xlu0 %762
        %764 = vrot.lane.b32.xlu0 %v441, 14
        %v765 = vpop.permute.xlu0 %764
        %766 = vrot.lane.b32.xlu0 %v425, 14
        %v767 = vpop.permute.xlu0 %766
        %768 = vrot.lane.b32.xlu0 %v431, 14
        %v769 = vpop.permute.xlu0 %768
        %770 = vrot.lane.b32.xlu0 %v437, 14
        %v771 = vpop.permute.xlu0 %770
        %772 = vrot.lane.b32.xlu0 %v443, 14
        %v773 = vpop.permute.xlu0 %772
        %vm774 = vcmp.lt.s32.totalorder %v462, 14
        %v775 = vsel %vm774, %v759, %v767
        %v776 = vsel %vm774, %v761, %v769
        %v777 = vsel %vm774, %v763, %v771
        %v778 = vsel %vm774, %v765, %v773
        %v779 = vsel %vm774, %v767, %v759
        %v780 = vsel %vm774, %v769, %v761
        %v781 = vsel %vm774, %v771, %v763
        %v782 = vsel %vm774, %v773, %v765
        %783 = vset.pattern.permute.xlu0 4
        %784 = vperm.xlu0 %783, %v472
        %v785 = vpop.permute.xlu0 %784
        %787 = vset.pattern.permute.xlu0 4
        %788 = vperm.xlu0 %787, %v473
        %v789 = vpop.permute.xlu0 %788
        %791 = vset.pattern.permute.xlu0 4
        %792 = vperm.xlu0 %791, %v474
        %v793 = vpop.permute.xlu0 %792
        %795 = vset.pattern.permute.xlu0 4
        %796 = vperm.xlu0 %795, %v475
        %v797 = vpop.permute.xlu0 %796
        %v799 = vmul.f32 %v779, %v785
        %v800 = vmul.f32 %v775, %v785
        %v801 = vmul.f32 %v780, %v789
        %v802 = vmul.f32 %v776, %v789
        %v803 = vmul.f32 %v781, %v793
        %v804 = vmul.f32 %v777, %v793
        %v805 = vmul.f32 %v782, %v797
        %v806 = vmul.f32 %v778, %v797
        %s807 = scalar_lea.vmem %s5, 4
        %v808 = vld [vmem:[%s807] ss:$8 sm:$0x3]
        %v810 = vlaneseq
        %v811 = vshrl.u32 %v810, 7
        %v812 = vsub.s32 0, %v811
        %v813 = vrot.slane %v808, %v812
        %v814 = vlaneseq
        %v815 = vshrl.u32 %v814, 7
        %v816 = vsub.s32 1, %v815
        %v817 = vrot.slane %v808, %v816
        %v820 = vmul.f32 %v799, %v813
        %v821 = vmul.f32 %v800, %v817
        %v822 = vmul.f32 %v801, %v813
        %v823 = vmul.f32 %v802, %v817
        %v824 = vmul.f32 %v803, %v813
        %v825 = vmul.f32 %v804, %v817
        %v826 = vmul.f32 %v805, %v813
        %v827 = vmul.f32 %v806, %v817
        %v828 = vadd.f32 %v750, %v820
        %v829 = vadd.f32 %v751, %v821
        %v830 = vadd.f32 %v752, %v822
        %v831 = vadd.f32 %v753, %v823
        %v832 = vadd.f32 %v754, %v824
        %v833 = vadd.f32 %v755, %v825
        %v834 = vadd.f32 %v756, %v826
        %v835 = vadd.f32 %v757, %v827
        %836 = vrot.lane.b32.xlu0 %v423, 2
        %v837 = vpop.permute.xlu0 %836
        %838 = vrot.lane.b32.xlu0 %v429, 2
        %v839 = vpop.permute.xlu0 %838
        %840 = vrot.lane.b32.xlu0 %v435, 2
        %v841 = vpop.permute.xlu0 %840
        %842 = vrot.lane.b32.xlu0 %v441, 2
        %v843 = vpop.permute.xlu0 %842
        %844 = vrot.lane.b32.xlu0 %v425, 2
        %v845 = vpop.permute.xlu0 %844
        %846 = vrot.lane.b32.xlu0 %v431, 2
        %v847 = vpop.permute.xlu0 %846
        %848 = vrot.lane.b32.xlu0 %v437, 2
        %v849 = vpop.permute.xlu0 %848
        %850 = vrot.lane.b32.xlu0 %v443, 2
        %v851 = vpop.permute.xlu0 %850
        %vm852 = vcmp.lt.s32.totalorder %v462, 2
        %v853 = vsel %vm852, %v837, %v845
        %v854 = vsel %vm852, %v839, %v847
        %v855 = vsel %vm852, %v841, %v849
        %v856 = vsel %vm852, %v843, %v851
        %v857 = vsel %vm852, %v845, %v837
        %v858 = vsel %vm852, %v847, %v839
        %v859 = vsel %vm852, %v849, %v841
        %v860 = vsel %vm852, %v851, %v843
        %861 = vset.pattern.permute.xlu0 5
        %862 = vperm.xlu0 %861, %v472
        %v863 = vpop.permute.xlu0 %862
        %865 = vset.pattern.permute.xlu0 5
        %866 = vperm.xlu0 %865, %v473
        %v867 = vpop.permute.xlu0 %866
        %869 = vset.pattern.permute.xlu0 5
        %870 = vperm.xlu0 %869, %v474
        %v871 = vpop.permute.xlu0 %870
        %873 = vset.pattern.permute.xlu0 5
        %874 = vperm.xlu0 %873, %v475
        %v875 = vpop.permute.xlu0 %874
        %v877 = vmul.f32 %v857, %v863
        %v878 = vmul.f32 %v853, %v863
        %v879 = vmul.f32 %v858, %v867
        %v880 = vmul.f32 %v854, %v867
        %v881 = vmul.f32 %v859, %v871
        %v882 = vmul.f32 %v855, %v871
        %v883 = vmul.f32 %v860, %v875
        %v884 = vmul.f32 %v856, %v875
        %s885 = scalar_lea.vmem %s5, 5
        %v886 = vld [vmem:[%s885] ss:$8 sm:$0x3]
        %v888 = vlaneseq
        %v889 = vshrl.u32 %v888, 7
        %v890 = vsub.s32 0, %v889
        %v891 = vrot.slane %v886, %v890
        %v892 = vlaneseq
        %v893 = vshrl.u32 %v892, 7
        %v894 = vsub.s32 1, %v893
        %v895 = vrot.slane %v886, %v894
        %v898 = vmul.f32 %v877, %v891
        %v899 = vmul.f32 %v878, %v895
        %v900 = vmul.f32 %v879, %v891
        %v901 = vmul.f32 %v880, %v895
        %v902 = vmul.f32 %v881, %v891
        %v903 = vmul.f32 %v882, %v895
        %v904 = vmul.f32 %v883, %v891
        %v905 = vmul.f32 %v884, %v895
        %v906 = vadd.f32 %v828, %v898
        %v907 = vadd.f32 %v829, %v899
        %v908 = vadd.f32 %v830, %v900
        %v909 = vadd.f32 %v831, %v901
        %v910 = vadd.f32 %v832, %v902
        %v911 = vadd.f32 %v833, %v903
        %v912 = vadd.f32 %v834, %v904
        %v913 = vadd.f32 %v835, %v905
        %914 = vrot.lane.b32.xlu0 %v423, 1
        %v915 = vpop.permute.xlu0 %914
        %916 = vrot.lane.b32.xlu0 %v429, 1
        %v917 = vpop.permute.xlu0 %916
        %918 = vrot.lane.b32.xlu0 %v435, 1
        %v919 = vpop.permute.xlu0 %918
        %920 = vrot.lane.b32.xlu0 %v441, 1
        %v921 = vpop.permute.xlu0 %920
        %922 = vrot.lane.b32.xlu0 %v425, 1
        %v923 = vpop.permute.xlu0 %922
        %924 = vrot.lane.b32.xlu0 %v431, 1
        %v925 = vpop.permute.xlu0 %924
        %926 = vrot.lane.b32.xlu0 %v437, 1
        %v927 = vpop.permute.xlu0 %926
        %928 = vrot.lane.b32.xlu0 %v443, 1
        %v929 = vpop.permute.xlu0 %928
        %vm930 = vcmp.lt.s32.totalorder %v462, 1
        %v931 = vsel %vm930, %v915, %v923
        %v932 = vsel %vm930, %v917, %v925
        %v933 = vsel %vm930, %v919, %v927
        %v934 = vsel %vm930, %v921, %v929
        %v935 = vsel %vm930, %v923, %v915
        %v936 = vsel %vm930, %v925, %v917
        %v937 = vsel %vm930, %v927, %v919
        %v938 = vsel %vm930, %v929, %v921
        %939 = vset.pattern.permute.xlu0 6
        %940 = vperm.xlu0 %939, %v472
        %v941 = vpop.permute.xlu0 %940
        %943 = vset.pattern.permute.xlu0 6
        %944 = vperm.xlu0 %943, %v473
        %v945 = vpop.permute.xlu0 %944
        %947 = vset.pattern.permute.xlu0 6
        %948 = vperm.xlu0 %947, %v474
        %v949 = vpop.permute.xlu0 %948
        %951 = vset.pattern.permute.xlu0 6
        %952 = vperm.xlu0 %951, %v475
        %v953 = vpop.permute.xlu0 %952
        %v955 = vmul.f32 %v935, %v941
        %v956 = vmul.f32 %v931, %v941
        %v957 = vmul.f32 %v936, %v945
        %v958 = vmul.f32 %v932, %v945
        %v959 = vmul.f32 %v937, %v949
        %v960 = vmul.f32 %v933, %v949
        %v961 = vmul.f32 %v938, %v953
        %v962 = vmul.f32 %v934, %v953
        %s963 = scalar_lea.vmem %s5, 6
        %v964 = vld [vmem:[%s963] ss:$8 sm:$0x3]
        %v966 = vlaneseq
        %v967 = vshrl.u32 %v966, 7
        %v968 = vsub.s32 0, %v967
        %v969 = vrot.slane %v964, %v968
        %v970 = vlaneseq
        %v971 = vshrl.u32 %v970, 7
        %v972 = vsub.s32 1, %v971
        %v973 = vrot.slane %v964, %v972
        %v976 = vmul.f32 %v955, %v969
        %v977 = vmul.f32 %v956, %v973
        %v978 = vmul.f32 %v957, %v969
        %v979 = vmul.f32 %v958, %v973
        %v980 = vmul.f32 %v959, %v969
        %v981 = vmul.f32 %v960, %v973
        %v982 = vmul.f32 %v961, %v969
        %v983 = vmul.f32 %v962, %v973
        %v984 = vadd.f32 %v906, %v976
        %v985 = vadd.f32 %v907, %v977
        %v986 = vadd.f32 %v908, %v978
        %v987 = vadd.f32 %v909, %v979
        %v988 = vadd.f32 %v910, %v980
        %v989 = vadd.f32 %v911, %v981
        %v990 = vadd.f32 %v912, %v982
        %v991 = vadd.f32 %v913, %v983
        %992 = vset.pattern.permute.xlu0 7
        %993 = vperm.xlu0 %992, %v472
        %v994 = vpop.permute.xlu0 %993
        %996 = vset.pattern.permute.xlu0 7
        %997 = vperm.xlu0 %996, %v473
        %v998 = vpop.permute.xlu0 %997
        %1000 = vset.pattern.permute.xlu0 7
        %1001 = vperm.xlu0 %1000, %v474
        %v1002 = vpop.permute.xlu0 %1001
        %1004 = vset.pattern.permute.xlu0 7
        %1005 = vperm.xlu0 %1004, %v475
        %v1006 = vpop.permute.xlu0 %1005
        %v1008 = vmul.f32 %v423, %v994
        %v1009 = vmul.f32 %v425, %v994
        %v1010 = vmul.f32 %v429, %v998
        %v1011 = vmul.f32 %v431, %v998
        %v1012 = vmul.f32 %v435, %v1002
        %v1013 = vmul.f32 %v437, %v1002
        %v1014 = vmul.f32 %v441, %v1006
        %v1015 = vmul.f32 %v443, %v1006
        %v1016 = vadd.f32 %v984, %v1008
        %v1017 = vadd.f32 %v985, %v1009
        %v1018 = vadd.f32 %v986, %v1010
        %v1019 = vadd.f32 %v987, %v1011
        %v1020 = vadd.f32 %v988, %v1012
        %v1021 = vadd.f32 %v989, %v1013
        %v1022 = vadd.f32 %v990, %v1014
        %v1023 = vadd.f32 %v991, %v1015
        %1024 = vrot.lane.b32.xlu0 %v423, 127
        %v1025 = vpop.permute.xlu0 %1024
        %1026 = vrot.lane.b32.xlu0 %v429, 127
        %v1027 = vpop.permute.xlu0 %1026
        %1028 = vrot.lane.b32.xlu0 %v435, 127
        %v1029 = vpop.permute.xlu0 %1028
        %1030 = vrot.lane.b32.xlu0 %v441, 127
        %v1031 = vpop.permute.xlu0 %1030
        %1032 = vrot.lane.b32.xlu0 %v425, 127
        %v1033 = vpop.permute.xlu0 %1032
        %1034 = vrot.lane.b32.xlu0 %v431, 127
        %v1035 = vpop.permute.xlu0 %1034
        %1036 = vrot.lane.b32.xlu0 %v437, 127
        %v1037 = vpop.permute.xlu0 %1036
        %1038 = vrot.lane.b32.xlu0 %v443, 127
        %v1039 = vpop.permute.xlu0 %1038
        %vm1040 = vcmp.lt.s32.totalorder %v462, 127
        %v1041 = vsel %vm1040, %v1025, %v1033
        %v1042 = vsel %vm1040, %v1027, %v1035
        %v1043 = vsel %vm1040, %v1029, %v1037
        %v1044 = vsel %vm1040, %v1031, %v1039
        %v1045 = vsel %vm1040, %v1033, %v1025
        %v1046 = vsel %vm1040, %v1035, %v1027
        %v1047 = vsel %vm1040, %v1037, %v1029
        %v1048 = vsel %vm1040, %v1039, %v1031
        %1049 = vset.pattern.permute.xlu0 8
        %1050 = vperm.xlu0 %1049, %v472
        %v1051 = vpop.permute.xlu0 %1050
        %1053 = vset.pattern.permute.xlu0 8
        %1054 = vperm.xlu0 %1053, %v473
        %v1055 = vpop.permute.xlu0 %1054
        %1057 = vset.pattern.permute.xlu0 8
        %1058 = vperm.xlu0 %1057, %v474
        %v1059 = vpop.permute.xlu0 %1058
        %1061 = vset.pattern.permute.xlu0 8
        %1062 = vperm.xlu0 %1061, %v475
        %v1063 = vpop.permute.xlu0 %1062
        %v1065 = vmul.f32 %v1041, %v1051
        %v1066 = vmul.f32 %v1045, %v1051
        %v1067 = vmul.f32 %v1042, %v1055
        %v1068 = vmul.f32 %v1046, %v1055
        %v1069 = vmul.f32 %v1043, %v1059
        %v1070 = vmul.f32 %v1047, %v1059
        %v1071 = vmul.f32 %v1044, %v1063
        %v1072 = vmul.f32 %v1048, %v1063
        %s1073 = scalar_lea.vmem %s5, 16
        %v1074 = vld [vmem:[%s1073] ss:$8 sm:$0x3]
        %v1076 = vlaneseq
        %v1077 = vshrl.u32 %v1076, 7
        %v1078 = vsub.s32 0, %v1077
        %v1079 = vrot.slane %v1074, %v1078
        %v1080 = vlaneseq
        %v1081 = vshrl.u32 %v1080, 7
        %v1082 = vsub.s32 1, %v1081
        %v1083 = vrot.slane %v1074, %v1082
        %v1086 = vmul.f32 %v1065, %v1079
        %v1087 = vmul.f32 %v1066, %v1083
        %v1088 = vmul.f32 %v1067, %v1079
        %v1089 = vmul.f32 %v1068, %v1083
        %v1090 = vmul.f32 %v1069, %v1079
        %v1091 = vmul.f32 %v1070, %v1083
        %v1092 = vmul.f32 %v1071, %v1079
        %v1093 = vmul.f32 %v1072, %v1083
        %v1094 = vadd.f32 %v1016, %v1086
        %v1095 = vadd.f32 %v1017, %v1087
        %v1096 = vadd.f32 %v1018, %v1088
        %v1097 = vadd.f32 %v1019, %v1089
        %v1098 = vadd.f32 %v1020, %v1090
        %v1099 = vadd.f32 %v1021, %v1091
        %v1100 = vadd.f32 %v1022, %v1092
        %v1101 = vadd.f32 %v1023, %v1093
        %1102 = vrot.lane.b32.xlu0 %v423, 126
        %v1103 = vpop.permute.xlu0 %1102
        %1104 = vrot.lane.b32.xlu0 %v429, 126
        %v1105 = vpop.permute.xlu0 %1104
        %1106 = vrot.lane.b32.xlu0 %v435, 126
        %v1107 = vpop.permute.xlu0 %1106
        %1108 = vrot.lane.b32.xlu0 %v441, 126
        %v1109 = vpop.permute.xlu0 %1108
        %1110 = vrot.lane.b32.xlu0 %v425, 126
        %v1111 = vpop.permute.xlu0 %1110
        %1112 = vrot.lane.b32.xlu0 %v431, 126
        %v1113 = vpop.permute.xlu0 %1112
        %1114 = vrot.lane.b32.xlu0 %v437, 126
        %v1115 = vpop.permute.xlu0 %1114
        %1116 = vrot.lane.b32.xlu0 %v443, 126
        %v1117 = vpop.permute.xlu0 %1116
        %vm1118 = vcmp.lt.s32.totalorder %v462, 126
        %v1119 = vsel %vm1118, %v1103, %v1111
        %v1120 = vsel %vm1118, %v1105, %v1113
        %v1121 = vsel %vm1118, %v1107, %v1115
        %v1122 = vsel %vm1118, %v1109, %v1117
        %v1123 = vsel %vm1118, %v1111, %v1103
        %v1124 = vsel %vm1118, %v1113, %v1105
        %v1125 = vsel %vm1118, %v1115, %v1107
        %v1126 = vsel %vm1118, %v1117, %v1109
        %1127 = vset.pattern.permute.xlu0 9
        %1128 = vperm.xlu0 %1127, %v472
        %v1129 = vpop.permute.xlu0 %1128
        %1131 = vset.pattern.permute.xlu0 9
        %1132 = vperm.xlu0 %1131, %v473
        %v1133 = vpop.permute.xlu0 %1132
        %1135 = vset.pattern.permute.xlu0 9
        %1136 = vperm.xlu0 %1135, %v474
        %v1137 = vpop.permute.xlu0 %1136
        %1139 = vset.pattern.permute.xlu0 9
        %1140 = vperm.xlu0 %1139, %v475
        %v1141 = vpop.permute.xlu0 %1140
        %v1143 = vmul.f32 %v1119, %v1129
        %v1144 = vmul.f32 %v1123, %v1129
        %v1145 = vmul.f32 %v1120, %v1133
        %v1146 = vmul.f32 %v1124, %v1133
        %v1147 = vmul.f32 %v1121, %v1137
        %v1148 = vmul.f32 %v1125, %v1137
        %v1149 = vmul.f32 %v1122, %v1141
        %v1150 = vmul.f32 %v1126, %v1141
        %s1151 = scalar_lea.vmem %s5, 17
        %v1152 = vld [vmem:[%s1151] ss:$8 sm:$0x3]
        %v1154 = vlaneseq
        %v1155 = vshrl.u32 %v1154, 7
        %v1156 = vsub.s32 0, %v1155
        %v1157 = vrot.slane %v1152, %v1156
        %v1158 = vlaneseq
        %v1159 = vshrl.u32 %v1158, 7
        %v1160 = vsub.s32 1, %v1159
        %v1161 = vrot.slane %v1152, %v1160
        %v1164 = vmul.f32 %v1143, %v1157
        %v1165 = vmul.f32 %v1144, %v1161
        %v1166 = vmul.f32 %v1145, %v1157
        %v1167 = vmul.f32 %v1146, %v1161
        %v1168 = vmul.f32 %v1147, %v1157
        %v1169 = vmul.f32 %v1148, %v1161
        %v1170 = vmul.f32 %v1149, %v1157
        %v1171 = vmul.f32 %v1150, %v1161
        %v1172 = vadd.f32 %v1094, %v1164
        %v1173 = vadd.f32 %v1095, %v1165
        %v1174 = vadd.f32 %v1096, %v1166
        %v1175 = vadd.f32 %v1097, %v1167
        %v1176 = vadd.f32 %v1098, %v1168
        %v1177 = vadd.f32 %v1099, %v1169
        %v1178 = vadd.f32 %v1100, %v1170
        %v1179 = vadd.f32 %v1101, %v1171
        %1180 = vrot.lane.b32.xlu0 %v423, 114
        %v1181 = vpop.permute.xlu0 %1180
        %1182 = vrot.lane.b32.xlu0 %v429, 114
        %v1183 = vpop.permute.xlu0 %1182
        %1184 = vrot.lane.b32.xlu0 %v435, 114
        %v1185 = vpop.permute.xlu0 %1184
        %1186 = vrot.lane.b32.xlu0 %v441, 114
        %v1187 = vpop.permute.xlu0 %1186
        %1188 = vrot.lane.b32.xlu0 %v425, 114
        %v1189 = vpop.permute.xlu0 %1188
        %1190 = vrot.lane.b32.xlu0 %v431, 114
        %v1191 = vpop.permute.xlu0 %1190
        %1192 = vrot.lane.b32.xlu0 %v437, 114
        %v1193 = vpop.permute.xlu0 %1192
        %1194 = vrot.lane.b32.xlu0 %v443, 114
        %v1195 = vpop.permute.xlu0 %1194
        %vm1196 = vcmp.lt.s32.totalorder %v462, 114
        %v1197 = vsel %vm1196, %v1181, %v1189
        %v1198 = vsel %vm1196, %v1183, %v1191
        %v1199 = vsel %vm1196, %v1185, %v1193
        %v1200 = vsel %vm1196, %v1187, %v1195
        %v1201 = vsel %vm1196, %v1189, %v1181
        %v1202 = vsel %vm1196, %v1191, %v1183
        %v1203 = vsel %vm1196, %v1193, %v1185
        %v1204 = vsel %vm1196, %v1195, %v1187
        %1205 = vset.pattern.permute.xlu0 10
        %1206 = vperm.xlu0 %1205, %v472
        %v1207 = vpop.permute.xlu0 %1206
        %1209 = vset.pattern.permute.xlu0 10
        %1210 = vperm.xlu0 %1209, %v473
        %v1211 = vpop.permute.xlu0 %1210
        %1213 = vset.pattern.permute.xlu0 10
        %1214 = vperm.xlu0 %1213, %v474
        %v1215 = vpop.permute.xlu0 %1214
        %1217 = vset.pattern.permute.xlu0 10
        %1218 = vperm.xlu0 %1217, %v475
        %v1219 = vpop.permute.xlu0 %1218
        %v1221 = vmul.f32 %v1197, %v1207
        %v1222 = vmul.f32 %v1201, %v1207
        %v1223 = vmul.f32 %v1198, %v1211
        %v1224 = vmul.f32 %v1202, %v1211
        %v1225 = vmul.f32 %v1199, %v1215
        %v1226 = vmul.f32 %v1203, %v1215
        %v1227 = vmul.f32 %v1200, %v1219
        %v1228 = vmul.f32 %v1204, %v1219
        %s1229 = scalar_lea.vmem %s5, 18
        %v1230 = vld [vmem:[%s1229] ss:$8 sm:$0x3]
        %v1232 = vlaneseq
        %v1233 = vshrl.u32 %v1232, 7
        %v1234 = vsub.s32 0, %v1233
        %v1235 = vrot.slane %v1230, %v1234
        %v1236 = vlaneseq
        %v1237 = vshrl.u32 %v1236, 7
        %v1238 = vsub.s32 1, %v1237
        %v1239 = vrot.slane %v1230, %v1238
        %v1242 = vmul.f32 %v1221, %v1235
        %v1243 = vmul.f32 %v1222, %v1239
        %v1244 = vmul.f32 %v1223, %v1235
        %v1245 = vmul.f32 %v1224, %v1239
        %v1246 = vmul.f32 %v1225, %v1235
        %v1247 = vmul.f32 %v1226, %v1239
        %v1248 = vmul.f32 %v1227, %v1235
        %v1249 = vmul.f32 %v1228, %v1239
        %v1250 = vadd.f32 %v1172, %v1242
        %v1251 = vadd.f32 %v1173, %v1243
        %v1252 = vadd.f32 %v1174, %v1244
        %v1253 = vadd.f32 %v1175, %v1245
        %v1254 = vadd.f32 %v1176, %v1246
        %v1255 = vadd.f32 %v1177, %v1247
        %v1256 = vadd.f32 %v1178, %v1248
        %v1257 = vadd.f32 %v1179, %v1249
        %1258 = vrot.lane.b32.xlu0 %v423, 113
        %v1259 = vpop.permute.xlu0 %1258
        %1260 = vrot.lane.b32.xlu0 %v429, 113
        %v1261 = vpop.permute.xlu0 %1260
        %1262 = vrot.lane.b32.xlu0 %v435, 113
        %v1263 = vpop.permute.xlu0 %1262
        %1264 = vrot.lane.b32.xlu0 %v441, 113
        %v1265 = vpop.permute.xlu0 %1264
        %1266 = vrot.lane.b32.xlu0 %v425, 113
        %v1267 = vpop.permute.xlu0 %1266
        %1268 = vrot.lane.b32.xlu0 %v431, 113
        %v1269 = vpop.permute.xlu0 %1268
        %1270 = vrot.lane.b32.xlu0 %v437, 113
        %v1271 = vpop.permute.xlu0 %1270
        %1272 = vrot.lane.b32.xlu0 %v443, 113
        %v1273 = vpop.permute.xlu0 %1272
        %vm1274 = vcmp.lt.s32.totalorder %v462, 113
        %v1275 = vsel %vm1274, %v1259, %v1267
        %v1276 = vsel %vm1274, %v1261, %v1269
        %v1277 = vsel %vm1274, %v1263, %v1271
        %v1278 = vsel %vm1274, %v1265, %v1273
        %v1279 = vsel %vm1274, %v1267, %v1259
        %v1280 = vsel %vm1274, %v1269, %v1261
        %v1281 = vsel %vm1274, %v1271, %v1263
        %v1282 = vsel %vm1274, %v1273, %v1265
        %1283 = vset.pattern.permute.xlu0 11
        %1284 = vperm.xlu0 %1283, %v472
        %v1285 = vpop.permute.xlu0 %1284
        %1287 = vset.pattern.permute.xlu0 11
        %1288 = vperm.xlu0 %1287, %v473
        %v1289 = vpop.permute.xlu0 %1288
        %1291 = vset.pattern.permute.xlu0 11
        %1292 = vperm.xlu0 %1291, %v474
        %v1293 = vpop.permute.xlu0 %1292
        %1295 = vset.pattern.permute.xlu0 11
        %1296 = vperm.xlu0 %1295, %v475
        %v1297 = vpop.permute.xlu0 %1296
        %v1299 = vmul.f32 %v1275, %v1285
        %v1300 = vmul.f32 %v1279, %v1285
        %v1301 = vmul.f32 %v1276, %v1289
        %v1302 = vmul.f32 %v1280, %v1289
        %v1303 = vmul.f32 %v1277, %v1293
        %v1304 = vmul.f32 %v1281, %v1293
        %v1305 = vmul.f32 %v1278, %v1297
        %v1306 = vmul.f32 %v1282, %v1297
        %s1307 = scalar_lea.vmem %s5, 19
        %v1308 = vld [vmem:[%s1307] ss:$8 sm:$0x3]
        %v1310 = vlaneseq
        %v1311 = vshrl.u32 %v1310, 7
        %v1312 = vsub.s32 0, %v1311
        %v1313 = vrot.slane %v1308, %v1312
        %v1314 = vlaneseq
        %v1315 = vshrl.u32 %v1314, 7
        %v1316 = vsub.s32 1, %v1315
        %v1317 = vrot.slane %v1308, %v1316
        %v1320 = vmul.f32 %v1299, %v1313
        %v1321 = vmul.f32 %v1300, %v1317
        %v1322 = vmul.f32 %v1301, %v1313
        %v1323 = vmul.f32 %v1302, %v1317
        %v1324 = vmul.f32 %v1303, %v1313
        %v1325 = vmul.f32 %v1304, %v1317
        %v1326 = vmul.f32 %v1305, %v1313
        %v1327 = vmul.f32 %v1306, %v1317
        %v1328 = vadd.f32 %v1250, %v1320
        %v1329 = vadd.f32 %v1251, %v1321
        %v1330 = vadd.f32 %v1252, %v1322
        %v1331 = vadd.f32 %v1253, %v1323
        %v1332 = vadd.f32 %v1254, %v1324
        %v1333 = vadd.f32 %v1255, %v1325
        %v1334 = vadd.f32 %v1256, %v1326
        %v1335 = vadd.f32 %v1257, %v1327
        %1336 = vrot.lane.b32.xlu0 %v423, 112
        %v1337 = vpop.permute.xlu0 %1336
        %1338 = vrot.lane.b32.xlu0 %v429, 112
        %v1339 = vpop.permute.xlu0 %1338
        %1340 = vrot.lane.b32.xlu0 %v435, 112
        %v1341 = vpop.permute.xlu0 %1340
        %1342 = vrot.lane.b32.xlu0 %v441, 112
        %v1343 = vpop.permute.xlu0 %1342
        %1344 = vrot.lane.b32.xlu0 %v425, 112
        %v1345 = vpop.permute.xlu0 %1344
        %1346 = vrot.lane.b32.xlu0 %v431, 112
        %v1347 = vpop.permute.xlu0 %1346
        %1348 = vrot.lane.b32.xlu0 %v437, 112
        %v1349 = vpop.permute.xlu0 %1348
        %1350 = vrot.lane.b32.xlu0 %v443, 112
        %v1351 = vpop.permute.xlu0 %1350
        %vm1352 = vcmp.lt.s32.totalorder %v462, 112
        %v1353 = vsel %vm1352, %v1337, %v1345
        %v1354 = vsel %vm1352, %v1339, %v1347
        %v1355 = vsel %vm1352, %v1341, %v1349
        %v1356 = vsel %vm1352, %v1343, %v1351
        %v1357 = vsel %vm1352, %v1345, %v1337
        %v1358 = vsel %vm1352, %v1347, %v1339
        %v1359 = vsel %vm1352, %v1349, %v1341
        %v1360 = vsel %vm1352, %v1351, %v1343
        %1361 = vset.pattern.permute.xlu0 12
        %1362 = vperm.xlu0 %1361, %v472
        %v1363 = vpop.permute.xlu0 %1362
        %1365 = vset.pattern.permute.xlu0 12
        %1366 = vperm.xlu0 %1365, %v473
        %v1367 = vpop.permute.xlu0 %1366
        %1369 = vset.pattern.permute.xlu0 12
        %1370 = vperm.xlu0 %1369, %v474
        %v1371 = vpop.permute.xlu0 %1370
        %1373 = vset.pattern.permute.xlu0 12
        %1374 = vperm.xlu0 %1373, %v475
        %v1375 = vpop.permute.xlu0 %1374
        %v1377 = vmul.f32 %v1353, %v1363
        %v1378 = vmul.f32 %v1357, %v1363
        %v1379 = vmul.f32 %v1354, %v1367
        %v1380 = vmul.f32 %v1358, %v1367
        %v1381 = vmul.f32 %v1355, %v1371
        %v1382 = vmul.f32 %v1359, %v1371
        %v1383 = vmul.f32 %v1356, %v1375
        %v1384 = vmul.f32 %v1360, %v1375
        %s1385 = scalar_lea.vmem %s5, 20
        %v1386 = vld [vmem:[%s1385] ss:$8 sm:$0x3]
        %v1388 = vlaneseq
        %v1389 = vshrl.u32 %v1388, 7
        %v1390 = vsub.s32 0, %v1389
        %v1391 = vrot.slane %v1386, %v1390
        %v1392 = vlaneseq
        %v1393 = vshrl.u32 %v1392, 7
        %v1394 = vsub.s32 1, %v1393
        %v1395 = vrot.slane %v1386, %v1394
        %v1398 = vmul.f32 %v1377, %v1391
        %v1399 = vmul.f32 %v1378, %v1395
        %v1400 = vmul.f32 %v1379, %v1391
        %v1401 = vmul.f32 %v1380, %v1395
        %v1402 = vmul.f32 %v1381, %v1391
        %v1403 = vmul.f32 %v1382, %v1395
        %v1404 = vmul.f32 %v1383, %v1391
        %v1405 = vmul.f32 %v1384, %v1395
        %v1406 = vadd.f32 %v1328, %v1398
        %v1407 = vadd.f32 %v1329, %v1399
        %v1408 = vadd.f32 %v1330, %v1400
        %v1409 = vadd.f32 %v1331, %v1401
        %v1410 = vadd.f32 %v1332, %v1402
        %v1411 = vadd.f32 %v1333, %v1403
        %v1412 = vadd.f32 %v1334, %v1404
        %v1413 = vadd.f32 %v1335, %v1405
        %1414 = vrot.lane.b32.xlu0 %v423, 111
        %v1415 = vpop.permute.xlu0 %1414
        %1416 = vrot.lane.b32.xlu0 %v429, 111
        %v1417 = vpop.permute.xlu0 %1416
        %1418 = vrot.lane.b32.xlu0 %v435, 111
        %v1419 = vpop.permute.xlu0 %1418
        %1420 = vrot.lane.b32.xlu0 %v441, 111
        %v1421 = vpop.permute.xlu0 %1420
        %1422 = vrot.lane.b32.xlu0 %v425, 111
        %v1423 = vpop.permute.xlu0 %1422
        %1424 = vrot.lane.b32.xlu0 %v431, 111
        %v1425 = vpop.permute.xlu0 %1424
        %1426 = vrot.lane.b32.xlu0 %v437, 111
        %v1427 = vpop.permute.xlu0 %1426
        %1428 = vrot.lane.b32.xlu0 %v443, 111
        %v1429 = vpop.permute.xlu0 %1428
        %vm1430 = vcmp.lt.s32.totalorder %v462, 111
        %v1431 = vsel %vm1430, %v1415, %v1423
        %v1432 = vsel %vm1430, %v1417, %v1425
        %v1433 = vsel %vm1430, %v1419, %v1427
        %v1434 = vsel %vm1430, %v1421, %v1429
        %v1435 = vsel %vm1430, %v1423, %v1415
        %v1436 = vsel %vm1430, %v1425, %v1417
        %v1437 = vsel %vm1430, %v1427, %v1419
        %v1438 = vsel %vm1430, %v1429, %v1421
        %1439 = vset.pattern.permute.xlu0 13
        %1440 = vperm.xlu0 %1439, %v472
        %v1441 = vpop.permute.xlu0 %1440
        %1443 = vset.pattern.permute.xlu0 13
        %1444 = vperm.xlu0 %1443, %v473
        %v1445 = vpop.permute.xlu0 %1444
        %1447 = vset.pattern.permute.xlu0 13
        %1448 = vperm.xlu0 %1447, %v474
        %v1449 = vpop.permute.xlu0 %1448
        %1451 = vset.pattern.permute.xlu0 13
        %1452 = vperm.xlu0 %1451, %v475
        %v1453 = vpop.permute.xlu0 %1452
        %v1455 = vmul.f32 %v1431, %v1441
        %v1456 = vmul.f32 %v1435, %v1441
        %v1457 = vmul.f32 %v1432, %v1445
        %v1458 = vmul.f32 %v1436, %v1445
        %v1459 = vmul.f32 %v1433, %v1449
        %v1460 = vmul.f32 %v1437, %v1449
        %v1461 = vmul.f32 %v1434, %v1453
        %v1462 = vmul.f32 %v1438, %v1453
        %s1463 = scalar_lea.vmem %s5, 21
        %v1464 = vld [vmem:[%s1463] ss:$8 sm:$0x3]
        %v1466 = vlaneseq
        %v1467 = vshrl.u32 %v1466, 7
        %v1468 = vsub.s32 0, %v1467
        %v1469 = vrot.slane %v1464, %v1468
        %v1470 = vlaneseq
        %v1471 = vshrl.u32 %v1470, 7
        %v1472 = vsub.s32 1, %v1471
        %v1473 = vrot.slane %v1464, %v1472
        %v1476 = vmul.f32 %v1455, %v1469
        %v1477 = vmul.f32 %v1456, %v1473
        %v1478 = vmul.f32 %v1457, %v1469
        %v1479 = vmul.f32 %v1458, %v1473
        %v1480 = vmul.f32 %v1459, %v1469
        %v1481 = vmul.f32 %v1460, %v1473
        %v1482 = vmul.f32 %v1461, %v1469
        %v1483 = vmul.f32 %v1462, %v1473
        %v1484 = vadd.f32 %v1406, %v1476
        %v1485 = vadd.f32 %v1407, %v1477
        %v1486 = vadd.f32 %v1408, %v1478
        %v1487 = vadd.f32 %v1409, %v1479
        %v1488 = vadd.f32 %v1410, %v1480
        %v1489 = vadd.f32 %v1411, %v1481
        %v1490 = vadd.f32 %v1412, %v1482
        %v1491 = vadd.f32 %v1413, %v1483
        %1492 = vrot.lane.b32.xlu0 %v423, 110
        %v1493 = vpop.permute.xlu0 %1492
        %1494 = vrot.lane.b32.xlu0 %v429, 110
        %v1495 = vpop.permute.xlu0 %1494
        %1496 = vrot.lane.b32.xlu0 %v435, 110
        %v1497 = vpop.permute.xlu0 %1496
        %1498 = vrot.lane.b32.xlu0 %v441, 110
        %v1499 = vpop.permute.xlu0 %1498
        %1500 = vrot.lane.b32.xlu0 %v425, 110
        %v1501 = vpop.permute.xlu0 %1500
        %1502 = vrot.lane.b32.xlu0 %v431, 110
        %v1503 = vpop.permute.xlu0 %1502
        %1504 = vrot.lane.b32.xlu0 %v437, 110
        %v1505 = vpop.permute.xlu0 %1504
        %1506 = vrot.lane.b32.xlu0 %v443, 110
        %v1507 = vpop.permute.xlu0 %1506
        %vm1508 = vcmp.lt.s32.totalorder %v462, 110
        %v1509 = vsel %vm1508, %v1493, %v1501
        %v1510 = vsel %vm1508, %v1495, %v1503
        %v1511 = vsel %vm1508, %v1497, %v1505
        %v1512 = vsel %vm1508, %v1499, %v1507
        %v1513 = vsel %vm1508, %v1501, %v1493
        %v1514 = vsel %vm1508, %v1503, %v1495
        %v1515 = vsel %vm1508, %v1505, %v1497
        %v1516 = vsel %vm1508, %v1507, %v1499
        %1517 = vset.pattern.permute.xlu0 14
        %1518 = vperm.xlu0 %1517, %v472
        %v1519 = vpop.permute.xlu0 %1518
        %1521 = vset.pattern.permute.xlu0 14
        %1522 = vperm.xlu0 %1521, %v473
        %v1523 = vpop.permute.xlu0 %1522
        %1525 = vset.pattern.permute.xlu0 14
        %1526 = vperm.xlu0 %1525, %v474
        %v1527 = vpop.permute.xlu0 %1526
        %1529 = vset.pattern.permute.xlu0 14
        %1530 = vperm.xlu0 %1529, %v475
        %v1531 = vpop.permute.xlu0 %1530
        %v1533 = vmul.f32 %v1509, %v1519
        %v1534 = vmul.f32 %v1513, %v1519
        %v1535 = vmul.f32 %v1510, %v1523
        %v1536 = vmul.f32 %v1514, %v1523
        %v1537 = vmul.f32 %v1511, %v1527
        %v1538 = vmul.f32 %v1515, %v1527
        %v1539 = vmul.f32 %v1512, %v1531
        %v1540 = vmul.f32 %v1516, %v1531
        %s1541 = scalar_lea.vmem %s5, 22
        %v1542 = vld [vmem:[%s1541] ss:$8 sm:$0x3]
        %v1544 = vlaneseq
        %v1545 = vshrl.u32 %v1544, 7
        %v1546 = vsub.s32 0, %v1545
        %v1547 = vrot.slane %v1542, %v1546
        %v1548 = vlaneseq
        %v1549 = vshrl.u32 %v1548, 7
        %v1550 = vsub.s32 1, %v1549
        %v1551 = vrot.slane %v1542, %v1550
        %v1554 = vmul.f32 %v1533, %v1547
        %v1555 = vmul.f32 %v1534, %v1551
        %v1556 = vmul.f32 %v1535, %v1547
        %v1557 = vmul.f32 %v1536, %v1551
        %v1558 = vmul.f32 %v1537, %v1547
        %v1559 = vmul.f32 %v1538, %v1551
        %v1560 = vmul.f32 %v1539, %v1547
        %v1561 = vmul.f32 %v1540, %v1551
        %v1562 = vadd.f32 %v1484, %v1554
        %v1563 = vadd.f32 %v1485, %v1555
        %v1564 = vadd.f32 %v1486, %v1556
        %v1565 = vadd.f32 %v1487, %v1557
        %v1566 = vadd.f32 %v1488, %v1558
        %v1567 = vadd.f32 %v1489, %v1559
        %v1568 = vadd.f32 %v1490, %v1560
        %v1569 = vadd.f32 %v1491, %v1561
        %v1570 = vld [vmem:[%s4] sm:$0xff]
        %v1571 = vld [vmem:[%s4 + $0x8] sm:$0xff]
        %v1572 = vld [vmem:[%s4 + $0x10] sm:$0xff]
        %v1573 = vld [vmem:[%s4 + $0x18] sm:$0xff]
        %1575 = vset.pattern.permute.xlu0 0
        %1576 = vperm.xlu0 %1575, %v1570
        %v1577 = vpop.permute.xlu0 %1576
        %1580 = vset.pattern.permute.xlu0 0
        %1581 = vperm.xlu0 %1580, %v1571
        %v1582 = vpop.permute.xlu0 %1581
        %1585 = vset.pattern.permute.xlu0 0
        %1586 = vperm.xlu0 %1585, %v1572
        %v1587 = vpop.permute.xlu0 %1586
        %1590 = vset.pattern.permute.xlu0 0
        %1591 = vperm.xlu0 %1590, %v1573
        %v1592 = vpop.permute.xlu0 %1591
        %v1594 = vadd.f32 %v1562, %v1577
        %v1595 = vadd.f32 %v1563, %v1577
        %v1596 = vadd.f32 %v1564, %v1582
        %v1597 = vadd.f32 %v1565, %v1582
        %v1598 = vadd.f32 %v1566, %v1587
        %v1599 = vadd.f32 %v1567, %v1587
        %v1600 = vadd.f32 %v1568, %v1592
        %v1601 = vadd.f32 %v1569, %v1592
        %1602 = vrot.lane.b32.xlu0 %v1594, 33
        %v1603 = vpop.permute.xlu0 %1602
        %1604 = vrot.lane.b32.xlu0 %v1596, 33
        %v1605 = vpop.permute.xlu0 %1604
        %1606 = vrot.lane.b32.xlu0 %v1598, 33
        %v1607 = vpop.permute.xlu0 %1606
        %1608 = vrot.lane.b32.xlu0 %v1600, 33
        %v1609 = vpop.permute.xlu0 %1608
        %1610 = vrot.lane.b32.xlu0 %v1595, 33
        %v1611 = vpop.permute.xlu0 %1610
        %1612 = vrot.lane.b32.xlu0 %v1597, 33
        %v1613 = vpop.permute.xlu0 %1612
        %1614 = vrot.lane.b32.xlu0 %v1599, 33
        %v1615 = vpop.permute.xlu0 %1614
        %1616 = vrot.lane.b32.xlu0 %v1601, 33
        %v1617 = vpop.permute.xlu0 %1616
        %vm1618 = vcmp.lt.s32.totalorder %v462, 33
        %v1619 = vsel %vm1618, %v1603, %v1611
        %v1620 = vsel %vm1618, %v1605, %v1613
        %v1621 = vsel %vm1618, %v1607, %v1615
        %v1622 = vsel %vm1618, %v1609, %v1617
        %v1623 = vsel %vm1618, %v1611, %v1603
        %v1624 = vsel %vm1618, %v1613, %v1605
        %v1625 = vsel %vm1618, %v1615, %v1607
        %v1626 = vsel %vm1618, %v1617, %v1609
        %1627 = vset.pattern.permute.xlu0 15
        %1628 = vperm.xlu0 %1627, %v472
        %v1629 = vpop.permute.xlu0 %1628
        %1631 = vset.pattern.permute.xlu0 15
        %1632 = vperm.xlu0 %1631, %v473
        %v1633 = vpop.permute.xlu0 %1632
        %1635 = vset.pattern.permute.xlu0 15
        %1636 = vperm.xlu0 %1635, %v474
        %v1637 = vpop.permute.xlu0 %1636
        %1639 = vset.pattern.permute.xlu0 15
        %1640 = vperm.xlu0 %1639, %v475
        %v1641 = vpop.permute.xlu0 %1640
        %v1643 = vmul.f32 %v1623, %v1629
        %v1644 = vmul.f32 %v1619, %v1629
        %v1645 = vmul.f32 %v1624, %v1633
        %v1646 = vmul.f32 %v1620, %v1633
        %v1647 = vmul.f32 %v1625, %v1637
        %v1648 = vmul.f32 %v1621, %v1637
        %v1649 = vmul.f32 %v1626, %v1641
        %v1650 = vmul.f32 %v1622, %v1641
        %s1651 = scalar_lea.vmem %s5, 23
        %v1652 = vld [vmem:[%s1651] ss:$8 sm:$0x3]
        %v1654 = vlaneseq
        %v1655 = vshrl.u32 %v1654, 7
        %v1656 = vsub.s32 0, %v1655
        %v1657 = vrot.slane %v1652, %v1656
        %v1658 = vlaneseq
        %v1659 = vshrl.u32 %v1658, 7
        %v1660 = vsub.s32 1, %v1659
        %v1661 = vrot.slane %v1652, %v1660
        %v1664 = vmul.f32 %v1643, %v1657
        %v1665 = vmul.f32 %v1644, %v1661
        %v1666 = vmul.f32 %v1645, %v1657
        %v1667 = vmul.f32 %v1646, %v1661
        %v1668 = vmul.f32 %v1647, %v1657
        %v1669 = vmul.f32 %v1648, %v1661
        %v1670 = vmul.f32 %v1649, %v1657
        %v1671 = vmul.f32 %v1650, %v1661
        %1672 = vrot.lane.b32.xlu0 %v1594, 32
        %v1673 = vpop.permute.xlu0 %1672
        %1674 = vrot.lane.b32.xlu0 %v1596, 32
        %v1675 = vpop.permute.xlu0 %1674
        %1676 = vrot.lane.b32.xlu0 %v1598, 32
        %v1677 = vpop.permute.xlu0 %1676
        %1678 = vrot.lane.b32.xlu0 %v1600, 32
        %v1679 = vpop.permute.xlu0 %1678
        %1680 = vrot.lane.b32.xlu0 %v1595, 32
        %v1681 = vpop.permute.xlu0 %1680
        %1682 = vrot.lane.b32.xlu0 %v1597, 32
        %v1683 = vpop.permute.xlu0 %1682
        %1684 = vrot.lane.b32.xlu0 %v1599, 32
        %v1685 = vpop.permute.xlu0 %1684
        %1686 = vrot.lane.b32.xlu0 %v1601, 32
        %v1687 = vpop.permute.xlu0 %1686
        %vm1688 = vcmp.lt.s32.totalorder %v462, 32
        %v1689 = vsel %vm1688, %v1673, %v1681
        %v1690 = vsel %vm1688, %v1675, %v1683
        %v1691 = vsel %vm1688, %v1677, %v1685
        %v1692 = vsel %vm1688, %v1679, %v1687
        %v1693 = vsel %vm1688, %v1681, %v1673
        %v1694 = vsel %vm1688, %v1683, %v1675
        %v1695 = vsel %vm1688, %v1685, %v1677
        %v1696 = vsel %vm1688, %v1687, %v1679
        %1697 = vset.pattern.permute.xlu0 16
        %1698 = vperm.xlu0 %1697, %v472
        %v1699 = vpop.permute.xlu0 %1698
        %1701 = vset.pattern.permute.xlu0 16
        %1702 = vperm.xlu0 %1701, %v473
        %v1703 = vpop.permute.xlu0 %1702
        %1705 = vset.pattern.permute.xlu0 16
        %1706 = vperm.xlu0 %1705, %v474
        %v1707 = vpop.permute.xlu0 %1706
        %1709 = vset.pattern.permute.xlu0 16
        %1710 = vperm.xlu0 %1709, %v475
        %v1711 = vpop.permute.xlu0 %1710
        %v1713 = vmul.f32 %v1693, %v1699
        %v1714 = vmul.f32 %v1689, %v1699
        %v1715 = vmul.f32 %v1694, %v1703
        %v1716 = vmul.f32 %v1690, %v1703
        %v1717 = vmul.f32 %v1695, %v1707
        %v1718 = vmul.f32 %v1691, %v1707
        %v1719 = vmul.f32 %v1696, %v1711
        %v1720 = vmul.f32 %v1692, %v1711
        %s1721 = scalar_lea.vmem %s5, 32
        %v1722 = vld [vmem:[%s1721] ss:$8 sm:$0x3]
        %v1724 = vlaneseq
        %v1725 = vshrl.u32 %v1724, 7
        %v1726 = vsub.s32 0, %v1725
        %v1727 = vrot.slane %v1722, %v1726
        %v1728 = vlaneseq
        %v1729 = vshrl.u32 %v1728, 7
        %v1730 = vsub.s32 1, %v1729
        %v1731 = vrot.slane %v1722, %v1730
        %v1734 = vmul.f32 %v1713, %v1727
        %v1735 = vmul.f32 %v1714, %v1731
        %v1736 = vmul.f32 %v1715, %v1727
        %v1737 = vmul.f32 %v1716, %v1731
        %v1738 = vmul.f32 %v1717, %v1727
        %v1739 = vmul.f32 %v1718, %v1731
        %v1740 = vmul.f32 %v1719, %v1727
        %v1741 = vmul.f32 %v1720, %v1731
        %v1742 = vadd.f32 %v1664, %v1734
        %v1743 = vadd.f32 %v1665, %v1735
        %v1744 = vadd.f32 %v1666, %v1736
        %v1745 = vadd.f32 %v1667, %v1737
        %v1746 = vadd.f32 %v1668, %v1738
        %v1747 = vadd.f32 %v1669, %v1739
        %v1748 = vadd.f32 %v1670, %v1740
        %v1749 = vadd.f32 %v1671, %v1741
        %1750 = vrot.lane.b32.xlu0 %v1594, 31
        %v1751 = vpop.permute.xlu0 %1750
        %1752 = vrot.lane.b32.xlu0 %v1596, 31
        %v1753 = vpop.permute.xlu0 %1752
        %1754 = vrot.lane.b32.xlu0 %v1598, 31
        %v1755 = vpop.permute.xlu0 %1754
        %1756 = vrot.lane.b32.xlu0 %v1600, 31
        %v1757 = vpop.permute.xlu0 %1756
        %1758 = vrot.lane.b32.xlu0 %v1595, 31
        %v1759 = vpop.permute.xlu0 %1758
        %1760 = vrot.lane.b32.xlu0 %v1597, 31
        %v1761 = vpop.permute.xlu0 %1760
        %1762 = vrot.lane.b32.xlu0 %v1599, 31
        %v1763 = vpop.permute.xlu0 %1762
        %1764 = vrot.lane.b32.xlu0 %v1601, 31
        %v1765 = vpop.permute.xlu0 %1764
        %vm1766 = vcmp.lt.s32.totalorder %v462, 31
        %v1767 = vsel %vm1766, %v1751, %v1759
        %v1768 = vsel %vm1766, %v1753, %v1761
        %v1769 = vsel %vm1766, %v1755, %v1763
        %v1770 = vsel %vm1766, %v1757, %v1765
        %v1771 = vsel %vm1766, %v1759, %v1751
        %v1772 = vsel %vm1766, %v1761, %v1753
        %v1773 = vsel %vm1766, %v1763, %v1755
        %v1774 = vsel %vm1766, %v1765, %v1757
        %1775 = vset.pattern.permute.xlu0 17
        %1776 = vperm.xlu0 %1775, %v472
        %v1777 = vpop.permute.xlu0 %1776
        %1779 = vset.pattern.permute.xlu0 17
        %1780 = vperm.xlu0 %1779, %v473
        %v1781 = vpop.permute.xlu0 %1780
        %1783 = vset.pattern.permute.xlu0 17
        %1784 = vperm.xlu0 %1783, %v474
        %v1785 = vpop.permute.xlu0 %1784
        %1787 = vset.pattern.permute.xlu0 17
        %1788 = vperm.xlu0 %1787, %v475
        %v1789 = vpop.permute.xlu0 %1788
        %v1791 = vmul.f32 %v1771, %v1777
        %v1792 = vmul.f32 %v1767, %v1777
        %v1793 = vmul.f32 %v1772, %v1781
        %v1794 = vmul.f32 %v1768, %v1781
        %v1795 = vmul.f32 %v1773, %v1785
        %v1796 = vmul.f32 %v1769, %v1785
        %v1797 = vmul.f32 %v1774, %v1789
        %v1798 = vmul.f32 %v1770, %v1789
        %s1799 = scalar_lea.vmem %s5, 33
        %v1800 = vld [vmem:[%s1799] ss:$8 sm:$0x3]
        %v1802 = vlaneseq
        %v1803 = vshrl.u32 %v1802, 7
        %v1804 = vsub.s32 0, %v1803
        %v1805 = vrot.slane %v1800, %v1804
        %v1806 = vlaneseq
        %v1807 = vshrl.u32 %v1806, 7
        %v1808 = vsub.s32 1, %v1807
        %v1809 = vrot.slane %v1800, %v1808
        %v1812 = vmul.f32 %v1791, %v1805
        %v1813 = vmul.f32 %v1792, %v1809
        %v1814 = vmul.f32 %v1793, %v1805
        %v1815 = vmul.f32 %v1794, %v1809
        %v1816 = vmul.f32 %v1795, %v1805
        %v1817 = vmul.f32 %v1796, %v1809
        %v1818 = vmul.f32 %v1797, %v1805
        %v1819 = vmul.f32 %v1798, %v1809
        %v1820 = vadd.f32 %v1742, %v1812
        %v1821 = vadd.f32 %v1743, %v1813
        %v1822 = vadd.f32 %v1744, %v1814
        %v1823 = vadd.f32 %v1745, %v1815
        %v1824 = vadd.f32 %v1746, %v1816
        %v1825 = vadd.f32 %v1747, %v1817
        %v1826 = vadd.f32 %v1748, %v1818
        %v1827 = vadd.f32 %v1749, %v1819
        %1828 = vrot.lane.b32.xlu0 %v1594, 17
        %v1829 = vpop.permute.xlu0 %1828
        %1830 = vrot.lane.b32.xlu0 %v1596, 17
        %v1831 = vpop.permute.xlu0 %1830
        %1832 = vrot.lane.b32.xlu0 %v1598, 17
        %v1833 = vpop.permute.xlu0 %1832
        %1834 = vrot.lane.b32.xlu0 %v1600, 17
        %v1835 = vpop.permute.xlu0 %1834
        %1836 = vrot.lane.b32.xlu0 %v1595, 17
        %v1837 = vpop.permute.xlu0 %1836
        %1838 = vrot.lane.b32.xlu0 %v1597, 17
        %v1839 = vpop.permute.xlu0 %1838
        %1840 = vrot.lane.b32.xlu0 %v1599, 17
        %v1841 = vpop.permute.xlu0 %1840
        %1842 = vrot.lane.b32.xlu0 %v1601, 17
        %v1843 = vpop.permute.xlu0 %1842
        %v1844 = vsel %vm540, %v1829, %v1837
        %v1845 = vsel %vm540, %v1831, %v1839
        %v1846 = vsel %vm540, %v1833, %v1841
        %v1847 = vsel %vm540, %v1835, %v1843
        %v1848 = vsel %vm540, %v1837, %v1829
        %v1849 = vsel %vm540, %v1839, %v1831
        %v1850 = vsel %vm540, %v1841, %v1833
        %v1851 = vsel %vm540, %v1843, %v1835
        %1852 = vset.pattern.permute.xlu0 18
        %1853 = vperm.xlu0 %1852, %v472
        %v1854 = vpop.permute.xlu0 %1853
        %1856 = vset.pattern.permute.xlu0 18
        %1857 = vperm.xlu0 %1856, %v473
        %v1858 = vpop.permute.xlu0 %1857
        %1860 = vset.pattern.permute.xlu0 18
        %1861 = vperm.xlu0 %1860, %v474
        %v1862 = vpop.permute.xlu0 %1861
        %1864 = vset.pattern.permute.xlu0 18
        %1865 = vperm.xlu0 %1864, %v475
        %v1866 = vpop.permute.xlu0 %1865
        %v1868 = vmul.f32 %v1848, %v1854
        %v1869 = vmul.f32 %v1844, %v1854
        %v1870 = vmul.f32 %v1849, %v1858
        %v1871 = vmul.f32 %v1845, %v1858
        %v1872 = vmul.f32 %v1850, %v1862
        %v1873 = vmul.f32 %v1846, %v1862
        %v1874 = vmul.f32 %v1851, %v1866
        %v1875 = vmul.f32 %v1847, %v1866
        %s1876 = scalar_lea.vmem %s5, 34
        %v1877 = vld [vmem:[%s1876] ss:$8 sm:$0x3]
        %v1879 = vlaneseq
        %v1880 = vshrl.u32 %v1879, 7
        %v1881 = vsub.s32 0, %v1880
        %v1882 = vrot.slane %v1877, %v1881
        %v1883 = vlaneseq
        %v1884 = vshrl.u32 %v1883, 7
        %v1885 = vsub.s32 1, %v1884
        %v1886 = vrot.slane %v1877, %v1885
        %v1889 = vmul.f32 %v1868, %v1882
        %v1890 = vmul.f32 %v1869, %v1886
        %v1891 = vmul.f32 %v1870, %v1882
        %v1892 = vmul.f32 %v1871, %v1886
        %v1893 = vmul.f32 %v1872, %v1882
        %v1894 = vmul.f32 %v1873, %v1886
        %v1895 = vmul.f32 %v1874, %v1882
        %v1896 = vmul.f32 %v1875, %v1886
        %v1897 = vadd.f32 %v1820, %v1889
        %v1898 = vadd.f32 %v1821, %v1890
        %v1899 = vadd.f32 %v1822, %v1891
        %v1900 = vadd.f32 %v1823, %v1892
        %v1901 = vadd.f32 %v1824, %v1893
        %v1902 = vadd.f32 %v1825, %v1894
        %v1903 = vadd.f32 %v1826, %v1895
        %v1904 = vadd.f32 %v1827, %v1896
        %1905 = vrot.lane.b32.xlu0 %v1594, 16
        %v1906 = vpop.permute.xlu0 %1905
        %1907 = vrot.lane.b32.xlu0 %v1596, 16
        %v1908 = vpop.permute.xlu0 %1907
        %1909 = vrot.lane.b32.xlu0 %v1598, 16
        %v1910 = vpop.permute.xlu0 %1909
        %1911 = vrot.lane.b32.xlu0 %v1600, 16
        %v1912 = vpop.permute.xlu0 %1911
        %1913 = vrot.lane.b32.xlu0 %v1595, 16
        %v1914 = vpop.permute.xlu0 %1913
        %1915 = vrot.lane.b32.xlu0 %v1597, 16
        %v1916 = vpop.permute.xlu0 %1915
        %1917 = vrot.lane.b32.xlu0 %v1599, 16
        %v1918 = vpop.permute.xlu0 %1917
        %1919 = vrot.lane.b32.xlu0 %v1601, 16
        %v1920 = vpop.permute.xlu0 %1919
        %v1921 = vsel %vm618, %v1906, %v1914
        %v1922 = vsel %vm618, %v1908, %v1916
        %v1923 = vsel %vm618, %v1910, %v1918
        %v1924 = vsel %vm618, %v1912, %v1920
        %v1925 = vsel %vm618, %v1914, %v1906
        %v1926 = vsel %vm618, %v1916, %v1908
        %v1927 = vsel %vm618, %v1918, %v1910
        %v1928 = vsel %vm618, %v1920, %v1912
        %1929 = vset.pattern.permute.xlu0 19
        %1930 = vperm.xlu0 %1929, %v472
        %v1931 = vpop.permute.xlu0 %1930
        %1933 = vset.pattern.permute.xlu0 19
        %1934 = vperm.xlu0 %1933, %v473
        %v1935 = vpop.permute.xlu0 %1934
        %1937 = vset.pattern.permute.xlu0 19
        %1938 = vperm.xlu0 %1937, %v474
        %v1939 = vpop.permute.xlu0 %1938
        %1941 = vset.pattern.permute.xlu0 19
        %1942 = vperm.xlu0 %1941, %v475
        %v1943 = vpop.permute.xlu0 %1942
        %v1945 = vmul.f32 %v1925, %v1931
        %v1946 = vmul.f32 %v1921, %v1931
        %v1947 = vmul.f32 %v1926, %v1935
        %v1948 = vmul.f32 %v1922, %v1935
        %v1949 = vmul.f32 %v1927, %v1939
        %v1950 = vmul.f32 %v1923, %v1939
        %v1951 = vmul.f32 %v1928, %v1943
        %v1952 = vmul.f32 %v1924, %v1943
        %s1953 = scalar_lea.vmem %s5, 35
        %v1954 = vld [vmem:[%s1953] ss:$8 sm:$0x3]
        %v1956 = vlaneseq
        %v1957 = vshrl.u32 %v1956, 7
        %v1958 = vsub.s32 0, %v1957
        %v1959 = vrot.slane %v1954, %v1958
        %v1960 = vlaneseq
        %v1961 = vshrl.u32 %v1960, 7
        %v1962 = vsub.s32 1, %v1961
        %v1963 = vrot.slane %v1954, %v1962
        %v1966 = vmul.f32 %v1945, %v1959
        %v1967 = vmul.f32 %v1946, %v1963
        %v1968 = vmul.f32 %v1947, %v1959
        %v1969 = vmul.f32 %v1948, %v1963
        %v1970 = vmul.f32 %v1949, %v1959
        %v1971 = vmul.f32 %v1950, %v1963
        %v1972 = vmul.f32 %v1951, %v1959
        %v1973 = vmul.f32 %v1952, %v1963
        %v1974 = vadd.f32 %v1897, %v1966
        %v1975 = vadd.f32 %v1898, %v1967
        %v1976 = vadd.f32 %v1899, %v1968
        %v1977 = vadd.f32 %v1900, %v1969
        %v1978 = vadd.f32 %v1901, %v1970
        %v1979 = vadd.f32 %v1902, %v1971
        %v1980 = vadd.f32 %v1903, %v1972
        %v1981 = vadd.f32 %v1904, %v1973
        %1982 = vrot.lane.b32.xlu0 %v1594, 15
        %v1983 = vpop.permute.xlu0 %1982
        %1984 = vrot.lane.b32.xlu0 %v1596, 15
        %v1985 = vpop.permute.xlu0 %1984
        %1986 = vrot.lane.b32.xlu0 %v1598, 15
        %v1987 = vpop.permute.xlu0 %1986
        %1988 = vrot.lane.b32.xlu0 %v1600, 15
        %v1989 = vpop.permute.xlu0 %1988
        %1990 = vrot.lane.b32.xlu0 %v1595, 15
        %v1991 = vpop.permute.xlu0 %1990
        %1992 = vrot.lane.b32.xlu0 %v1597, 15
        %v1993 = vpop.permute.xlu0 %1992
        %1994 = vrot.lane.b32.xlu0 %v1599, 15
        %v1995 = vpop.permute.xlu0 %1994
        %1996 = vrot.lane.b32.xlu0 %v1601, 15
        %v1997 = vpop.permute.xlu0 %1996
        %v1998 = vsel %vm696, %v1983, %v1991
        %v1999 = vsel %vm696, %v1985, %v1993
        %v2000 = vsel %vm696, %v1987, %v1995
        %v2001 = vsel %vm696, %v1989, %v1997
        %v2002 = vsel %vm696, %v1991, %v1983
        %v2003 = vsel %vm696, %v1993, %v1985
        %v2004 = vsel %vm696, %v1995, %v1987
        %v2005 = vsel %vm696, %v1997, %v1989
        %2006 = vset.pattern.permute.xlu0 20
        %2007 = vperm.xlu0 %2006, %v472
        %v2008 = vpop.permute.xlu0 %2007
        %2010 = vset.pattern.permute.xlu0 20
        %2011 = vperm.xlu0 %2010, %v473
        %v2012 = vpop.permute.xlu0 %2011
        %2014 = vset.pattern.permute.xlu0 20
        %2015 = vperm.xlu0 %2014, %v474
        %v2016 = vpop.permute.xlu0 %2015
        %2018 = vset.pattern.permute.xlu0 20
        %2019 = vperm.xlu0 %2018, %v475
        %v2020 = vpop.permute.xlu0 %2019
        %v2022 = vmul.f32 %v2002, %v2008
        %v2023 = vmul.f32 %v1998, %v2008
        %v2024 = vmul.f32 %v2003, %v2012
        %v2025 = vmul.f32 %v1999, %v2012
        %v2026 = vmul.f32 %v2004, %v2016
        %v2027 = vmul.f32 %v2000, %v2016
        %v2028 = vmul.f32 %v2005, %v2020
        %v2029 = vmul.f32 %v2001, %v2020
        %s2030 = scalar_lea.vmem %s5, 36
        %v2031 = vld [vmem:[%s2030] ss:$8 sm:$0x3]
        %v2033 = vlaneseq
        %v2034 = vshrl.u32 %v2033, 7
        %v2035 = vsub.s32 0, %v2034
        %v2036 = vrot.slane %v2031, %v2035
        %v2037 = vlaneseq
        %v2038 = vshrl.u32 %v2037, 7
        %v2039 = vsub.s32 1, %v2038
        %v2040 = vrot.slane %v2031, %v2039
        %v2043 = vmul.f32 %v2022, %v2036
        %v2044 = vmul.f32 %v2023, %v2040
        %v2045 = vmul.f32 %v2024, %v2036
        %v2046 = vmul.f32 %v2025, %v2040
        %v2047 = vmul.f32 %v2026, %v2036
        %v2048 = vmul.f32 %v2027, %v2040
        %v2049 = vmul.f32 %v2028, %v2036
        %v2050 = vmul.f32 %v2029, %v2040
        %v2051 = vadd.f32 %v1974, %v2043
        %v2052 = vadd.f32 %v1975, %v2044
        %v2053 = vadd.f32 %v1976, %v2045
        %v2054 = vadd.f32 %v1977, %v2046
        %v2055 = vadd.f32 %v1978, %v2047
        %v2056 = vadd.f32 %v1979, %v2048
        %v2057 = vadd.f32 %v1980, %v2049
        %v2058 = vadd.f32 %v1981, %v2050
        %2059 = vrot.lane.b32.xlu0 %v1594, 1
        %v2060 = vpop.permute.xlu0 %2059
        %2061 = vrot.lane.b32.xlu0 %v1596, 1
        %v2062 = vpop.permute.xlu0 %2061
        %2063 = vrot.lane.b32.xlu0 %v1598, 1
        %v2064 = vpop.permute.xlu0 %2063
        %2065 = vrot.lane.b32.xlu0 %v1600, 1
        %v2066 = vpop.permute.xlu0 %2065
        %2067 = vrot.lane.b32.xlu0 %v1595, 1
        %v2068 = vpop.permute.xlu0 %2067
        %2069 = vrot.lane.b32.xlu0 %v1597, 1
        %v2070 = vpop.permute.xlu0 %2069
        %2071 = vrot.lane.b32.xlu0 %v1599, 1
        %v2072 = vpop.permute.xlu0 %2071
        %2073 = vrot.lane.b32.xlu0 %v1601, 1
        %v2074 = vpop.permute.xlu0 %2073
        %v2075 = vsel %vm930, %v2060, %v2068
        %v2076 = vsel %vm930, %v2062, %v2070
        %v2077 = vsel %vm930, %v2064, %v2072
        %v2078 = vsel %vm930, %v2066, %v2074
        %v2079 = vsel %vm930, %v2068, %v2060
        %v2080 = vsel %vm930, %v2070, %v2062
        %v2081 = vsel %vm930, %v2072, %v2064
        %v2082 = vsel %vm930, %v2074, %v2066
        %2083 = vset.pattern.permute.xlu0 21
        %2084 = vperm.xlu0 %2083, %v472
        %v2085 = vpop.permute.xlu0 %2084
        %2087 = vset.pattern.permute.xlu0 21
        %2088 = vperm.xlu0 %2087, %v473
        %v2089 = vpop.permute.xlu0 %2088
        %2091 = vset.pattern.permute.xlu0 21
        %2092 = vperm.xlu0 %2091, %v474
        %v2093 = vpop.permute.xlu0 %2092
        %2095 = vset.pattern.permute.xlu0 21
        %2096 = vperm.xlu0 %2095, %v475
        %v2097 = vpop.permute.xlu0 %2096
        %v2099 = vmul.f32 %v2079, %v2085
        %v2100 = vmul.f32 %v2075, %v2085
        %v2101 = vmul.f32 %v2080, %v2089
        %v2102 = vmul.f32 %v2076, %v2089
        %v2103 = vmul.f32 %v2081, %v2093
        %v2104 = vmul.f32 %v2077, %v2093
        %v2105 = vmul.f32 %v2082, %v2097
        %v2106 = vmul.f32 %v2078, %v2097
        %s2107 = scalar_lea.vmem %s5, 37
        %v2108 = vld [vmem:[%s2107] ss:$8 sm:$0x3]
        %v2110 = vlaneseq
        %v2111 = vshrl.u32 %v2110, 7
        %v2112 = vsub.s32 0, %v2111
        %v2113 = vrot.slane %v2108, %v2112
        %v2114 = vlaneseq
        %v2115 = vshrl.u32 %v2114, 7
        %v2116 = vsub.s32 1, %v2115
        %v2117 = vrot.slane %v2108, %v2116
        %v2120 = vmul.f32 %v2099, %v2113
        %v2121 = vmul.f32 %v2100, %v2117
        %v2122 = vmul.f32 %v2101, %v2113
        %v2123 = vmul.f32 %v2102, %v2117
        %v2124 = vmul.f32 %v2103, %v2113
        %v2125 = vmul.f32 %v2104, %v2117
        %v2126 = vmul.f32 %v2105, %v2113
        %v2127 = vmul.f32 %v2106, %v2117
        %v2128 = vadd.f32 %v2051, %v2120
        %v2129 = vadd.f32 %v2052, %v2121
        %v2130 = vadd.f32 %v2053, %v2122
        %v2131 = vadd.f32 %v2054, %v2123
        %v2132 = vadd.f32 %v2055, %v2124
        %v2133 = vadd.f32 %v2056, %v2125
        %v2134 = vadd.f32 %v2057, %v2126
        %v2135 = vadd.f32 %v2058, %v2127
        %2136 = vset.pattern.permute.xlu0 22
        %2137 = vperm.xlu0 %2136, %v472
        %v2138 = vpop.permute.xlu0 %2137
        %2140 = vset.pattern.permute.xlu0 22
        %2141 = vperm.xlu0 %2140, %v473
        %v2142 = vpop.permute.xlu0 %2141
        %2144 = vset.pattern.permute.xlu0 22
        %2145 = vperm.xlu0 %2144, %v474
        %v2146 = vpop.permute.xlu0 %2145
        %2148 = vset.pattern.permute.xlu0 22
        %2149 = vperm.xlu0 %2148, %v475
        %v2150 = vpop.permute.xlu0 %2149
        %v2152 = vmul.f32 %v1594, %v2138
        %v2153 = vmul.f32 %v1595, %v2138
        %v2154 = vmul.f32 %v1596, %v2142
        %v2155 = vmul.f32 %v1597, %v2142
        %v2156 = vmul.f32 %v1598, %v2146
        %v2157 = vmul.f32 %v1599, %v2146
        %v2158 = vmul.f32 %v1600, %v2150
        %v2159 = vmul.f32 %v1601, %v2150
        %v2160 = vadd.f32 %v2128, %v2152
        %v2161 = vadd.f32 %v2129, %v2153
        %v2162 = vadd.f32 %v2130, %v2154
        %v2163 = vadd.f32 %v2131, %v2155
        %v2164 = vadd.f32 %v2132, %v2156
        %v2165 = vadd.f32 %v2133, %v2157
        %v2166 = vadd.f32 %v2134, %v2158
        %v2167 = vadd.f32 %v2135, %v2159
        %2168 = vrot.lane.b32.xlu0 %v1594, 127
        %v2169 = vpop.permute.xlu0 %2168
        %2170 = vrot.lane.b32.xlu0 %v1596, 127
        %v2171 = vpop.permute.xlu0 %2170
        %2172 = vrot.lane.b32.xlu0 %v1598, 127
        %v2173 = vpop.permute.xlu0 %2172
        %2174 = vrot.lane.b32.xlu0 %v1600, 127
        %v2175 = vpop.permute.xlu0 %2174
        %2176 = vrot.lane.b32.xlu0 %v1595, 127
        %v2177 = vpop.permute.xlu0 %2176
        %2178 = vrot.lane.b32.xlu0 %v1597, 127
        %v2179 = vpop.permute.xlu0 %2178
        %2180 = vrot.lane.b32.xlu0 %v1599, 127
        %v2181 = vpop.permute.xlu0 %2180
        %2182 = vrot.lane.b32.xlu0 %v1601, 127
        %v2183 = vpop.permute.xlu0 %2182
        %v2184 = vsel %vm1040, %v2169, %v2177
        %v2185 = vsel %vm1040, %v2171, %v2179
        %v2186 = vsel %vm1040, %v2173, %v2181
        %v2187 = vsel %vm1040, %v2175, %v2183
        %v2188 = vsel %vm1040, %v2177, %v2169
        %v2189 = vsel %vm1040, %v2179, %v2171
        %v2190 = vsel %vm1040, %v2181, %v2173
        %v2191 = vsel %vm1040, %v2183, %v2175
        %2192 = vset.pattern.permute.xlu0 23
        %2193 = vperm.xlu0 %2192, %v472
        %v2194 = vpop.permute.xlu0 %2193
        %2196 = vset.pattern.permute.xlu0 23
        %2197 = vperm.xlu0 %2196, %v473
        %v2198 = vpop.permute.xlu0 %2197
        %2200 = vset.pattern.permute.xlu0 23
        %2201 = vperm.xlu0 %2200, %v474
        %v2202 = vpop.permute.xlu0 %2201
        %2204 = vset.pattern.permute.xlu0 23
        %2205 = vperm.xlu0 %2204, %v475
        %v2206 = vpop.permute.xlu0 %2205
        %v2208 = vmul.f32 %v2184, %v2194
        %v2209 = vmul.f32 %v2188, %v2194
        %v2210 = vmul.f32 %v2185, %v2198
        %v2211 = vmul.f32 %v2189, %v2198
        %v2212 = vmul.f32 %v2186, %v2202
        %v2213 = vmul.f32 %v2190, %v2202
        %v2214 = vmul.f32 %v2187, %v2206
        %v2215 = vmul.f32 %v2191, %v2206
        %s2216 = scalar_lea.vmem %s5, 39
        %v2217 = vld [vmem:[%s2216] ss:$8 sm:$0x3]
        %v2219 = vlaneseq
        %v2220 = vshrl.u32 %v2219, 7
        %v2221 = vsub.s32 0, %v2220
        %v2222 = vrot.slane %v2217, %v2221
        %v2223 = vlaneseq
        %v2224 = vshrl.u32 %v2223, 7
        %v2225 = vsub.s32 1, %v2224
        %v2226 = vrot.slane %v2217, %v2225
        %v2229 = vmul.f32 %v2208, %v2222
        %v2230 = vmul.f32 %v2209, %v2226
        %v2231 = vmul.f32 %v2210, %v2222
        %v2232 = vmul.f32 %v2211, %v2226
        %v2233 = vmul.f32 %v2212, %v2222
        %v2234 = vmul.f32 %v2213, %v2226
        %v2235 = vmul.f32 %v2214, %v2222
        %v2236 = vmul.f32 %v2215, %v2226
        %v2237 = vadd.f32 %v2160, %v2229
        %v2238 = vadd.f32 %v2161, %v2230
        %v2239 = vadd.f32 %v2162, %v2231
        %v2240 = vadd.f32 %v2163, %v2232
        %v2241 = vadd.f32 %v2164, %v2233
        %v2242 = vadd.f32 %v2165, %v2234
        %v2243 = vadd.f32 %v2166, %v2235
        %v2244 = vadd.f32 %v2167, %v2236
        %2245 = vrot.lane.b32.xlu0 %v1594, 113
        %v2246 = vpop.permute.xlu0 %2245
        %2247 = vrot.lane.b32.xlu0 %v1596, 113
        %v2248 = vpop.permute.xlu0 %2247
        %2249 = vrot.lane.b32.xlu0 %v1598, 113
        %v2250 = vpop.permute.xlu0 %2249
        %2251 = vrot.lane.b32.xlu0 %v1600, 113
        %v2252 = vpop.permute.xlu0 %2251
        %2253 = vrot.lane.b32.xlu0 %v1595, 113
        %v2254 = vpop.permute.xlu0 %2253
        %2255 = vrot.lane.b32.xlu0 %v1597, 113
        %v2256 = vpop.permute.xlu0 %2255
        %2257 = vrot.lane.b32.xlu0 %v1599, 113
        %v2258 = vpop.permute.xlu0 %2257
        %2259 = vrot.lane.b32.xlu0 %v1601, 113
        %v2260 = vpop.permute.xlu0 %2259
        %v2261 = vsel %vm1274, %v2246, %v2254
        %v2262 = vsel %vm1274, %v2248, %v2256
        %v2263 = vsel %vm1274, %v2250, %v2258
        %v2264 = vsel %vm1274, %v2252, %v2260
        %v2265 = vsel %vm1274, %v2254, %v2246
        %v2266 = vsel %vm1274, %v2256, %v2248
        %v2267 = vsel %vm1274, %v2258, %v2250
        %v2268 = vsel %vm1274, %v2260, %v2252
        %2269 = vset.pattern.permute.xlu0 24
        %2270 = vperm.xlu0 %2269, %v472
        %v2271 = vpop.permute.xlu0 %2270
        %2273 = vset.pattern.permute.xlu0 24
        %2274 = vperm.xlu0 %2273, %v473
        %v2275 = vpop.permute.xlu0 %2274
        %2277 = vset.pattern.permute.xlu0 24
        %2278 = vperm.xlu0 %2277, %v474
        %v2279 = vpop.permute.xlu0 %2278
        %2281 = vset.pattern.permute.xlu0 24
        %2282 = vperm.xlu0 %2281, %v475
        %v2283 = vpop.permute.xlu0 %2282
        %v2285 = vmul.f32 %v2261, %v2271
        %v2286 = vmul.f32 %v2265, %v2271
        %v2287 = vmul.f32 %v2262, %v2275
        %v2288 = vmul.f32 %v2266, %v2275
        %v2289 = vmul.f32 %v2263, %v2279
        %v2290 = vmul.f32 %v2267, %v2279
        %v2291 = vmul.f32 %v2264, %v2283
        %v2292 = vmul.f32 %v2268, %v2283
        %s2293 = scalar_lea.vmem %s5, 48
        %v2294 = vld [vmem:[%s2293] ss:$8 sm:$0x3]
        %v2296 = vlaneseq
        %v2297 = vshrl.u32 %v2296, 7
        %v2298 = vsub.s32 0, %v2297
        %v2299 = vrot.slane %v2294, %v2298
        %v2300 = vlaneseq
        %v2301 = vshrl.u32 %v2300, 7
        %v2302 = vsub.s32 1, %v2301
        %v2303 = vrot.slane %v2294, %v2302
        %v2306 = vmul.f32 %v2285, %v2299
        %v2307 = vmul.f32 %v2286, %v2303
        %v2308 = vmul.f32 %v2287, %v2299
        %v2309 = vmul.f32 %v2288, %v2303
        %v2310 = vmul.f32 %v2289, %v2299
        %v2311 = vmul.f32 %v2290, %v2303
        %v2312 = vmul.f32 %v2291, %v2299
        %v2313 = vmul.f32 %v2292, %v2303
        %v2314 = vadd.f32 %v2237, %v2306
        %v2315 = vadd.f32 %v2238, %v2307
        %v2316 = vadd.f32 %v2239, %v2308
        %v2317 = vadd.f32 %v2240, %v2309
        %v2318 = vadd.f32 %v2241, %v2310
        %v2319 = vadd.f32 %v2242, %v2311
        %v2320 = vadd.f32 %v2243, %v2312
        %v2321 = vadd.f32 %v2244, %v2313
        %2322 = vrot.lane.b32.xlu0 %v1594, 112
        %v2323 = vpop.permute.xlu0 %2322
        %2324 = vrot.lane.b32.xlu0 %v1596, 112
        %v2325 = vpop.permute.xlu0 %2324
        %2326 = vrot.lane.b32.xlu0 %v1598, 112
        %v2327 = vpop.permute.xlu0 %2326
        %2328 = vrot.lane.b32.xlu0 %v1600, 112
        %v2329 = vpop.permute.xlu0 %2328
        %2330 = vrot.lane.b32.xlu0 %v1595, 112
        %v2331 = vpop.permute.xlu0 %2330
        %2332 = vrot.lane.b32.xlu0 %v1597, 112
        %v2333 = vpop.permute.xlu0 %2332
        %2334 = vrot.lane.b32.xlu0 %v1599, 112
        %v2335 = vpop.permute.xlu0 %2334
        %2336 = vrot.lane.b32.xlu0 %v1601, 112
        %v2337 = vpop.permute.xlu0 %2336
        %v2338 = vsel %vm1352, %v2323, %v2331
        %v2339 = vsel %vm1352, %v2325, %v2333
        %v2340 = vsel %vm1352, %v2327, %v2335
        %v2341 = vsel %vm1352, %v2329, %v2337
        %v2342 = vsel %vm1352, %v2331, %v2323
        %v2343 = vsel %vm1352, %v2333, %v2325
        %v2344 = vsel %vm1352, %v2335, %v2327
        %v2345 = vsel %vm1352, %v2337, %v2329
        %2346 = vset.pattern.permute.xlu0 25
        %2347 = vperm.xlu0 %2346, %v472
        %v2348 = vpop.permute.xlu0 %2347
        %2350 = vset.pattern.permute.xlu0 25
        %2351 = vperm.xlu0 %2350, %v473
        %v2352 = vpop.permute.xlu0 %2351
        %2354 = vset.pattern.permute.xlu0 25
        %2355 = vperm.xlu0 %2354, %v474
        %v2356 = vpop.permute.xlu0 %2355
        %2358 = vset.pattern.permute.xlu0 25
        %2359 = vperm.xlu0 %2358, %v475
        %v2360 = vpop.permute.xlu0 %2359
        %v2362 = vmul.f32 %v2338, %v2348
        %v2363 = vmul.f32 %v2342, %v2348
        %v2364 = vmul.f32 %v2339, %v2352
        %v2365 = vmul.f32 %v2343, %v2352
        %v2366 = vmul.f32 %v2340, %v2356
        %v2367 = vmul.f32 %v2344, %v2356
        %v2368 = vmul.f32 %v2341, %v2360
        %v2369 = vmul.f32 %v2345, %v2360
        %s2370 = scalar_lea.vmem %s5, 49
        %v2371 = vld [vmem:[%s2370] ss:$8 sm:$0x3]
        %v2373 = vlaneseq
        %v2374 = vshrl.u32 %v2373, 7
        %v2375 = vsub.s32 0, %v2374
        %v2376 = vrot.slane %v2371, %v2375
        %v2377 = vlaneseq
        %v2378 = vshrl.u32 %v2377, 7
        %v2379 = vsub.s32 1, %v2378
        %v2380 = vrot.slane %v2371, %v2379
        %v2383 = vmul.f32 %v2362, %v2376
        %v2384 = vmul.f32 %v2363, %v2380
        %v2385 = vmul.f32 %v2364, %v2376
        %v2386 = vmul.f32 %v2365, %v2380
        %v2387 = vmul.f32 %v2366, %v2376
        %v2388 = vmul.f32 %v2367, %v2380
        %v2389 = vmul.f32 %v2368, %v2376
        %v2390 = vmul.f32 %v2369, %v2380
        %v2391 = vadd.f32 %v2314, %v2383
        %v2392 = vadd.f32 %v2315, %v2384
        %v2393 = vadd.f32 %v2316, %v2385
        %v2394 = vadd.f32 %v2317, %v2386
        %v2395 = vadd.f32 %v2318, %v2387
        %v2396 = vadd.f32 %v2319, %v2388
        %v2397 = vadd.f32 %v2320, %v2389
        %v2398 = vadd.f32 %v2321, %v2390
        %2399 = vrot.lane.b32.xlu0 %v1594, 111
        %v2400 = vpop.permute.xlu0 %2399
        %2401 = vrot.lane.b32.xlu0 %v1596, 111
        %v2402 = vpop.permute.xlu0 %2401
        %2403 = vrot.lane.b32.xlu0 %v1598, 111
        %v2404 = vpop.permute.xlu0 %2403
        %2405 = vrot.lane.b32.xlu0 %v1600, 111
        %v2406 = vpop.permute.xlu0 %2405
        %2407 = vrot.lane.b32.xlu0 %v1595, 111
        %v2408 = vpop.permute.xlu0 %2407
        %2409 = vrot.lane.b32.xlu0 %v1597, 111
        %v2410 = vpop.permute.xlu0 %2409
        %2411 = vrot.lane.b32.xlu0 %v1599, 111
        %v2412 = vpop.permute.xlu0 %2411
        %2413 = vrot.lane.b32.xlu0 %v1601, 111
        %v2414 = vpop.permute.xlu0 %2413
        %v2415 = vsel %vm1430, %v2400, %v2408
        %v2416 = vsel %vm1430, %v2402, %v2410
        %v2417 = vsel %vm1430, %v2404, %v2412
        %v2418 = vsel %vm1430, %v2406, %v2414
        %v2419 = vsel %vm1430, %v2408, %v2400
        %v2420 = vsel %vm1430, %v2410, %v2402
        %v2421 = vsel %vm1430, %v2412, %v2404
        %v2422 = vsel %vm1430, %v2414, %v2406
        %2423 = vset.pattern.permute.xlu0 26
        %2424 = vperm.xlu0 %2423, %v472
        %v2425 = vpop.permute.xlu0 %2424
        %2427 = vset.pattern.permute.xlu0 26
        %2428 = vperm.xlu0 %2427, %v473
        %v2429 = vpop.permute.xlu0 %2428
        %2431 = vset.pattern.permute.xlu0 26
        %2432 = vperm.xlu0 %2431, %v474
        %v2433 = vpop.permute.xlu0 %2432
        %2435 = vset.pattern.permute.xlu0 26
        %2436 = vperm.xlu0 %2435, %v475
        %v2437 = vpop.permute.xlu0 %2436
        %v2439 = vmul.f32 %v2415, %v2425
        %v2440 = vmul.f32 %v2419, %v2425
        %v2441 = vmul.f32 %v2416, %v2429
        %v2442 = vmul.f32 %v2420, %v2429
        %v2443 = vmul.f32 %v2417, %v2433
        %v2444 = vmul.f32 %v2421, %v2433
        %v2445 = vmul.f32 %v2418, %v2437
        %v2446 = vmul.f32 %v2422, %v2437
        %s2447 = scalar_lea.vmem %s5, 50
        %v2448 = vld [vmem:[%s2447] ss:$8 sm:$0x3]
        %v2450 = vlaneseq
        %v2451 = vshrl.u32 %v2450, 7
        %v2452 = vsub.s32 0, %v2451
        %v2453 = vrot.slane %v2448, %v2452
        %v2454 = vlaneseq
        %v2455 = vshrl.u32 %v2454, 7
        %v2456 = vsub.s32 1, %v2455
        %v2457 = vrot.slane %v2448, %v2456
        %v2460 = vmul.f32 %v2439, %v2453
        %v2461 = vmul.f32 %v2440, %v2457
        %v2462 = vmul.f32 %v2441, %v2453
        %v2463 = vmul.f32 %v2442, %v2457
        %v2464 = vmul.f32 %v2443, %v2453
        %v2465 = vmul.f32 %v2444, %v2457
        %v2466 = vmul.f32 %v2445, %v2453
        %v2467 = vmul.f32 %v2446, %v2457
        %v2468 = vadd.f32 %v2391, %v2460
        %v2469 = vadd.f32 %v2392, %v2461
        %v2470 = vadd.f32 %v2393, %v2462
        %v2471 = vadd.f32 %v2394, %v2463
        %v2472 = vadd.f32 %v2395, %v2464
        %v2473 = vadd.f32 %v2396, %v2465
        %v2474 = vadd.f32 %v2397, %v2466
        %v2475 = vadd.f32 %v2398, %v2467
        %2476 = vrot.lane.b32.xlu0 %v1594, 97
        %v2477 = vpop.permute.xlu0 %2476
        %2478 = vrot.lane.b32.xlu0 %v1596, 97
        %v2479 = vpop.permute.xlu0 %2478
        %2480 = vrot.lane.b32.xlu0 %v1598, 97
        %v2481 = vpop.permute.xlu0 %2480
        %2482 = vrot.lane.b32.xlu0 %v1600, 97
        %v2483 = vpop.permute.xlu0 %2482
        %2484 = vrot.lane.b32.xlu0 %v1595, 97
        %v2485 = vpop.permute.xlu0 %2484
        %2486 = vrot.lane.b32.xlu0 %v1597, 97
        %v2487 = vpop.permute.xlu0 %2486
        %2488 = vrot.lane.b32.xlu0 %v1599, 97
        %v2489 = vpop.permute.xlu0 %2488
        %2490 = vrot.lane.b32.xlu0 %v1601, 97
        %v2491 = vpop.permute.xlu0 %2490
        %vm2492 = vcmp.lt.s32.totalorder %v462, 97
        %v2493 = vsel %vm2492, %v2477, %v2485
        %v2494 = vsel %vm2492, %v2479, %v2487
        %v2495 = vsel %vm2492, %v2481, %v2489
        %v2496 = vsel %vm2492, %v2483, %v2491
        %v2497 = vsel %vm2492, %v2485, %v2477
        %v2498 = vsel %vm2492, %v2487, %v2479
        %v2499 = vsel %vm2492, %v2489, %v2481
        %v2500 = vsel %vm2492, %v2491, %v2483
        %2501 = vset.pattern.permute.xlu0 27
        %2502 = vperm.xlu0 %2501, %v472
        %v2503 = vpop.permute.xlu0 %2502
        %2505 = vset.pattern.permute.xlu0 27
        %2506 = vperm.xlu0 %2505, %v473
        %v2507 = vpop.permute.xlu0 %2506
        %2509 = vset.pattern.permute.xlu0 27
        %2510 = vperm.xlu0 %2509, %v474
        %v2511 = vpop.permute.xlu0 %2510
        %2513 = vset.pattern.permute.xlu0 27
        %2514 = vperm.xlu0 %2513, %v475
        %v2515 = vpop.permute.xlu0 %2514
        %v2517 = vmul.f32 %v2493, %v2503
        %v2518 = vmul.f32 %v2497, %v2503
        %v2519 = vmul.f32 %v2494, %v2507
        %v2520 = vmul.f32 %v2498, %v2507
        %v2521 = vmul.f32 %v2495, %v2511
        %v2522 = vmul.f32 %v2499, %v2511
        %v2523 = vmul.f32 %v2496, %v2515
        %v2524 = vmul.f32 %v2500, %v2515
        %s2525 = scalar_lea.vmem %s5, 51
        %v2526 = vld [vmem:[%s2525] ss:$8 sm:$0x3]
        %v2528 = vlaneseq
        %v2529 = vshrl.u32 %v2528, 7
        %v2530 = vsub.s32 0, %v2529
        %v2531 = vrot.slane %v2526, %v2530
        %v2532 = vlaneseq
        %v2533 = vshrl.u32 %v2532, 7
        %v2534 = vsub.s32 1, %v2533
        %v2535 = vrot.slane %v2526, %v2534
        %v2538 = vmul.f32 %v2517, %v2531
        %v2539 = vmul.f32 %v2518, %v2535
        %v2540 = vmul.f32 %v2519, %v2531
        %v2541 = vmul.f32 %v2520, %v2535
        %v2542 = vmul.f32 %v2521, %v2531
        %v2543 = vmul.f32 %v2522, %v2535
        %v2544 = vmul.f32 %v2523, %v2531
        %v2545 = vmul.f32 %v2524, %v2535
        %v2546 = vadd.f32 %v2468, %v2538
        %v2547 = vadd.f32 %v2469, %v2539
        %v2548 = vadd.f32 %v2470, %v2540
        %v2549 = vadd.f32 %v2471, %v2541
        %v2550 = vadd.f32 %v2472, %v2542
        %v2551 = vadd.f32 %v2473, %v2543
        %v2552 = vadd.f32 %v2474, %v2544
        %v2553 = vadd.f32 %v2475, %v2545
        %2554 = vrot.lane.b32.xlu0 %v1594, 96
        %v2555 = vpop.permute.xlu0 %2554
        %2556 = vrot.lane.b32.xlu0 %v1596, 96
        %v2557 = vpop.permute.xlu0 %2556
        %2558 = vrot.lane.b32.xlu0 %v1598, 96
        %v2559 = vpop.permute.xlu0 %2558
        %2560 = vrot.lane.b32.xlu0 %v1600, 96
        %v2561 = vpop.permute.xlu0 %2560
        %2562 = vrot.lane.b32.xlu0 %v1595, 96
        %v2563 = vpop.permute.xlu0 %2562
        %2564 = vrot.lane.b32.xlu0 %v1597, 96
        %v2565 = vpop.permute.xlu0 %2564
        %2566 = vrot.lane.b32.xlu0 %v1599, 96
        %v2567 = vpop.permute.xlu0 %2566
        %2568 = vrot.lane.b32.xlu0 %v1601, 96
        %v2569 = vpop.permute.xlu0 %2568
        %vm2570 = vcmp.lt.s32.totalorder %v462, 96
        %v2571 = vsel %vm2570, %v2555, %v2563
        %v2572 = vsel %vm2570, %v2557, %v2565
        %v2573 = vsel %vm2570, %v2559, %v2567
        %v2574 = vsel %vm2570, %v2561, %v2569
        %v2575 = vsel %vm2570, %v2563, %v2555
        %v2576 = vsel %vm2570, %v2565, %v2557
        %v2577 = vsel %vm2570, %v2567, %v2559
        %v2578 = vsel %vm2570, %v2569, %v2561
        %2579 = vset.pattern.permute.xlu0 28
        %2580 = vperm.xlu0 %2579, %v472
        %v2581 = vpop.permute.xlu0 %2580
        %2583 = vset.pattern.permute.xlu0 28
        %2584 = vperm.xlu0 %2583, %v473
        %v2585 = vpop.permute.xlu0 %2584
        %2587 = vset.pattern.permute.xlu0 28
        %2588 = vperm.xlu0 %2587, %v474
        %v2589 = vpop.permute.xlu0 %2588
        %2591 = vset.pattern.permute.xlu0 28
        %2592 = vperm.xlu0 %2591, %v475
        %v2593 = vpop.permute.xlu0 %2592
        %v2595 = vmul.f32 %v2571, %v2581
        %v2596 = vmul.f32 %v2575, %v2581
        %v2597 = vmul.f32 %v2572, %v2585
        %v2598 = vmul.f32 %v2576, %v2585
        %v2599 = vmul.f32 %v2573, %v2589
        %v2600 = vmul.f32 %v2577, %v2589
        %v2601 = vmul.f32 %v2574, %v2593
        %v2602 = vmul.f32 %v2578, %v2593
        %s2603 = scalar_lea.vmem %s5, 52
        %v2604 = vld [vmem:[%s2603] ss:$8 sm:$0x3]
        %v2606 = vlaneseq
        %v2607 = vshrl.u32 %v2606, 7
        %v2608 = vsub.s32 0, %v2607
        %v2609 = vrot.slane %v2604, %v2608
        %v2610 = vlaneseq
        %v2611 = vshrl.u32 %v2610, 7
        %v2612 = vsub.s32 1, %v2611
        %v2613 = vrot.slane %v2604, %v2612
        %v2616 = vmul.f32 %v2595, %v2609
        %v2617 = vmul.f32 %v2596, %v2613
        %v2618 = vmul.f32 %v2597, %v2609
        %v2619 = vmul.f32 %v2598, %v2613
        %v2620 = vmul.f32 %v2599, %v2609
        %v2621 = vmul.f32 %v2600, %v2613
        %v2622 = vmul.f32 %v2601, %v2609
        %v2623 = vmul.f32 %v2602, %v2613
        %v2624 = vadd.f32 %v2546, %v2616
        %v2625 = vadd.f32 %v2547, %v2617
        %v2626 = vadd.f32 %v2548, %v2618
        %v2627 = vadd.f32 %v2549, %v2619
        %v2628 = vadd.f32 %v2550, %v2620
        %v2629 = vadd.f32 %v2551, %v2621
        %v2630 = vadd.f32 %v2552, %v2622
        %v2631 = vadd.f32 %v2553, %v2623
        %2632 = vrot.lane.b32.xlu0 %v1594, 95
        %v2633 = vpop.permute.xlu0 %2632
        %2634 = vrot.lane.b32.xlu0 %v1596, 95
        %v2635 = vpop.permute.xlu0 %2634
        %2636 = vrot.lane.b32.xlu0 %v1598, 95
        %v2637 = vpop.permute.xlu0 %2636
        %2638 = vrot.lane.b32.xlu0 %v1600, 95
        %v2639 = vpop.permute.xlu0 %2638
        %2640 = vrot.lane.b32.xlu0 %v1595, 95
        %v2641 = vpop.permute.xlu0 %2640
        %2642 = vrot.lane.b32.xlu0 %v1597, 95
        %v2643 = vpop.permute.xlu0 %2642
        %2644 = vrot.lane.b32.xlu0 %v1599, 95
        %v2645 = vpop.permute.xlu0 %2644
        %2646 = vrot.lane.b32.xlu0 %v1601, 95
        %v2647 = vpop.permute.xlu0 %2646
        %vm2648 = vcmp.lt.s32.totalorder %v462, 95
        %v2649 = vsel %vm2648, %v2633, %v2641
        %v2650 = vsel %vm2648, %v2635, %v2643
        %v2651 = vsel %vm2648, %v2637, %v2645
        %v2652 = vsel %vm2648, %v2639, %v2647
        %v2653 = vsel %vm2648, %v2641, %v2633
        %v2654 = vsel %vm2648, %v2643, %v2635
        %v2655 = vsel %vm2648, %v2645, %v2637
        %v2656 = vsel %vm2648, %v2647, %v2639
        %2657 = vset.pattern.permute.xlu0 29
        %2658 = vperm.xlu0 %2657, %v472
        %v2659 = vpop.permute.xlu0 %2658
        %2661 = vset.pattern.permute.xlu0 29
        %2662 = vperm.xlu0 %2661, %v473
        %v2663 = vpop.permute.xlu0 %2662
        %2665 = vset.pattern.permute.xlu0 29
        %2666 = vperm.xlu0 %2665, %v474
        %v2667 = vpop.permute.xlu0 %2666
        %2669 = vset.pattern.permute.xlu0 29
        %2670 = vperm.xlu0 %2669, %v475
        %v2671 = vpop.permute.xlu0 %2670
        %v2673 = vmul.f32 %v2649, %v2659
        %v2674 = vmul.f32 %v2653, %v2659
        %v2675 = vmul.f32 %v2650, %v2663
        %v2676 = vmul.f32 %v2654, %v2663
        %v2677 = vmul.f32 %v2651, %v2667
        %v2678 = vmul.f32 %v2655, %v2667
        %v2679 = vmul.f32 %v2652, %v2671
        %v2680 = vmul.f32 %v2656, %v2671
        %s2681 = scalar_lea.vmem %s5, 53
        %v2682 = vld [vmem:[%s2681] ss:$8 sm:$0x3]
        %v2684 = vlaneseq
        %v2685 = vshrl.u32 %v2684, 7
        %v2686 = vsub.s32 0, %v2685
        %v2687 = vrot.slane %v2682, %v2686
        %v2688 = vlaneseq
        %v2689 = vshrl.u32 %v2688, 7
        %v2690 = vsub.s32 1, %v2689
        %v2691 = vrot.slane %v2682, %v2690
        %v2694 = vmul.f32 %v2673, %v2687
        %v2695 = vmul.f32 %v2674, %v2691
        %v2696 = vmul.f32 %v2675, %v2687
        %v2697 = vmul.f32 %v2676, %v2691
        %v2698 = vmul.f32 %v2677, %v2687
        %v2699 = vmul.f32 %v2678, %v2691
        %v2700 = vmul.f32 %v2679, %v2687
        %v2701 = vmul.f32 %v2680, %v2691
        %v2702 = vadd.f32 %v2624, %v2694
        %v2703 = vadd.f32 %v2625, %v2695
        %v2704 = vadd.f32 %v2626, %v2696
        %v2705 = vadd.f32 %v2627, %v2697
        %v2706 = vadd.f32 %v2628, %v2698
        %v2707 = vadd.f32 %v2629, %v2699
        %v2708 = vadd.f32 %v2630, %v2700
        %v2709 = vadd.f32 %v2631, %v2701
        %2710 = vset.pattern.permute.xlu0 1
        %2711 = vperm.xlu0 %2710, %v1570
        %v2712 = vpop.permute.xlu0 %2711
        %2714 = vset.pattern.permute.xlu0 1
        %2715 = vperm.xlu0 %2714, %v1571
        %v2716 = vpop.permute.xlu0 %2715
        %2718 = vset.pattern.permute.xlu0 1
        %2719 = vperm.xlu0 %2718, %v1572
        %v2720 = vpop.permute.xlu0 %2719
        %2722 = vset.pattern.permute.xlu0 1
        %2723 = vperm.xlu0 %2722, %v1573
        %v2724 = vpop.permute.xlu0 %2723
        %v2726 = vadd.f32 %v2702, %v2712
        %v2727 = vadd.f32 %v2703, %v2712
        %v2728 = vadd.f32 %v2704, %v2716
        %v2729 = vadd.f32 %v2705, %v2716
        %v2730 = vadd.f32 %v2706, %v2720
        %v2731 = vadd.f32 %v2707, %v2720
        %v2732 = vadd.f32 %v2708, %v2724
        %v2733 = vadd.f32 %v2709, %v2724
        %v2734 = vmul.f32 %v2726, %v2730
        %v2735 = vmul.f32 %v2727, %v2731
        %v2736 = vmul.f32 %v2728, %v2732
        %v2737 = vmul.f32 %v2729, %v2733
        %v2738 = vld [vmem:[%s6] sm:$0xf]
        %v2739 = vld [vmem:[%s7] sm:$0xf]
        %2741 = vset.pattern.permute.xlu0 0
        %2742 = vperm.xlu0 %2741, %v2739
        %v2743 = vpop.permute.xlu0 %2742
        %vm2745 = vcmask 130048
        %v2747 = vsel %vm2745, %v2738, 0
        %2749 = vmatprep.subr.mxu0 %v2735
        %2750 = vmatpush1.msra.mxu0 %v2734
        %2751 = vmatprep.subr.mxu0 %v2737
        %2752 = vmatpush1.msra.mxu0 %v2736
        %2753 = vmatprep.subr.mxu0 0.0
        %2754 = vmatpush1.msra.mxu0 0.0
        %2755 = vmatprep.subr.mxu0 0.0
        %2756 = vmatpush1.msra.mxu0 0.0
        %2757 = vmatprep.subr.mxu0 0.0
        %2758 = vmatpush1.msra.mxu0 0.0
        %2759 = vmatprep.subr.mxu0 0.0
        %2760 = vmatpush1.msra.mxu0 0.0
        %2761 = vmatprep.subr.mxu0 0.0
        %2762 = vmatpush1.msra.mxu0 0.0
        %2763 = vmatprep.subr.mxu0 0.0
        %2764 = vmatpush1.msra.mxu0 0.0
        %2765 = vmatprep.subr.mxu0 0.0
        %2766 = vmatpush1.msra.mxu0 0.0
        %2767 = vmatprep.subr.mxu0 0.0
        %2768 = vmatpush1.msra.mxu0 0.0
        %2769 = vmatprep.subr.mxu0 0.0
        %2770 = vmatpush1.msra.mxu0 0.0
        %2771 = vmatprep.subr.mxu0 0.0
        %2772 = vmatpush1.msra.mxu0 0.0
        %2773 = vmatprep.subr.mxu0 0.0
        %2774 = vmatpush1.msra.mxu0 0.0
        %2775 = vmatprep.subr.mxu0 0.0
        %2776 = vmatpush1.msra.mxu0 0.0
        %2777 = vmatprep.subr.mxu0 0.0
        %2778 = vmatpush1.msra.mxu0 0.0
        %2779 = vmatprep.subr.mxu0 0.0
        %2780 = vmatpush1.msra.mxu0 0.0
        %2781 = vmatprep.subr.mxu0 0.0
        %2782 = vmatpush1.msra.mxu0 0.0
        %2783 = vmatprep.subr.mxu0 0.0
        %2784 = vmatpush1.msra.mxu0 0.0
        %2785 = vmatprep.subr.mxu0 0.0
        %2786 = vmatpush1.msra.mxu0 0.0
        %2787 = vmatprep.subr.mxu0 0.0
        %2788 = vmatpush1.msra.mxu0 0.0
        %2789 = vmatprep.subr.mxu0 0.0
        %2790 = vmatpush1.msra.mxu0 0.0
        %2791 = vmatprep.subr.mxu0 0.0
        %2792 = vmatpush1.msra.mxu0 0.0
        %2793 = vmatprep.subr.mxu0 0.0
        %2794 = vmatpush1.msra.mxu0 0.0
        %2795 = vmatprep.subr.mxu0 0.0
        %2796 = vmatpush1.msra.mxu0 0.0
        %2797 = vmatprep.subr.mxu0 0.0
        %2798 = vmatpush1.msra.mxu0 0.0
        %2799 = vmatprep.subr.mxu0 0.0
        %2800 = vmatpush1.msra.mxu0 0.0
        %2801 = vmatprep.subr.mxu0 0.0
        %2802 = vmatpush1.msra.mxu0 0.0
        %2803 = vmatprep.subr.mxu0 0.0
        %2804 = vmatpush1.msra.mxu0 0.0
        %2805 = vmatprep.subr.mxu0 0.0
        %2806 = vmatpush1.msra.mxu0 0.0
        %2807 = vmatprep.subr.mxu0 0.0
        %2808 = vmatpush1.msra.mxu0 0.0
        %2809 = vmatprep.subr.mxu0 0.0
        %2810 = vmatpush1.msra.mxu0 0.0
        %2811 = vmatprep.subr.mxu0 0.0
        %2812 = vmatpush1.msra.mxu0 0.0
        %2813 = vmatprep.mubr.f32.mxu0 0.0
        %2814 = vmatmul.mubr.f32.gmra.mrb[0].mxu0 %v2747
        %v2815 = vpop.f32.mrb[0].mxu0
        %v2816 = vadd.f32 %v2743, %v2815
        %v2817 = vpop.f32.mrb[0].mxu0
        %v2818 = vadd.f32 %v2743, %v2817
        %2819 = vdwg.mxu0
        %v2822 = vcombine.low %v2816, %v2818
        %2824 = vst [vmem:[%s299] sm:$0xff] %v2822
        %s2825 = sand.u32 %s203, 1
        %s2826 = scalar_lea.sflag [#allocation3], %s2825
        %s2827 = sand.u32 %s203, 1
        %s2828 = smul.addr %s2827, 8
        %s2829 = scalar_lea.vmem [#allocation2], %s2828
        // Predicated region
        $region53: #{tpu_custom_call.1} parent=51 // pred_check
          %p2830 = pneg %p213
        $region54: #{tpu_custom_call.1} parent=51 // pred_check_branch
          %2832 = sbr.rel (%p2830) target = $region56
        $region55: #{tpu_custom_call.1} parent=51 // pred_region
          %s2833 = smul.u32 2, %s22
          %s2835 = ssub.s32 128, 128
          %2836 = vsyncadd %s2826, %s2835
          %s2837 = smul.addr %s2833, 64
          %s2838 = scalar_lea.hbm %s8, %s2837
          %s2840 = sshll.u32 %s2829, 4
          %s2841 = int_to_ptr.vmem [resolvable:$true] %s2840
          %2843 = dma.vmem_to_hbm [thread:$0]  %s2841, 128, %s2838, %s2826
        $region56: #{tpu_custom_call.1} parent=51 // pred_fallthru
          _
      $region52: #{tpu_custom_call.1} parent=5 // pred_fallthru
        _
      %p2844 = scmp.le.s32.totalorder 2, %s17
      // Predicated region
      $region57: #{tpu_custom_call.1} parent=5 // pred_check
        %p2845 = pneg %p2844
      $region58: #{tpu_custom_call.1} parent=5 // pred_check_branch
        %2847 = sbr.rel (%p2845) target = $region60
      $region59: #{tpu_custom_call.1} parent=5 // pred_region
        %s2848 = ssub.s32 %s17, 2
        // Predicated region
        $region61: #{tpu_custom_call.1} parent=59 // pred_check
          %p2849 = pneg %p219
        $region62: #{tpu_custom_call.1} parent=59 // pred_check_branch
          %2851 = sbr.rel (%p2849) target = $region64
        $region63: #{tpu_custom_call.1} parent=59 // pred_region
          %s2852 = sand.u32 %s204, 1
          %s2853 = scalar_lea.sflag [#allocation3], %s2852
          %s2854 = sand.u32 %s204, 1
          %s2855 = smul.addr %s2854, 8
          %s2856 = scalar_lea.vmem [#allocation2], %s2855
          %2857 = dma.done %s2853, 128
        $region64: #{tpu_custom_call.1} parent=59 // pred_fallthru
          _
      $region60: #{tpu_custom_call.1} parent=5 // pred_fallthru
        _
    $region6: #{tpu_custom_call.1} parent=1 // loop_footer
      %s21 = sadd.s32 1, %s17
    $region7: #{tpu_custom_call.1} parent=1 // loop_footer_branch
      %16 = sbr.rel target = $region3
    $region8: #{tpu_custom_call.1} parent=1 // loop_exit
      _
    %2858 = vsyncpa [#allocation3], 1
    %s2859 = scalar_lea.sflag [#allocation3], 1
    %2860 = vsyncpa %s2859, 1

</llo_original>
